<compile_context>
chip_gen: v5e
topology: v5e:2x2
jax: 0.10.0
libtpu: 0.0.40
codegen_flags: <defaults>
</compile_context>

<pallas_src>
import numpy as np
import jax
import jax.numpy as jnp
from jax import lax
from jax.experimental import pallas as pl
from jax.experimental.pallas import tpu as pltpu

PI = np.pi


# ----------------------------------------------------------------------------
# Pallas kernel: one (image, row-block) per grid step.
# ----------------------------------------------------------------------------
def _rpn_head_kernel(xw_ref, wconv_ref, bconv_ref, wout_ref, bout_ref,
                     out_ref, *scratch):
    # xw_ref    : (Ht+2, W+2, Cin)   zero-padded row window (1-row halo), bf16
    # wconv_ref : (9*Cin, Cf) bf16   [im2col mode]   or (9, Cin, Cf) bf16 [tap-accumulate mode]
    # bconv_ref : (1, Cf)            f32
    # wout_ref  : (Cf, Cpad)         fused [cls | reg | 0-pad] weight, bf16
    # bout_ref  : (1, Cpad)          f32
    # out_ref   : (Ht, W, Cpad)      f32, lane-dense (Cpad % 128 == 0)
    # scratch   : (patch_ref,) bf16 (Ht, W, 9*Cin)  only in im2col mode
    Ht, W, Cpad = out_ref.shape
    Cin = xw_ref.shape[-1]
    rows = Ht * W
    use_im2col = (len(wconv_ref.shape) == 2)

    if use_im2col:
        # Small Cin: build the im2col buffer once (bf16, no dtype round-trip)
        # and do ONE fused-K matmul on the MXU.
        patch_ref = scratch[0]
        for dy in range(3):
            for dx in range(3):
                k = dy * 3 + dx
                patch_ref[:, :, k * Cin:(k + 1) * Cin] = (
                    xw_ref[dy:dy + Ht, dx:dx + W, :])
        patches = patch_ref[...].reshape(rows, 9 * Cin)
        feat = jnp.dot(patches, wconv_ref[...],
                       preferred_element_type=jnp.float32)
    else:
        # Large Cin (>=128): 9 accumulating matmuls, K=Cin per tap fills the
        # MXU and avoids materializing the 9x im2col buffer in VMEM.
        feat = None
        for dy in range(3):
            for dx in range(3):
                k = dy * 3 + dx
                tap = xw_ref[dy:dy + Ht, dx:dx + W, :].reshape(rows, Cin)
                d = jnp.dot(tap, wconv_ref[k],
                            preferred_element_type=jnp.float32)
                feat = d if feat is None else feat + d

    feat = jnp.maximum(feat + bconv_ref[...], 0.0)        # bias + ReLU in f32

    # Fused cls+reg 1x1 convs: one lane-dense matmul + one bias add.
    out = jnp.dot(feat.astype(jnp.bfloat16), wout_ref[...],
                  preferred_element_type=jnp.float32)
    out_ref[...] = (out + bout_ref[...]).reshape(Ht, W, Cpad)


def _vmem_capacity_bytes():
    """Per-TensorCore VMEM capacity; conservative 64 MiB (v7x) fallback."""
    try:
        info = pltpu.get_tpu_info()
        cap = getattr(info, "vmem_capacity_bytes", None)
        if cap:
            return int(cap)
    except Exception:
        pass
    return 64 * 1024 * 1024


# ----------------------------------------------------------------------------
# Wrapper (per feature level) — equivalent to RPNHeadRbbox.forward_single
# ----------------------------------------------------------------------------
def rpn_forward_single(x_nchw, params):
    N, Cin, H, W = map(int, x_nchw.shape)
    Cf = int(params["w_conv"].shape[-1])
    Ccls = int(params["w_cls"].shape[-1])
    Creg = int(params["w_reg"].shape[-1])
    Cout = Ccls + Creg
    Cpad = ((Cout + 127) // 128) * 128          # lane-dense output channels

    # Conv strategy gated on channel count (see kernel).
    use_im2col = Cin < 128

    # ---- per-generation VMEM budgeting ----------------------------------
    vmem_cap = _vmem_capacity_bytes()
    budget = int(vmem_cap * 0.40)               # live-block budget (leaves room
                                                # for double buffers + internals)
    vmem_limit = int(min(vmem_cap * 0.85, 120 * 1024 * 1024))

    def _block_bytes(ht):
        rows = ht * W
        b = 2 * (ht + 2) * (W + 2) * Cin * 2            # input window, bf16, x2 buffers
        b += 2 * rows * Cpad * 4                        # output block, f32, x2 buffers
        b += rows * 9 * Cin * 2 if use_im2col else rows * Cf * 4   # scratch / acc
        b += 2 * (9 * Cin * Cf * 2 + Cf * 4 + Cf * Cpad * 2 + Cpad * 4)  # weights
        return b

    Ht = H
    while Ht > 1 and _block_bytes(Ht) > budget:
        Ht = (Ht + 1) // 2
    n_rb = -(-H // Ht)
    if N * n_rb < 2 and H >= 2:      # >=2 grid steps: feed both v7x TensorCores
        Ht = (H + 1) // 2
        n_rb = -(-H // Ht)
    H_pad = n_rb * Ht

    # ---- input prep: transpose + bf16 cast + zero-pad fused in one chain --
    x_nhwc = jnp.transpose(x_nchw, (0, 2, 3, 1)).astype(jnp.bfloat16)
    xp = jnp.pad(x_nhwc, ((0, 0), (1, 1 + H_pad - H), (1, 1), (0, 0)))
    if n_rb == 1:
        xw = xp[:, None]            # (N, 1, H+2, W+2, Cin) — free reshape
    else:
        # Overlapping halo'd row windows so plain Blocked specs can tile H.
        xw = jnp.stack([xp[:, r * Ht:r * Ht + Ht + 2] for r in range(n_rb)],
                       axis=1)      # (N, n_rb, Ht+2, W+2, Cin)

    # ---- fused / padded weights (pure glue, built once per call) ----------
    if use_im2col:
        w_conv = params["w_conv"].reshape(9 * Cin, Cf).astype(jnp.bfloat16)
        wconv_spec = pl.BlockSpec((9 * Cin, Cf), lambda b, r: (0, 0))
    else:
        w_conv = params["w_conv"].reshape(9, Cin, Cf).astype(jnp.bfloat16)
        wconv_spec = pl.BlockSpec((9, Cin, Cf), lambda b, r: (0, 0, 0))
    b_conv = params["b_conv"].reshape(1, Cf).astype(jnp.float32)
    w_out = jnp.concatenate([params["w_cls"], params["w_reg"]], axis=1)
    w_out = jnp.pad(w_out, ((0, 0), (0, Cpad - Cout))).astype(jnp.bfloat16)
    b_out = jnp.concatenate([params["b_cls"], params["b_reg"]], axis=1)
    b_out = jnp.pad(b_out, ((0, 0), (0, Cpad - Cout))).astype(jnp.float32)

    scratch_shapes = ([pltpu.VMEM((Ht, W, 9 * Cin), jnp.bfloat16)]
                      if use_im2col else [])

    out = pl.pallas_call(
        _rpn_head_kernel,
        out_shape=jax.ShapeDtypeStruct((N, H_pad, W, Cpad), jnp.float32),
        grid_spec=pltpu.PrefetchScalarGridSpec(
            num_scalar_prefetch=0,
            grid=(N, n_rb),
            in_specs=[
                # halo'd input row window: one (image, row-block) per step
                pl.BlockSpec((None, None, Ht + 2, W + 2, Cin),
                             lambda b, r: (b, r, 0, 0, 0)),
                # weights / biases: whole arrays, same block every step
                wconv_spec,
                pl.BlockSpec((1, Cf), lambda b, r: (0, 0)),
                pl.BlockSpec((Cf, Cpad), lambda b, r: (0, 0)),
                pl.BlockSpec((1, Cpad), lambda b, r: (0, 0)),
            ],
            out_specs=pl.BlockSpec((None, Ht, W, Cpad),
                                   lambda b, r: (b, r, 0, 0)),
            scratch_shapes=scratch_shapes,
        ),
        compiler_params=pltpu.CompilerParams(
            dimension_semantics=("parallel", "parallel"),
            vmem_limit_bytes=vmem_limit),
    )(xw, w_conv, b_conv, w_out, b_out)

    # Drop row padding, split fused output into cls / reg, back to NCHW.
    out = out[:, :H]
    rpn_cls_score = jnp.transpose(out[..., :Ccls], (0, 3, 1, 2))
    rpn_bbox_pred = jnp.transpose(out[..., Ccls:Cout], (0, 3, 1, 2))
    return rpn_cls_score, rpn_bbox_pred


def rpn_forward(feats, params):
    """Equivalent of RPNHeadRbbox.forward: multi_apply over feature levels."""
    outs = [rpn_forward_single(f, params) for f in feats]
    return [o[0] for o in outs], [o[1] for o in outs]


# ----------------------------------------------------------------------------
# Parameter construction (deterministic, mirrors _init_layers / init_weights)
# ----------------------------------------------------------------------------
def make_params(key, in_channels, feat_channels, num_anchors,
                cls_out_channels):
    k1, k2, k3 = jax.random.split(key, 3)
    std = 0.01  # normal_init(std=0.01)
    w_conv = jax.random.normal(
        k1, (3, 3, in_channels, feat_channels), jnp.float32) * std  # HWIO
    w_cls = jax.random.normal(
        k2, (feat_channels, num_anchors * cls_out_channels),
        jnp.float32) * std
    w_reg = jax.random.normal(
        k3, (feat_channels, num_anchors * 5), jnp.float32) * std
    return {
        "w_conv": w_conv,
        "b_conv": jnp.zeros((1, feat_channels), jnp.float32),
        "w_cls": w_cls,
        "b_cls": jnp.zeros((1, num_anchors * cls_out_channels), jnp.float32),
        "w_reg": w_reg,
        "b_reg": jnp.zeros((1, num_anchors * 5), jnp.float32),
    }


# ----------------------------------------------------------------------------
# Pure-JAX reference of forward_single (operands quantized to bf16 exactly as
# the kernel does, accumulation in f32) for a tight correctness check.
# ----------------------------------------------------------------------------
def _q(a):
    return a.astype(jnp.bfloat16).astype(jnp.float32)


def rpn_forward_single_ref(x_nchw, params):
    x = _q(jnp.transpose(x_nchw, (0, 2, 3, 1)).astype(jnp.float32))  # NHWC
    feat = lax.conv_general_dilated(
        x, _q(params["w_conv"]), (1, 1), ((1, 1), (1, 1)),
        dimension_numbers=("NHWC", "HWIO", "NHWC"),
        precision=lax.Precision.HIGHEST)
    feat = jnp.maximum(feat + params["b_conv"].reshape(1, 1, 1, -1), 0.0)
    featq = _q(feat)
    cls = jnp.einsum("nhwc,ck->nhwk", featq, _q(params["w_cls"]),
                     precision=lax.Precision.HIGHEST)
    cls = cls + params["b_cls"].reshape(1, 1, 1, -1)
    reg = jnp.einsum("nhwc,ck->nhwk", featq, _q(params["w_reg"]),
                     precision=lax.Precision.HIGHEST)
    reg = reg + params["b_reg"].reshape(1, 1, 1, -1)
    return (jnp.transpose(cls, (0, 3, 1, 2)),
            jnp.transpose(reg, (0, 3, 1, 2)))


# ----------------------------------------------------------------------------
# main
# ----------------------------------------------------------------------------
if __name__ == "__main__":
    # RPNHeadRbbox config (small feat_channels for the demo)
    in_channels = 4
    feat_channels = 32
    anchor_scales = [8, 16, 32]
    anchor_ratios = [0.5, 1.0, 2.0]
    anchor_angles = [0, PI / 6, PI / 3, PI / 2, PI / 3 * 2]
    num_anchors = len(anchor_ratios) * len(anchor_scales) * len(anchor_angles)  # 45
    cls_out_channels = 1  # use_sigmoid_cls=True -> num_classes - 1

    key = jax.random.PRNGKey(0)
    kp, kx1, kx2, kp2, kx3 = jax.random.split(key, 5)
    params = make_params(kp, in_channels, feat_channels, num_anchors,
                         cls_out_channels)

    # Multi-level FPN-style feature maps, NCHW (as the PyTorch module expects).
    feats = (
        jax.random.normal(kx1, (2, in_channels, 16, 16), jnp.float32),
        jax.random.normal(kx2, (2, in_channels, 8, 8), jnp.float32),
    )

    cls_scores, bbox_preds = rpn_forward(feats, params)
    jax.block_until_ready(cls_scores)
    jax.block_until_ready(bbox_preds)

    # Correctness check against the pure-JAX reference (im2col conv path).
    for lvl, x in enumerate(feats):
        cls_ref, reg_ref = rpn_forward_single_ref(x, params)
        np.testing.assert_allclose(np.asarray(cls_scores[lvl]),
                                   np.asarray(cls_ref),
                                   rtol=1e-2, atol=2e-4)
        np.testing.assert_allclose(np.asarray(bbox_preds[lvl]),
                                   np.asarray(reg_ref),
                                   rtol=1e-2, atol=2e-4)
        assert cls_scores[lvl].shape == (x.shape[0],
                                         num_anchors * cls_out_channels,
                                         x.shape[2], x.shape[3])
        assert bbox_preds[lvl].shape == (x.shape[0], num_anchors * 5,
                                         x.shape[2], x.shape[3])

    # Second config with Cin = Cf = 128: exercises the large-channel
    # tap-accumulate conv path (no im2col VMEM blowup, K=Cin per matmul).
    params_big = make_params(kp2, 128, 128, num_anchors, cls_out_channels)
    x_big = jax.random.normal(kx3, (2, 128, 8, 8), jnp.float32)
    cls_b, reg_b = rpn_forward_single(x_big, params_big)
    jax.block_until_ready((cls_b, reg_b))
    cls_ref_b, reg_ref_b = rpn_forward_single_ref(x_big, params_big)
    np.testing.assert_allclose(np.asarray(cls_b), np.asarray(cls_ref_b),
                               rtol=1e-2, atol=2e-4)
    np.testing.assert_allclose(np.asarray(reg_b), np.asarray(reg_ref_b),
                               rtol=1e-2, atol=2e-4)

    # TODO(synk): loss()/get_bboxes() (anchor generation, rotated-box NMS,
    # topk) are host-side post-processing, not part of the forward hot path.
    print("KERNEL_OK")
</pallas_src>

<mosaic_0001>
module attributes {stable_mosaic.version = 11 : i64} {
  func.func @_rpn_head_kernel(%arg0: i32, %arg1: i32, %arg2: memref<1x1x18x18x4xbf16, #tpu.memory_space<vmem>>, %arg3: memref<36x32xbf16, #tpu.memory_space<vmem>>, %arg4: memref<1x32xf32, #tpu.memory_space<vmem>>, %arg5: memref<32x384xbf16, #tpu.memory_space<vmem>>, %arg6: memref<1x384xf32, #tpu.memory_space<vmem>>, %arg7: memref<1x16x16x384xf32, #tpu.memory_space<vmem>>, %arg8: memref<16x16x36xbf16, #tpu.memory_space<vmem>>) attributes {dimension_semantics = [#tpu.dimension_semantics<parallel>, #tpu.dimension_semantics<parallel>], iteration_bounds = array<i64: 2, 1>, scalar_prefetch = 0 : i64, scratch_operands = 1 : i64, tpu.core_type = #tpu.core_type<tc>, window_params = [{transform_indices = @transform_0, window_bounds = array<i64: 1, 1, 18, 18, 4>}, {pipeline_mode = #tpu.pipeline_mode<synchronous>, transform_indices = @transform_1, window_bounds = array<i64: 36, 32>}, {pipeline_mode = #tpu.pipeline_mode<synchronous>, transform_indices = @transform_2, window_bounds = array<i64: 1, 32>}, {pipeline_mode = #tpu.pipeline_mode<synchronous>, transform_indices = @transform_3, window_bounds = array<i64: 32, 384>}, {pipeline_mode = #tpu.pipeline_mode<synchronous>, transform_indices = @transform_4, window_bounds = array<i64: 1, 384>}, {transform_indices = @transform_5, window_bounds = array<i64: 1, 16, 16, 384>}]} {
    %c0 = arith.constant 0 : index
    %c0_0 = arith.constant 0 : index
    %c0_1 = arith.constant 0 : index
    %c0_2 = arith.constant 0 : index
    %c0_3 = arith.constant 0 : index
    %0 = vector.load %arg2[%c0, %c0_0, %c0_1, %c0_2, %c0_3] : memref<1x1x18x18x4xbf16, #tpu.memory_space<vmem>>, vector<1x1x16x16x4xbf16>
    %1 = vector.shape_cast %0 : vector<1x1x16x16x4xbf16> to vector<16x16x4xbf16>
    %c0_4 = arith.constant 0 : index
    %c0_5 = arith.constant 0 : index
    %c0_6 = arith.constant 0 : index
    %2 = vector.load %arg8[%c0_4, %c0_5, %c0_6] : memref<16x16x36xbf16, #tpu.memory_space<vmem>>, vector<16x16x4xbf16>
    tpu.vector_store %arg8[%c0_4, %c0_5, %c0_6], %1 {strides = array<i32>} : memref<16x16x36xbf16, #tpu.memory_space<vmem>>, vector<16x16x4xbf16>,
    %c0_7 = arith.constant 0 : index
    %c0_8 = arith.constant 0 : index
    %c0_9 = arith.constant 0 : index
    %c1 = arith.constant 1 : index
    %c0_10 = arith.constant 0 : index
    %3 = vector.load %arg2[%c0_7, %c0_8, %c0_9, %c1, %c0_10] : memref<1x1x18x18x4xbf16, #tpu.memory_space<vmem>>, vector<1x1x16x16x4xbf16>
    %4 = vector.shape_cast %3 : vector<1x1x16x16x4xbf16> to vector<16x16x4xbf16>
    %c0_11 = arith.constant 0 : index
    %c0_12 = arith.constant 0 : index
    %c4 = arith.constant 4 : index
    %5 = vector.load %arg8[%c0_11, %c0_12, %c4] : memref<16x16x36xbf16, #tpu.memory_space<vmem>>, vector<16x16x4xbf16>
    tpu.vector_store %arg8[%c0_11, %c0_12, %c4], %4 {strides = array<i32>} : memref<16x16x36xbf16, #tpu.memory_space<vmem>>, vector<16x16x4xbf16>,
    %c0_13 = arith.constant 0 : index
    %c0_14 = arith.constant 0 : index
    %c0_15 = arith.constant 0 : index
    %c2 = arith.constant 2 : index
    %c0_16 = arith.constant 0 : index
    %6 = vector.load %arg2[%c0_13, %c0_14, %c0_15, %c2, %c0_16] : memref<1x1x18x18x4xbf16, #tpu.memory_space<vmem>>, vector<1x1x16x16x4xbf16>
    %7 = vector.shape_cast %6 : vector<1x1x16x16x4xbf16> to vector<16x16x4xbf16>
    %c0_17 = arith.constant 0 : index
    %c0_18 = arith.constant 0 : index
    %c8 = arith.constant 8 : index
    %8 = vector.load %arg8[%c0_17, %c0_18, %c8] : memref<16x16x36xbf16, #tpu.memory_space<vmem>>, vector<16x16x4xbf16>
    tpu.vector_store %arg8[%c0_17, %c0_18, %c8], %7 {strides = array<i32>} : memref<16x16x36xbf16, #tpu.memory_space<vmem>>, vector<16x16x4xbf16>,
    %c0_19 = arith.constant 0 : index
    %c0_20 = arith.constant 0 : index
    %c1_21 = arith.constant 1 : index
    %c0_22 = arith.constant 0 : index
    %c0_23 = arith.constant 0 : index
    %9 = vector.load %arg2[%c0_19, %c0_20, %c1_21, %c0_22, %c0_23] : memref<1x1x18x18x4xbf16, #tpu.memory_space<vmem>>, vector<1x1x16x16x4xbf16>
    %10 = vector.shape_cast %9 : vector<1x1x16x16x4xbf16> to vector<16x16x4xbf16>
    %c0_24 = arith.constant 0 : index
    %c0_25 = arith.constant 0 : index
    %c12 = arith.constant 12 : index
    %11 = vector.load %arg8[%c0_24, %c0_25, %c12] : memref<16x16x36xbf16, #tpu.memory_space<vmem>>, vector<16x16x4xbf16>
    tpu.vector_store %arg8[%c0_24, %c0_25, %c12], %10 {strides = array<i32>} : memref<16x16x36xbf16, #tpu.memory_space<vmem>>, vector<16x16x4xbf16>,
    %c0_26 = arith.constant 0 : index
    %c0_27 = arith.constant 0 : index
    %c1_28 = arith.constant 1 : index
    %c1_29 = arith.constant 1 : index
    %c0_30 = arith.constant 0 : index
    %12 = vector.load %arg2[%c0_26, %c0_27, %c1_28, %c1_29, %c0_30] : memref<1x1x18x18x4xbf16, #tpu.memory_space<vmem>>, vector<1x1x16x16x4xbf16>
    %13 = vector.shape_cast %12 : vector<1x1x16x16x4xbf16> to vector<16x16x4xbf16>
    %c0_31 = arith.constant 0 : index
    %c0_32 = arith.constant 0 : index
    %c16 = arith.constant 16 : index
    %14 = vector.load %arg8[%c0_31, %c0_32, %c16] : memref<16x16x36xbf16, #tpu.memory_space<vmem>>, vector<16x16x4xbf16>
    tpu.vector_store %arg8[%c0_31, %c0_32, %c16], %13 {strides = array<i32>} : memref<16x16x36xbf16, #tpu.memory_space<vmem>>, vector<16x16x4xbf16>,
    %c0_33 = arith.constant 0 : index
    %c0_34 = arith.constant 0 : index
    %c1_35 = arith.constant 1 : index
    %c2_36 = arith.constant 2 : index
    %c0_37 = arith.constant 0 : index
    %15 = vector.load %arg2[%c0_33, %c0_34, %c1_35, %c2_36, %c0_37] : memref<1x1x18x18x4xbf16, #tpu.memory_space<vmem>>, vector<1x1x16x16x4xbf16>
    %16 = vector.shape_cast %15 : vector<1x1x16x16x4xbf16> to vector<16x16x4xbf16>
    %c0_38 = arith.constant 0 : index
    %c0_39 = arith.constant 0 : index
    %c20 = arith.constant 20 : index
    %17 = vector.load %arg8[%c0_38, %c0_39, %c20] : memref<16x16x36xbf16, #tpu.memory_space<vmem>>, vector<16x16x4xbf16>
    tpu.vector_store %arg8[%c0_38, %c0_39, %c20], %16 {strides = array<i32>} : memref<16x16x36xbf16, #tpu.memory_space<vmem>>, vector<16x16x4xbf16>,
    %c0_40 = arith.constant 0 : index
    %c0_41 = arith.constant 0 : index
    %c2_42 = arith.constant 2 : index
    %c0_43 = arith.constant 0 : index
    %c0_44 = arith.constant 0 : index
    %18 = vector.load %arg2[%c0_40, %c0_41, %c2_42, %c0_43, %c0_44] : memref<1x1x18x18x4xbf16, #tpu.memory_space<vmem>>, vector<1x1x16x16x4xbf16>
    %19 = vector.shape_cast %18 : vector<1x1x16x16x4xbf16> to vector<16x16x4xbf16>
    %c0_45 = arith.constant 0 : index
    %c0_46 = arith.constant 0 : index
    %c24 = arith.constant 24 : index
    %20 = vector.load %arg8[%c0_45, %c0_46, %c24] : memref<16x16x36xbf16, #tpu.memory_space<vmem>>, vector<16x16x4xbf16>
    tpu.vector_store %arg8[%c0_45, %c0_46, %c24], %19 {strides = array<i32>} : memref<16x16x36xbf16, #tpu.memory_space<vmem>>, vector<16x16x4xbf16>,
    %c0_47 = arith.constant 0 : index
    %c0_48 = arith.constant 0 : index
    %c2_49 = arith.constant 2 : index
    %c1_50 = arith.constant 1 : index
    %c0_51 = arith.constant 0 : index
    %21 = vector.load %arg2[%c0_47, %c0_48, %c2_49, %c1_50, %c0_51] : memref<1x1x18x18x4xbf16, #tpu.memory_space<vmem>>, vector<1x1x16x16x4xbf16>
    %22 = vector.shape_cast %21 : vector<1x1x16x16x4xbf16> to vector<16x16x4xbf16>
    %c0_52 = arith.constant 0 : index
    %c0_53 = arith.constant 0 : index
    %c28 = arith.constant 28 : index
    %23 = vector.load %arg8[%c0_52, %c0_53, %c28] : memref<16x16x36xbf16, #tpu.memory_space<vmem>>, vector<16x16x4xbf16>
    tpu.vector_store %arg8[%c0_52, %c0_53, %c28], %22 {strides = array<i32>} : memref<16x16x36xbf16, #tpu.memory_space<vmem>>, vector<16x16x4xbf16>,
    %c0_54 = arith.constant 0 : index
    %c0_55 = arith.constant 0 : index
    %c2_56 = arith.constant 2 : index
    %c2_57 = arith.constant 2 : index
    %c0_58 = arith.constant 0 : index
    %24 = vector.load %arg2[%c0_54, %c0_55, %c2_56, %c2_57, %c0_58] : memref<1x1x18x18x4xbf16, #tpu.memory_space<vmem>>, vector<1x1x16x16x4xbf16>
    %25 = vector.shape_cast %24 : vector<1x1x16x16x4xbf16> to vector<16x16x4xbf16>
    %c0_59 = arith.constant 0 : index
    %c0_60 = arith.constant 0 : index
    %c32 = arith.constant 32 : index
    %26 = vector.load %arg8[%c0_59, %c0_60, %c32] : memref<16x16x36xbf16, #tpu.memory_space<vmem>>, vector<16x16x4xbf16>
    tpu.vector_store %arg8[%c0_59, %c0_60, %c32], %25 {strides = array<i32>} : memref<16x16x36xbf16, #tpu.memory_space<vmem>>, vector<16x16x4xbf16>,
    %c0_61 = arith.constant 0 : index
    %c0_62 = arith.constant 0 : index
    %c0_63 = arith.constant 0 : index
    %27 = vector.load %arg8[%c0_61, %c0_62, %c0_63] : memref<16x16x36xbf16, #tpu.memory_space<vmem>>, vector<16x16x36xbf16>
    %28 = vector.shape_cast %27 : vector<16x16x36xbf16> to vector<256x36xbf16>
    %c0_64 = arith.constant 0 : index
    %c0_65 = arith.constant 0 : index
    %29 = vector.load %arg3[%c0_64, %c0_65] : memref<36x32xbf16, #tpu.memory_space<vmem>>, vector<36x32xbf16>
    %cst = arith.constant dense<0.000000e+00> : vector<256x32xf32>
    %30 = tpu.matmul %28, %29, %cst {dimension_numbers = #tpu.dot_dimension_numbers<[1], [0], [0], [1], [0, 0, 1, 1], [], []>} : vector<256x36xbf16>, vector<36x32xbf16>, vector<256x32xf32> -> vector<256x32xf32>
    %c0_66 = arith.constant 0 : index
    %c0_67 = arith.constant 0 : index
    %31 = vector.load %arg4[%c0_66, %c0_67] : memref<1x32xf32, #tpu.memory_space<vmem>>, vector<1x32xf32>
    %32 = vector.broadcast %31 : vector<1x32xf32> to vector<256x32xf32>
    %33 = arith.addf %30, %32 : vector<256x32xf32>
    %cst_68 = arith.constant 0.000000e+00 : f32
    %34 = vector.broadcast %cst_68 : f32 to vector<256x32xf32>
    %35 = arith.maximumf %33, %34 : vector<256x32xf32>
    %36 = arith.truncf %35 : vector<256x32xf32> to vector<256x32xbf16>
    %c0_69 = arith.constant 0 : index
    %c0_70 = arith.constant 0 : index
    %37 = vector.load %arg5[%c0_69, %c0_70] : memref<32x384xbf16, #tpu.memory_space<vmem>>, vector<32x384xbf16>
    %cst_71 = arith.constant dense<0.000000e+00> : vector<256x384xf32>
    %38 = tpu.matmul %36, %37, %cst_71 {dimension_numbers = #tpu.dot_dimension_numbers<[1], [0], [0], [1], [0, 0, 1, 1], [], []>} : vector<256x32xbf16>, vector<32x384xbf16>, vector<256x384xf32> -> vector<256x384xf32>
    %c0_72 = arith.constant 0 : index
    %c0_73 = arith.constant 0 : index
    %39 = vector.load %arg6[%c0_72, %c0_73] : memref<1x384xf32, #tpu.memory_space<vmem>>, vector<1x384xf32>
    %40 = vector.broadcast %39 : vector<1x384xf32> to vector<256x384xf32>
    %41 = arith.addf %38, %40 : vector<256x384xf32>
    %42 = vector.shape_cast %41 : vector<256x384xf32> to vector<16x16x384xf32>
    %c0_74 = arith.constant 0 : index
    %c0_75 = arith.constant 0 : index
    %c0_76 = arith.constant 0 : index
    %c0_77 = arith.constant 0 : index
    %43 = vector.load %arg7[%c0_74, %c0_75, %c0_76, %c0_77] : memref<1x16x16x384xf32, #tpu.memory_space<vmem>>, vector<1x16x16x384xf32>
    %44 = vector.shape_cast %43 : vector<1x16x16x384xf32> to vector<16x16x384xf32>
    %45 = vector.shape_cast %42 : vector<16x16x384xf32> to vector<1x16x16x384xf32>
    tpu.vector_store %arg7[%c0_74, %c0_75, %c0_76, %c0_77], %45 {strides = array<i32>} : memref<1x16x16x384xf32, #tpu.memory_space<vmem>>, vector<1x16x16x384xf32>,
    return
  }
  func.func @transform_0(%arg0: i32, %arg1: i32) -> (i32, i32, i32, i32, i32) {
    %c0_i32 = arith.constant 0 : i32
    %c0_i32_0 = arith.constant 0 : i32
    %c0_i32_1 = arith.constant 0 : i32
    %c0_i32_2 = arith.constant 0 : i32
    return %arg0, %arg1, %c0_i32, %c0_i32_0, %c0_i32_1 : i32, i32, i32, i32, i32
  }
  func.func @transform_1(%arg0: i32, %arg1: i32) -> (i32, i32) {
    %c0_i32 = arith.constant 0 : i32
    %c0_i32_0 = arith.constant 0 : i32
    %c0_i32_1 = arith.constant 0 : i32
    return %c0_i32, %c0_i32_0 : i32, i32
  }
  func.func @transform_2(%arg0: i32, %arg1: i32) -> (i32, i32) {
    %c0_i32 = arith.constant 0 : i32
    %c0_i32_0 = arith.constant 0 : i32
    %c0_i32_1 = arith.constant 0 : i32
    return %c0_i32, %c0_i32_0 : i32, i32
  }
  func.func @transform_3(%arg0: i32, %arg1: i32) -> (i32, i32) {
    %c0_i32 = arith.constant 0 : i32
    %c0_i32_0 = arith.constant 0 : i32
    %c0_i32_1 = arith.constant 0 : i32
    return %c0_i32, %c0_i32_0 : i32, i32
  }
  func.func @transform_4(%arg0: i32, %arg1: i32) -> (i32, i32) {
    %c0_i32 = arith.constant 0 : i32
    %c0_i32_0 = arith.constant 0 : i32
    %c0_i32_1 = arith.constant 0 : i32
    return %c0_i32, %c0_i32_0 : i32, i32
  }
  func.func @transform_5(%arg0: i32, %arg1: i32) -> (i32, i32, i32, i32) {
    %c0_i32 = arith.constant 0 : i32
    %c0_i32_0 = arith.constant 0 : i32
    %c0_i32_1 = arith.constant 0 : i32
    return %arg0, %arg1, %c0_i32, %c0_i32_0 : i32, i32, i32, i32
  }
}

</mosaic_0001>

<llo_original>
// kernel: tpu_custom_call.1
$region0: #{tpu_custom_call.1}
  #allocation0 [shape = 'u32[]', space=smem, size = 0x4, offset = 0x4, fixed_abs, tag = 'smem constant byte address 0x4 - core index']
  #allocation1 [shape = 'u32[72,128]{1,0:T(1,128)}', space=vmem, size = 0x9000, scoped, tag = 'internal scratch']
  #allocation2 [shape = 'bf16[16,16,36]{2,1,0:T(8,128)(2,1)}', space=vmem, size = 0x10000, scoped, tag = 'scratch operand']
  %s0 = inlined_call_operand.vmem [shape: bf16[2,1,18,18,4], index: 0, kind: input, shape index: {}]
  %s1 = inlined_call_operand.vmem [shape: bf16[36,32], index: 1, kind: input, shape index: {}]
  %s2 = inlined_call_operand.vmem [shape: f32[1,32], index: 2, kind: input, shape index: {}]
  %s3 = inlined_call_operand.vmem [shape: bf16[32,384], index: 3, kind: input, shape index: {}]
  %s4 = inlined_call_operand.vmem [shape: f32[1,384], index: 4, kind: input, shape index: {}]
  %s5 = inlined_call_operand.hbm [shape: f32[2,16,16,384], index: 5, kind: output, shape index: {}]
  %s6 = sld [smem:[#allocation0]]
  $region53: #{tpu_custom_call.1} parent=0
    _
  %s8 = ssub.s32 1, %s6
  %s9 = scalar_select 0, %s8, %s6
  $region1: #{tpu_custom_call.1} parent=0
    #allocation3 [shape = 'u8[786432]{0}', space=vmem, size = 0xc0000, scoped, tag = 'output window, operand 0']
    #allocation4 [shape = 's32[2]{0}', space=sflag, size = 0x8, scoped, tag = 'scoped memory for tpu_custom_call.1']
    %10 = vsyncpa [#allocation4], 0
    %s11 = scalar_lea.sflag [#allocation4], 1
    %12 = vsyncpa %s11, 0
    loop: start=0, step=1, limit=4
    $region2: #{tpu_custom_call.1} parent=1 // loop_pre_header
      _
    $region3: #{tpu_custom_call.1} parent=1 // loop_header
      %s14 = sphi 0, %s18
      %p15 = scmp.ge.s32.totalorder %s14, 4
      %s21 = sphi 0, %s33
      %s22 = sphi 0, %s29
      %s23 = sphi 0, %s21
      %s24 = sphi 0, %s22
      %s25 = sphi 0, %s23
      %s26 = sphi 0, %s24
      %s38 = sphi 0, %s40
      %s41 = sphi 0, %s38
      %s42 = sphi 0, %s41
      %s58 = sphi 0, %s42
      %s62 = sphi 0, %s62
      %s64 = sphi 0, %s62
      %s65 = sphi 0, %s64
      %s79 = sphi 0, %s65
      %s83 = sphi 0, %s83
      %s85 = sphi 0, %s83
      %s86 = sphi 0, %s85
      %s100 = sphi 0, %s86
      %s104 = sphi 0, %s104
      %s106 = sphi 0, %s104
      %s107 = sphi 0, %s106
      %s121 = sphi 0, %s107
      %s125 = sphi 0, %s125
      %s127 = sphi 0, %s125
      %s128 = sphi 0, %s127
      %s142 = sphi 0, %s128
      %s150 = sphi 0, %s152
      %s153 = sphi 0, %s150
      %s154 = sphi 0, %s153
      %s170 = sphi 0, %s154
    $region4: #{tpu_custom_call.1} parent=1 // loop_header_branch
      %17 = sbr.rel (%p15) target = $region8
    $region5: #{tpu_custom_call.1} parent=1 // loop_body
      %s19 = ssub.s32 %s14, 1
      %s20 = ssub.s32 %s14, 2
      %s27 = sadd.s32 1, %s22
      %p28 = scmp.ge.s32.totalorder %s27, 1
      %s29 = scalar_select %p28, 0, %s27
      %s30 = sadd.s32 1, %s21
      %s31 = scalar_select %p28, %s30, %s21
      %p32 = scmp.ge.s32.totalorder %s31, 2
      %s33 = scalar_select %p32, 0, %s31
      %s34 = ssub.s32 %s21, %s33
      %s35 = ssub.s32 %s22, %s29
      %s36 = sor.u32 %s34, %s35
      %p37 = scmp.eq.s32.totalorder %s36, 0
      %s39 = sadd.s32 %s38, 1
      %s40 = scalar_select %p37, %s38, %s39
      %p43 = pneg %p37
      %p44 = scmp.eq.s32.totalorder %s14, 1
      %p45 = por %p43, %p44
      %p46 = scmp.ne.s32.totalorder %s38, %s41
      %p47 = scmp.eq.s32.totalorder %s14, 0
      %p48 = por %p46, %p47
      %p49 = scmp.ne.s32.totalorder %s38, %s41
      %p50 = scmp.eq.s32.totalorder %s19, 1
      %p51 = por %p49, %p50
      %p52 = scmp.ne.s32.totalorder %s41, %s42
      %p53 = scmp.eq.s32.totalorder %s19, 0
      %p54 = por %p52, %p53
      %p55 = scmp.ne.s32.totalorder %s41, %s42
      %p56 = scmp.eq.s32.totalorder %s20, 1
      %p57 = por %p55, %p56
      %p59 = scmp.ne.s32.totalorder %s42, %s58
      %p60 = scmp.eq.s32.totalorder %s20, 0
      %p61 = por %p59, %p60
      %s63 = sadd.s32 %s62, 1
      %p66 = scmp.eq.s32.totalorder %s14, 1
      %p67 = scmp.ne.s32.totalorder %s62, %s64
      %p68 = scmp.eq.s32.totalorder %s14, 0
      %p69 = por %p67, %p68
      %p70 = scmp.ne.s32.totalorder %s62, %s64
      %p71 = scmp.eq.s32.totalorder %s19, 1
      %p72 = por %p70, %p71
      %p73 = scmp.ne.s32.totalorder %s64, %s65
      %p74 = scmp.eq.s32.totalorder %s19, 0
      %p75 = por %p73, %p74
      %p76 = scmp.ne.s32.totalorder %s64, %s65
      %p77 = scmp.eq.s32.totalorder %s20, 1
      %p78 = por %p76, %p77
      %p80 = scmp.ne.s32.totalorder %s65, %s79
      %p81 = scmp.eq.s32.totalorder %s20, 0
      %p82 = por %p80, %p81
      %s84 = sadd.s32 %s83, 1
      %p87 = scmp.eq.s32.totalorder %s14, 1
      %p88 = scmp.ne.s32.totalorder %s83, %s85
      %p89 = scmp.eq.s32.totalorder %s14, 0
      %p90 = por %p88, %p89
      %p91 = scmp.ne.s32.totalorder %s83, %s85
      %p92 = scmp.eq.s32.totalorder %s19, 1
      %p93 = por %p91, %p92
      %p94 = scmp.ne.s32.totalorder %s85, %s86
      %p95 = scmp.eq.s32.totalorder %s19, 0
      %p96 = por %p94, %p95
      %p97 = scmp.ne.s32.totalorder %s85, %s86
      %p98 = scmp.eq.s32.totalorder %s20, 1
      %p99 = por %p97, %p98
      %p101 = scmp.ne.s32.totalorder %s86, %s100
      %p102 = scmp.eq.s32.totalorder %s20, 0
      %p103 = por %p101, %p102
      %s105 = sadd.s32 %s104, 1
      %p108 = scmp.eq.s32.totalorder %s14, 1
      %p109 = scmp.ne.s32.totalorder %s104, %s106
      %p110 = scmp.eq.s32.totalorder %s14, 0
      %p111 = por %p109, %p110
      %p112 = scmp.ne.s32.totalorder %s104, %s106
      %p113 = scmp.eq.s32.totalorder %s19, 1
      %p114 = por %p112, %p113
      %p115 = scmp.ne.s32.totalorder %s106, %s107
      %p116 = scmp.eq.s32.totalorder %s19, 0
      %p117 = por %p115, %p116
      %p118 = scmp.ne.s32.totalorder %s106, %s107
      %p119 = scmp.eq.s32.totalorder %s20, 1
      %p120 = por %p118, %p119
      %p122 = scmp.ne.s32.totalorder %s107, %s121
      %p123 = scmp.eq.s32.totalorder %s20, 0
      %p124 = por %p122, %p123
      %s126 = sadd.s32 %s125, 1
      %p129 = scmp.eq.s32.totalorder %s14, 1
      %p130 = scmp.ne.s32.totalorder %s125, %s127
      %p131 = scmp.eq.s32.totalorder %s14, 0
      %p132 = por %p130, %p131
      %p133 = scmp.ne.s32.totalorder %s125, %s127
      %p134 = scmp.eq.s32.totalorder %s19, 1
      %p135 = por %p133, %p134
      %p136 = scmp.ne.s32.totalorder %s127, %s128
      %p137 = scmp.eq.s32.totalorder %s19, 0
      %p138 = por %p136, %p137
      %p139 = scmp.ne.s32.totalorder %s127, %s128
      %p140 = scmp.eq.s32.totalorder %s20, 1
      %p141 = por %p139, %p140
      %p143 = scmp.ne.s32.totalorder %s128, %s142
      %p144 = scmp.eq.s32.totalorder %s20, 0
      %p145 = por %p143, %p144
      %s146 = ssub.s32 %s21, %s33
      %s147 = ssub.s32 %s22, %s29
      %s148 = sor.u32 %s146, %s147
      %p149 = scmp.eq.s32.totalorder %s148, 0
      %s151 = sadd.s32 %s150, 1
      %s152 = scalar_select %p149, %s150, %s151
      %p155 = pneg %p149
      %p156 = scmp.eq.s32.totalorder %s14, 1
      %p157 = por %p155, %p156
      %p158 = scmp.ne.s32.totalorder %s150, %s153
      %p159 = scmp.eq.s32.totalorder %s14, 0
      %p160 = por %p158, %p159
      %p161 = scmp.ne.s32.totalorder %s150, %s153
      %p162 = scmp.eq.s32.totalorder %s19, 1
      %p163 = por %p161, %p162
      %p164 = scmp.ne.s32.totalorder %s153, %s154
      %p165 = scmp.eq.s32.totalorder %s19, 0
      %p166 = por %p164, %p165
      %p167 = scmp.ne.s32.totalorder %s153, %s154
      %p168 = scmp.eq.s32.totalorder %s20, 1
      %p169 = por %p167, %p168
      %p171 = scmp.ne.s32.totalorder %s154, %s170
      %p172 = scmp.eq.s32.totalorder %s20, 0
      %p173 = por %p171, %p172
      %p174 = scmp.le.s32.totalorder 1, %s14
      %p175 = scmp.lt.s32.totalorder %s14, 3
      %p176 = pnand %p174, %p175
      %p177 = pneg %p176
      // Predicated region
      $region9: #{tpu_custom_call.1} parent=5 // pred_check
        _
      $region10: #{tpu_custom_call.1} parent=5 // pred_check_branch
        %179 = sbr.rel (%p176) target = $region12
      $region11: #{tpu_custom_call.1} parent=5 // pred_region
        %s180 = ssub.s32 %s14, 1
        // Predicated region
        $region13: #{tpu_custom_call.1} parent=11 // pred_check
          %p181 = pneg %p75
        $region14: #{tpu_custom_call.1} parent=11 // pred_check_branch
          %183 = sbr.rel (%p181) target = $region16
        $region15: #{tpu_custom_call.1} parent=11 // pred_region
          _
        $region16: #{tpu_custom_call.1} parent=11 // pred_fallthru
          _
        // Predicated region
        $region17: #{tpu_custom_call.1} parent=11 // pred_check
          %p184 = pneg %p96
        $region18: #{tpu_custom_call.1} parent=11 // pred_check_branch
          %186 = sbr.rel (%p184) target = $region20
        $region19: #{tpu_custom_call.1} parent=11 // pred_region
          _
        $region20: #{tpu_custom_call.1} parent=11 // pred_fallthru
          _
        // Predicated region
        $region21: #{tpu_custom_call.1} parent=11 // pred_check
          %p187 = pneg %p117
        $region22: #{tpu_custom_call.1} parent=11 // pred_check_branch
          %189 = sbr.rel (%p187) target = $region24
        $region23: #{tpu_custom_call.1} parent=11 // pred_region
          _
        $region24: #{tpu_custom_call.1} parent=11 // pred_fallthru
          _
        // Predicated region
        $region25: #{tpu_custom_call.1} parent=11 // pred_check
          %p190 = pneg %p138
        $region26: #{tpu_custom_call.1} parent=11 // pred_check_branch
          %192 = sbr.rel (%p190) target = $region28
        $region27: #{tpu_custom_call.1} parent=11 // pred_region
          _
        $region28: #{tpu_custom_call.1} parent=11 // pred_fallthru
          _
      $region12: #{tpu_custom_call.1} parent=5 // pred_fallthru
        _
      %p193 = scmp.lt.s32.totalorder %s14, 2
      // Predicated region
      $region29: #{tpu_custom_call.1} parent=5 // pred_check
        %p194 = pneg %p193
      $region30: #{tpu_custom_call.1} parent=5 // pred_check_branch
        %196 = sbr.rel (%p194) target = $region32
      $region31: #{tpu_custom_call.1} parent=5 // pred_region
        // Predicated region
        $region33: #{tpu_custom_call.1} parent=31 // pred_check
          %p197 = pneg %p48
        $region34: #{tpu_custom_call.1} parent=31 // pred_check_branch
          %199 = sbr.rel (%p197) target = $region36
        $region35: #{tpu_custom_call.1} parent=31 // pred_region
          %p200 = scmp.lt.s32.totalorder %s21, 1
          %s201 = scalar_select %p200, %s21, 1
          %p202 = scmp.lt.s32.totalorder %s22, 0
          %s203 = scalar_select %p202, %s22, 0
          %s204 = smul.addr %s203, 54
          %s205 = smul.addr %s201, 54
          %s206 = sadd.s32 %s204, %s205
          %s207 = smul.addr %s206, 4
          %s208 = scalar_lea.vmem %s0, %s207
        $region36: #{tpu_custom_call.1} parent=31 // pred_fallthru
          _
      $region32: #{tpu_custom_call.1} parent=5 // pred_fallthru
        _
      %p209 = scmp.le.s32.totalorder 1, %s14
      %p210 = scmp.lt.s32.totalorder %s14, 3
      %p211 = pnand %p209, %p210
      %p212 = pneg %p211
      // Predicated region
      $region37: #{tpu_custom_call.1} parent=5 // pred_check
        _
      $region38: #{tpu_custom_call.1} parent=5 // pred_check_branch
        %214 = sbr.rel (%p211) target = $region40
      $region39: #{tpu_custom_call.1} parent=5 // pred_region
        %s215 = ssub.s32 %s14, 1
        %p216 = scmp.lt.s32.totalorder %s23, 1
        %s217 = scalar_select %p216, %s23, 1
        %p218 = scmp.lt.s32.totalorder %s24, 0
        %s219 = scalar_select %p218, %s24, 0
        %s220 = smul.addr %s219, 54
        %s221 = smul.addr %s217, 54
        %s222 = sadd.s32 %s220, %s221
        %s223 = smul.addr %s222, 4
        %s224 = scalar_lea.vmem %s0, %s223
        %p225 = pneg %p54
        %p226 = pneg %p51
        %p227 = pneg %p75
        %p228 = pneg %p72
        %p229 = pneg %p96
        %p230 = pneg %p93
        %p231 = pneg %p117
        %p232 = pneg %p114
        %p233 = pneg %p138
        %p234 = pneg %p135
        %p235 = pneg %p166
        %p236 = pneg %p163
        %s237 = sand.u32 %s153, 1
        %s238 = scalar_lea.sflag [#allocation4], %s237
        %s239 = sand.u32 %s153, 1
        %s240 = smul.addr %s239, 768
        %s241 = scalar_lea.vmem [#allocation3], %s240
        %p242 = scmp.lt.s32.totalorder %s23, 1
        %s243 = scalar_select %p242, %s23, 1
        %p244 = scmp.lt.s32.totalorder %s24, 0
        %s245 = scalar_select %p244, %s24, 0
        %s246 = smul.addr %s245, 54
        %s247 = smul.addr %s243, 54
        %s248 = sadd.s32 %s246, %s247
        %s249 = smul.addr %s248, 4
        %s250 = scalar_lea.vmem %s0, %s249
        %s251 = smul.u32 16, %s24
        %v253 = vld [vmem:[%s250] sm:$0xf]
        %v254 = vld [vmem:[%s250 + $0x4] sm:$0xf]
        %v255 = vld [vmem:[%s250 + $0xc] sm:$0xf]
        %v256 = vld [vmem:[%s250 + $0x10] sm:$0xf]
        %v257 = vld [vmem:[%s250 + $0x18] sm:$0xf]
        %v258 = vld [vmem:[%s250 + $0x1c] sm:$0xf]
        %v259 = vld [vmem:[%s250 + $0x24] sm:$0xf]
        %v260 = vld [vmem:[%s250 + $0x28] sm:$0xf]
        %v261 = vld [vmem:[%s250 + $0x30] sm:$0xf]
        %v262 = vld [vmem:[%s250 + $0x34] sm:$0xf]
        %v263 = vld [vmem:[%s250 + $0x3c] sm:$0xf]
        %v264 = vld [vmem:[%s250 + $0x40] sm:$0xf]
        %v265 = vld [vmem:[%s250 + $0x48] sm:$0xf]
        %v266 = vld [vmem:[%s250 + $0x4c] sm:$0xf]
        %v267 = vld [vmem:[%s250 + $0x54] sm:$0xf]
        %v268 = vld [vmem:[%s250 + $0x58] sm:$0xf]
        %v269 = vld [vmem:[%s250 + $0x60] sm:$0xf]
        %v270 = vld [vmem:[%s250 + $0x64] sm:$0xf]
        %v271 = vld [vmem:[%s250 + $0x6c] sm:$0xf]
        %v272 = vld [vmem:[%s250 + $0x70] sm:$0xf]
        %v273 = vld [vmem:[%s250 + $0x78] sm:$0xf]
        %v274 = vld [vmem:[%s250 + $0x7c] sm:$0xf]
        %v275 = vld [vmem:[%s250 + $0x84] sm:$0xf]
        %v276 = vld [vmem:[%s250 + $0x88] sm:$0xf]
        %v277 = vld [vmem:[%s250 + $0x90] sm:$0xf]
        %v278 = vld [vmem:[%s250 + $0x94] sm:$0xf]
        %v279 = vld [vmem:[%s250 + $0x9c] sm:$0xf]
        %v280 = vld [vmem:[%s250 + $0xa0] sm:$0xf]
        %v281 = vld [vmem:[%s250 + $0xa8] sm:$0xf]
        %v282 = vld [vmem:[%s250 + $0xac] sm:$0xf]
        %v283 = vld [vmem:[%s250 + $0xb4] sm:$0xf]
        %v284 = vld [vmem:[%s250 + $0xb8] sm:$0xf]
        %vm285 = vcmask 27648
        %286 = vst.msk [vmem:[#allocation2] sm:$0xf] %vm285, %v253
        %287 = vst.msk [vmem:[#allocation2 + $0x4] sm:$0xf] %vm285, %v254
        %288 = vst.msk [vmem:[#allocation2 + $0x8] sm:$0xf] %vm285, %v255
        %289 = vst.msk [vmem:[#allocation2 + $0xc] sm:$0xf] %vm285, %v256
        %290 = vst.msk [vmem:[#allocation2 + $0x10] sm:$0xf] %vm285, %v257
        %291 = vst.msk [vmem:[#allocation2 + $0x14] sm:$0xf] %vm285, %v258
        %292 = vst.msk [vmem:[#allocation2 + $0x18] sm:$0xf] %vm285, %v259
        %293 = vst.msk [vmem:[#allocation2 + $0x1c] sm:$0xf] %vm285, %v260
        %294 = vst.msk [vmem:[#allocation2 + $0x20] sm:$0xf] %vm285, %v261
        %295 = vst.msk [vmem:[#allocation2 + $0x24] sm:$0xf] %vm285, %v262
        %296 = vst.msk [vmem:[#allocation2 + $0x28] sm:$0xf] %vm285, %v263
        %297 = vst.msk [vmem:[#allocation2 + $0x2c] sm:$0xf] %vm285, %v264
        %298 = vst.msk [vmem:[#allocation2 + $0x30] sm:$0xf] %vm285, %v265
        %299 = vst.msk [vmem:[#allocation2 + $0x34] sm:$0xf] %vm285, %v266
        %300 = vst.msk [vmem:[#allocation2 + $0x38] sm:$0xf] %vm285, %v267
        %301 = vst.msk [vmem:[#allocation2 + $0x3c] sm:$0xf] %vm285, %v268
        %302 = vst.msk [vmem:[#allocation2 + $0x40] sm:$0xf] %vm285, %v269
        %303 = vst.msk [vmem:[#allocation2 + $0x44] sm:$0xf] %vm285, %v270
        %304 = vst.msk [vmem:[#allocation2 + $0x48] sm:$0xf] %vm285, %v271
        %305 = vst.msk [vmem:[#allocation2 + $0x4c] sm:$0xf] %vm285, %v272
        %306 = vst.msk [vmem:[#allocation2 + $0x50] sm:$0xf] %vm285, %v273
        %307 = vst.msk [vmem:[#allocation2 + $0x54] sm:$0xf] %vm285, %v274
        %308 = vst.msk [vmem:[#allocation2 + $0x58] sm:$0xf] %vm285, %v275
        %309 = vst.msk [vmem:[#allocation2 + $0x5c] sm:$0xf] %vm285, %v276
        %310 = vst.msk [vmem:[#allocation2 + $0x60] sm:$0xf] %vm285, %v277
        %311 = vst.msk [vmem:[#allocation2 + $0x64] sm:$0xf] %vm285, %v278
        %312 = vst.msk [vmem:[#allocation2 + $0x68] sm:$0xf] %vm285, %v279
        %313 = vst.msk [vmem:[#allocation2 + $0x6c] sm:$0xf] %vm285, %v280
        %314 = vst.msk [vmem:[#allocation2 + $0x70] sm:$0xf] %vm285, %v281
        %315 = vst.msk [vmem:[#allocation2 + $0x74] sm:$0xf] %vm285, %v282
        %316 = vst.msk [vmem:[#allocation2 + $0x78] sm:$0xf] %vm285, %v283
        %317 = vst.msk [vmem:[#allocation2 + $0x7c] sm:$0xf] %vm285, %v284
        %v318 = vld [vmem:[%s250] sm:$0xf]
        %v319 = vld [vmem:[%s250 + $0x4] sm:$0xf]
        %v320 = vld [vmem:[%s250 + $0x8] sm:$0x1]
        %v321 = vld [vmem:[%s250 + $0xc] sm:$0xf]
        %v322 = vld [vmem:[%s250 + $0x10] sm:$0xf]
        %v323 = vld [vmem:[%s250 + $0x14] sm:$0x1]
        %v324 = vld [vmem:[%s250 + $0x18] sm:$0xf]
        %v325 = vld [vmem:[%s250 + $0x1c] sm:$0xf]
        %v326 = vld [vmem:[%s250 + $0x20] sm:$0x1]
        %v327 = vld [vmem:[%s250 + $0x24] sm:$0xf]
        %v328 = vld [vmem:[%s250 + $0x28] sm:$0xf]
        %v329 = vld [vmem:[%s250 + $0x2c] sm:$0x1]
        %v330 = vld [vmem:[%s250 + $0x30] sm:$0xf]
        %v331 = vld [vmem:[%s250 + $0x34] sm:$0xf]
        %v332 = vld [vmem:[%s250 + $0x38] sm:$0x1]
        %v333 = vld [vmem:[%s250 + $0x3c] sm:$0xf]
        %v334 = vld [vmem:[%s250 + $0x40] sm:$0xf]
        %v335 = vld [vmem:[%s250 + $0x44] sm:$0x1]
        %v336 = vld [vmem:[%s250 + $0x48] sm:$0xf]
        %v337 = vld [vmem:[%s250 + $0x4c] sm:$0xf]
        %v338 = vld [vmem:[%s250 + $0x50] sm:$0x1]
        %v339 = vld [vmem:[%s250 + $0x54] sm:$0xf]
        %v340 = vld [vmem:[%s250 + $0x58] sm:$0xf]
        %v341 = vld [vmem:[%s250 + $0x5c] sm:$0x1]
        %v342 = vld [vmem:[%s250 + $0x60] sm:$0xf]
        %v343 = vld [vmem:[%s250 + $0x64] sm:$0xf]
        %v344 = vld [vmem:[%s250 + $0x68] sm:$0x1]
        %v345 = vld [vmem:[%s250 + $0x6c] sm:$0xf]
        %v346 = vld [vmem:[%s250 + $0x70] sm:$0xf]
        %v347 = vld [vmem:[%s250 + $0x74] sm:$0x1]
        %v348 = vld [vmem:[%s250 + $0x78] sm:$0xf]
        %v349 = vld [vmem:[%s250 + $0x7c] sm:$0xf]
        %v350 = vld [vmem:[%s250 + $0x80] sm:$0x1]
        %v351 = vld [vmem:[%s250 + $0x84] sm:$0xf]
        %v352 = vld [vmem:[%s250 + $0x88] sm:$0xf]
        %v353 = vld [vmem:[%s250 + $0x8c] sm:$0x1]
        %v354 = vld [vmem:[%s250 + $0x90] sm:$0xf]
        %v355 = vld [vmem:[%s250 + $0x94] sm:$0xf]
        %v356 = vld [vmem:[%s250 + $0x98] sm:$0x1]
        %v357 = vld [vmem:[%s250 + $0x9c] sm:$0xf]
        %v358 = vld [vmem:[%s250 + $0xa0] sm:$0xf]
        %v359 = vld [vmem:[%s250 + $0xa4] sm:$0x1]
        %v360 = vld [vmem:[%s250 + $0xa8] sm:$0xf]
        %v361 = vld [vmem:[%s250 + $0xac] sm:$0xf]
        %v362 = vld [vmem:[%s250 + $0xb0] sm:$0x1]
        %v363 = vld [vmem:[%s250 + $0xb4] sm:$0xf]
        %v364 = vld [vmem:[%s250 + $0xb8] sm:$0xf]
        %v365 = vld [vmem:[%s250 + $0xbc] sm:$0x1]
        %vm366 = vsmask.f32 3328
        %vm367 = vsmask.f32 7440
        %vm368 = vmor %vm366, %vm367
        %v370 = vshrl.u32 %v318, 16
        %v372 = vrot.slane %v370, 4
        %v373 = vshll.u32 %v318, 16
        %v375 = vrot.slane %v373, 5
        %v376 = vor.u32 %v372, %v375
        %v377 = vrot.slane %v376, 4
        %v379 = vshll.u32 %v319, 16
        %v381 = vrot.slane %v379, 5
        %v382 = vsel %vm368, %v377, %v381
        %v383 = vshrl.u32 %v319, 16
        %v385 = vrot.slane %v383, 4
        %v386 = vor.u32 %v385, %v381
        %v387 = vrot.slane %v386, 4
        %v389 = vshll.u32 %v320, 16
        %v391 = vrot.slane %v389, 5
        %v392 = vsel %vm368, %v387, %v391
        %v394 = vshrl.u32 %v321, 16
        %v396 = vrot.slane %v394, 4
        %v397 = vshll.u32 %v321, 16
        %v399 = vrot.slane %v397, 5
        %v400 = vor.u32 %v396, %v399
        %v401 = vrot.slane %v400, 4
        %v403 = vshll.u32 %v322, 16
        %v405 = vrot.slane %v403, 5
        %v406 = vsel %vm368, %v401, %v405
        %v407 = vshrl.u32 %v322, 16
        %v409 = vrot.slane %v407, 4
        %v410 = vor.u32 %v409, %v405
        %v411 = vrot.slane %v410, 4
        %v413 = vshll.u32 %v323, 16
        %v415 = vrot.slane %v413, 5
        %v416 = vsel %vm368, %v411, %v415
        %v418 = vshrl.u32 %v324, 16
        %v420 = vrot.slane %v418, 4
        %v421 = vshll.u32 %v324, 16
        %v423 = vrot.slane %v421, 5
        %v424 = vor.u32 %v420, %v423
        %v425 = vrot.slane %v424, 4
        %v427 = vshll.u32 %v325, 16
        %v429 = vrot.slane %v427, 5
        %v430 = vsel %vm368, %v425, %v429
        %v431 = vshrl.u32 %v325, 16
        %v433 = vrot.slane %v431, 4
        %v434 = vor.u32 %v433, %v429
        %v435 = vrot.slane %v434, 4
        %v437 = vshll.u32 %v326, 16
        %v439 = vrot.slane %v437, 5
        %v440 = vsel %vm368, %v435, %v439
        %v442 = vshrl.u32 %v327, 16
        %v444 = vrot.slane %v442, 4
        %v445 = vshll.u32 %v327, 16
        %v447 = vrot.slane %v445, 5
        %v448 = vor.u32 %v444, %v447
        %v449 = vrot.slane %v448, 4
        %v451 = vshll.u32 %v328, 16
        %v453 = vrot.slane %v451, 5
        %v454 = vsel %vm368, %v449, %v453
        %v455 = vshrl.u32 %v328, 16
        %v457 = vrot.slane %v455, 4
        %v458 = vor.u32 %v457, %v453
        %v459 = vrot.slane %v458, 4
        %v461 = vshll.u32 %v329, 16
        %v463 = vrot.slane %v461, 5
        %v464 = vsel %vm368, %v459, %v463
        %v466 = vshrl.u32 %v330, 16
        %v468 = vrot.slane %v466, 4
        %v469 = vshll.u32 %v330, 16
        %v471 = vrot.slane %v469, 5
        %v472 = vor.u32 %v468, %v471
        %v473 = vrot.slane %v472, 4
        %v475 = vshll.u32 %v331, 16
        %v477 = vrot.slane %v475, 5
        %v478 = vsel %vm368, %v473, %v477
        %v479 = vshrl.u32 %v331, 16
        %v481 = vrot.slane %v479, 4
        %v482 = vor.u32 %v481, %v477
        %v483 = vrot.slane %v482, 4
        %v485 = vshll.u32 %v332, 16
        %v487 = vrot.slane %v485, 5
        %v488 = vsel %vm368, %v483, %v487
        %v490 = vshrl.u32 %v333, 16
        %v492 = vrot.slane %v490, 4
        %v493 = vshll.u32 %v333, 16
        %v495 = vrot.slane %v493, 5
        %v496 = vor.u32 %v492, %v495
        %v497 = vrot.slane %v496, 4
        %v499 = vshll.u32 %v334, 16
        %v501 = vrot.slane %v499, 5
        %v502 = vsel %vm368, %v497, %v501
        %v503 = vshrl.u32 %v334, 16
        %v505 = vrot.slane %v503, 4
        %v506 = vor.u32 %v505, %v501
        %v507 = vrot.slane %v506, 4
        %v509 = vshll.u32 %v335, 16
        %v511 = vrot.slane %v509, 5
        %v512 = vsel %vm368, %v507, %v511
        %v514 = vshrl.u32 %v336, 16
        %v516 = vrot.slane %v514, 4
        %v517 = vshll.u32 %v336, 16
        %v519 = vrot.slane %v517, 5
        %v520 = vor.u32 %v516, %v519
        %v521 = vrot.slane %v520, 4
        %v523 = vshll.u32 %v337, 16
        %v525 = vrot.slane %v523, 5
        %v526 = vsel %vm368, %v521, %v525
        %v527 = vshrl.u32 %v337, 16
        %v529 = vrot.slane %v527, 4
        %v530 = vor.u32 %v529, %v525
        %v531 = vrot.slane %v530, 4
        %v533 = vshll.u32 %v338, 16
        %v535 = vrot.slane %v533, 5
        %v536 = vsel %vm368, %v531, %v535
        %v538 = vshrl.u32 %v339, 16
        %v540 = vrot.slane %v538, 4
        %v541 = vshll.u32 %v339, 16
        %v543 = vrot.slane %v541, 5
        %v544 = vor.u32 %v540, %v543
        %v545 = vrot.slane %v544, 4
        %v547 = vshll.u32 %v340, 16
        %v549 = vrot.slane %v547, 5
        %v550 = vsel %vm368, %v545, %v549
        %v551 = vshrl.u32 %v340, 16
        %v553 = vrot.slane %v551, 4
        %v554 = vor.u32 %v553, %v549
        %v555 = vrot.slane %v554, 4
        %v557 = vshll.u32 %v341, 16
        %v559 = vrot.slane %v557, 5
        %v560 = vsel %vm368, %v555, %v559
        %v562 = vshrl.u32 %v342, 16
        %v564 = vrot.slane %v562, 4
        %v565 = vshll.u32 %v342, 16
        %v567 = vrot.slane %v565, 5
        %v568 = vor.u32 %v564, %v567
        %v569 = vrot.slane %v568, 4
        %v571 = vshll.u32 %v343, 16
        %v573 = vrot.slane %v571, 5
        %v574 = vsel %vm368, %v569, %v573
        %v575 = vshrl.u32 %v343, 16
        %v577 = vrot.slane %v575, 4
        %v578 = vor.u32 %v577, %v573
        %v579 = vrot.slane %v578, 4
        %v581 = vshll.u32 %v344, 16
        %v583 = vrot.slane %v581, 5
        %v584 = vsel %vm368, %v579, %v583
        %v586 = vshrl.u32 %v345, 16
        %v588 = vrot.slane %v586, 4
        %v589 = vshll.u32 %v345, 16
        %v591 = vrot.slane %v589, 5
        %v592 = vor.u32 %v588, %v591
        %v593 = vrot.slane %v592, 4
        %v595 = vshll.u32 %v346, 16
        %v597 = vrot.slane %v595, 5
        %v598 = vsel %vm368, %v593, %v597
        %v599 = vshrl.u32 %v346, 16
        %v601 = vrot.slane %v599, 4
        %v602 = vor.u32 %v601, %v597
        %v603 = vrot.slane %v602, 4
        %v605 = vshll.u32 %v347, 16
        %v607 = vrot.slane %v605, 5
        %v608 = vsel %vm368, %v603, %v607
        %v610 = vshrl.u32 %v348, 16
        %v612 = vrot.slane %v610, 4
        %v613 = vshll.u32 %v348, 16
        %v615 = vrot.slane %v613, 5
        %v616 = vor.u32 %v612, %v615
        %v617 = vrot.slane %v616, 4
        %v619 = vshll.u32 %v349, 16
        %v621 = vrot.slane %v619, 5
        %v622 = vsel %vm368, %v617, %v621
        %v623 = vshrl.u32 %v349, 16
        %v625 = vrot.slane %v623, 4
        %v626 = vor.u32 %v625, %v621
        %v627 = vrot.slane %v626, 4
        %v629 = vshll.u32 %v350, 16
        %v631 = vrot.slane %v629, 5
        %v632 = vsel %vm368, %v627, %v631
        %v634 = vshrl.u32 %v351, 16
        %v636 = vrot.slane %v634, 4
        %v637 = vshll.u32 %v351, 16
        %v639 = vrot.slane %v637, 5
        %v640 = vor.u32 %v636, %v639
        %v641 = vrot.slane %v640, 4
        %v643 = vshll.u32 %v352, 16
        %v645 = vrot.slane %v643, 5
        %v646 = vsel %vm368, %v641, %v645
        %v647 = vshrl.u32 %v352, 16
        %v649 = vrot.slane %v647, 4
        %v650 = vor.u32 %v649, %v645
        %v651 = vrot.slane %v650, 4
        %v653 = vshll.u32 %v353, 16
        %v655 = vrot.slane %v653, 5
        %v656 = vsel %vm368, %v651, %v655
        %v658 = vshrl.u32 %v354, 16
        %v660 = vrot.slane %v658, 4
        %v661 = vshll.u32 %v354, 16
        %v663 = vrot.slane %v661, 5
        %v664 = vor.u32 %v660, %v663
        %v665 = vrot.slane %v664, 4
        %v667 = vshll.u32 %v355, 16
        %v669 = vrot.slane %v667, 5
        %v670 = vsel %vm368, %v665, %v669
        %v671 = vshrl.u32 %v355, 16
        %v673 = vrot.slane %v671, 4
        %v674 = vor.u32 %v673, %v669
        %v675 = vrot.slane %v674, 4
        %v677 = vshll.u32 %v356, 16
        %v679 = vrot.slane %v677, 5
        %v680 = vsel %vm368, %v675, %v679
        %v682 = vshrl.u32 %v357, 16
        %v684 = vrot.slane %v682, 4
        %v685 = vshll.u32 %v357, 16
        %v687 = vrot.slane %v685, 5
        %v688 = vor.u32 %v684, %v687
        %v689 = vrot.slane %v688, 4
        %v691 = vshll.u32 %v358, 16
        %v693 = vrot.slane %v691, 5
        %v694 = vsel %vm368, %v689, %v693
        %v695 = vshrl.u32 %v358, 16
        %v697 = vrot.slane %v695, 4
        %v698 = vor.u32 %v697, %v693
        %v699 = vrot.slane %v698, 4
        %v701 = vshll.u32 %v359, 16
        %v703 = vrot.slane %v701, 5
        %v704 = vsel %vm368, %v699, %v703
        %v706 = vshrl.u32 %v360, 16
        %v708 = vrot.slane %v706, 4
        %v709 = vshll.u32 %v360, 16
        %v711 = vrot.slane %v709, 5
        %v712 = vor.u32 %v708, %v711
        %v713 = vrot.slane %v712, 4
        %v715 = vshll.u32 %v361, 16
        %v717 = vrot.slane %v715, 5
        %v718 = vsel %vm368, %v713, %v717
        %v719 = vshrl.u32 %v361, 16
        %v721 = vrot.slane %v719, 4
        %v722 = vor.u32 %v721, %v717
        %v723 = vrot.slane %v722, 4
        %v725 = vshll.u32 %v362, 16
        %v727 = vrot.slane %v725, 5
        %v728 = vsel %vm368, %v723, %v727
        %v730 = vshrl.u32 %v363, 16
        %v732 = vrot.slane %v730, 4
        %v733 = vshll.u32 %v363, 16
        %v735 = vrot.slane %v733, 5
        %v736 = vor.u32 %v732, %v735
        %v737 = vrot.slane %v736, 4
        %v739 = vshll.u32 %v364, 16
        %v741 = vrot.slane %v739, 5
        %v742 = vsel %vm368, %v737, %v741
        %v743 = vshrl.u32 %v364, 16
        %v745 = vrot.slane %v743, 4
        %v746 = vor.u32 %v745, %v741
        %v747 = vrot.slane %v746, 4
        %v749 = vshll.u32 %v365, 16
        %v751 = vrot.slane %v749, 5
        %v752 = vsel %vm368, %v747, %v751
        %753 = vrot.lane.b32.xlu0 %v382, 4
        %v754 = vpop.permute.xlu0 %753
        %755 = vrot.lane.b32.xlu0 %v392, 4
        %v756 = vpop.permute.xlu0 %755
        %757 = vrot.lane.b32.xlu0 %v406, 4
        %v758 = vpop.permute.xlu0 %757
        %759 = vrot.lane.b32.xlu0 %v416, 4
        %v760 = vpop.permute.xlu0 %759
        %761 = vrot.lane.b32.xlu0 %v430, 4
        %v762 = vpop.permute.xlu0 %761
        %763 = vrot.lane.b32.xlu0 %v440, 4
        %v764 = vpop.permute.xlu0 %763
        %765 = vrot.lane.b32.xlu0 %v454, 4
        %v766 = vpop.permute.xlu0 %765
        %767 = vrot.lane.b32.xlu0 %v464, 4
        %v768 = vpop.permute.xlu0 %767
        %769 = vrot.lane.b32.xlu0 %v478, 4
        %v770 = vpop.permute.xlu0 %769
        %771 = vrot.lane.b32.xlu0 %v488, 4
        %v772 = vpop.permute.xlu0 %771
        %773 = vrot.lane.b32.xlu0 %v502, 4
        %v774 = vpop.permute.xlu0 %773
        %775 = vrot.lane.b32.xlu0 %v512, 4
        %v776 = vpop.permute.xlu0 %775
        %777 = vrot.lane.b32.xlu0 %v526, 4
        %v778 = vpop.permute.xlu0 %777
        %779 = vrot.lane.b32.xlu0 %v536, 4
        %v780 = vpop.permute.xlu0 %779
        %781 = vrot.lane.b32.xlu0 %v550, 4
        %v782 = vpop.permute.xlu0 %781
        %783 = vrot.lane.b32.xlu0 %v560, 4
        %v784 = vpop.permute.xlu0 %783
        %785 = vrot.lane.b32.xlu0 %v574, 4
        %v786 = vpop.permute.xlu0 %785
        %787 = vrot.lane.b32.xlu0 %v584, 4
        %v788 = vpop.permute.xlu0 %787
        %789 = vrot.lane.b32.xlu0 %v598, 4
        %v790 = vpop.permute.xlu0 %789
        %791 = vrot.lane.b32.xlu0 %v608, 4
        %v792 = vpop.permute.xlu0 %791
        %793 = vrot.lane.b32.xlu0 %v622, 4
        %v794 = vpop.permute.xlu0 %793
        %795 = vrot.lane.b32.xlu0 %v632, 4
        %v796 = vpop.permute.xlu0 %795
        %797 = vrot.lane.b32.xlu0 %v646, 4
        %v798 = vpop.permute.xlu0 %797
        %799 = vrot.lane.b32.xlu0 %v656, 4
        %v800 = vpop.permute.xlu0 %799
        %801 = vrot.lane.b32.xlu0 %v670, 4
        %v802 = vpop.permute.xlu0 %801
        %803 = vrot.lane.b32.xlu0 %v680, 4
        %v804 = vpop.permute.xlu0 %803
        %805 = vrot.lane.b32.xlu0 %v694, 4
        %v806 = vpop.permute.xlu0 %805
        %807 = vrot.lane.b32.xlu0 %v704, 4
        %v808 = vpop.permute.xlu0 %807
        %809 = vrot.lane.b32.xlu0 %v718, 4
        %v810 = vpop.permute.xlu0 %809
        %811 = vrot.lane.b32.xlu0 %v728, 4
        %v812 = vpop.permute.xlu0 %811
        %813 = vrot.lane.b32.xlu0 %v742, 4
        %v814 = vpop.permute.xlu0 %813
        %815 = vrot.lane.b32.xlu0 %v752, 4
        %v816 = vpop.permute.xlu0 %815
        %vm849 = vcmask 60448
        %850 = vst.msk [vmem:[#allocation2] sm:$0xf] %vm849, %v754
        %851 = vst.msk [vmem:[#allocation2 + $0x4] sm:$0xf] %vm849, %v756
        %852 = vst.msk [vmem:[#allocation2 + $0x8] sm:$0xf] %vm849, %v758
        %853 = vst.msk [vmem:[#allocation2 + $0xc] sm:$0xf] %vm849, %v760
        %854 = vst.msk [vmem:[#allocation2 + $0x10] sm:$0xf] %vm849, %v762
        %855 = vst.msk [vmem:[#allocation2 + $0x14] sm:$0xf] %vm849, %v764
        %856 = vst.msk [vmem:[#allocation2 + $0x18] sm:$0xf] %vm849, %v766
        %857 = vst.msk [vmem:[#allocation2 + $0x1c] sm:$0xf] %vm849, %v768
        %858 = vst.msk [vmem:[#allocation2 + $0x20] sm:$0xf] %vm849, %v770
        %859 = vst.msk [vmem:[#allocation2 + $0x24] sm:$0xf] %vm849, %v772
        %860 = vst.msk [vmem:[#allocation2 + $0x28] sm:$0xf] %vm849, %v774
        %861 = vst.msk [vmem:[#allocation2 + $0x2c] sm:$0xf] %vm849, %v776
        %862 = vst.msk [vmem:[#allocation2 + $0x30] sm:$0xf] %vm849, %v778
        %863 = vst.msk [vmem:[#allocation2 + $0x34] sm:$0xf] %vm849, %v780
        %864 = vst.msk [vmem:[#allocation2 + $0x38] sm:$0xf] %vm849, %v782
        %865 = vst.msk [vmem:[#allocation2 + $0x3c] sm:$0xf] %vm849, %v784
        %866 = vst.msk [vmem:[#allocation2 + $0x40] sm:$0xf] %vm849, %v786
        %867 = vst.msk [vmem:[#allocation2 + $0x44] sm:$0xf] %vm849, %v788
        %868 = vst.msk [vmem:[#allocation2 + $0x48] sm:$0xf] %vm849, %v790
        %869 = vst.msk [vmem:[#allocation2 + $0x4c] sm:$0xf] %vm849, %v792
        %870 = vst.msk [vmem:[#allocation2 + $0x50] sm:$0xf] %vm849, %v794
        %871 = vst.msk [vmem:[#allocation2 + $0x54] sm:$0xf] %vm849, %v796
        %872 = vst.msk [vmem:[#allocation2 + $0x58] sm:$0xf] %vm849, %v798
        %873 = vst.msk [vmem:[#allocation2 + $0x5c] sm:$0xf] %vm849, %v800
        %874 = vst.msk [vmem:[#allocation2 + $0x60] sm:$0xf] %vm849, %v802
        %875 = vst.msk [vmem:[#allocation2 + $0x64] sm:$0xf] %vm849, %v804
        %876 = vst.msk [vmem:[#allocation2 + $0x68] sm:$0xf] %vm849, %v806
        %877 = vst.msk [vmem:[#allocation2 + $0x6c] sm:$0xf] %vm849, %v808
        %878 = vst.msk [vmem:[#allocation2 + $0x70] sm:$0xf] %vm849, %v810
        %879 = vst.msk [vmem:[#allocation2 + $0x74] sm:$0xf] %vm849, %v812
        %880 = vst.msk [vmem:[#allocation2 + $0x78] sm:$0xf] %vm849, %v814
        %881 = vst.msk [vmem:[#allocation2 + $0x7c] sm:$0xf] %vm849, %v816
        %v882 = vld [vmem:[%s250] sm:$0xe]
        %v883 = vld [vmem:[%s250 + $0x4] sm:$0xf]
        %v884 = vld [vmem:[%s250 + $0x8] sm:$0x1]
        %v885 = vld [vmem:[%s250 + $0xc] sm:$0xe]
        %v886 = vld [vmem:[%s250 + $0x10] sm:$0xf]
        %v887 = vld [vmem:[%s250 + $0x14] sm:$0x1]
        %v888 = vld [vmem:[%s250 + $0x18] sm:$0xe]
        %v889 = vld [vmem:[%s250 + $0x1c] sm:$0xf]
        %v890 = vld [vmem:[%s250 + $0x20] sm:$0x1]
        %v891 = vld [vmem:[%s250 + $0x24] sm:$0xe]
        %v892 = vld [vmem:[%s250 + $0x28] sm:$0xf]
        %v893 = vld [vmem:[%s250 + $0x2c] sm:$0x1]
        %v894 = vld [vmem:[%s250 + $0x30] sm:$0xe]
        %v895 = vld [vmem:[%s250 + $0x34] sm:$0xf]
        %v896 = vld [vmem:[%s250 + $0x38] sm:$0x1]
        %v897 = vld [vmem:[%s250 + $0x3c] sm:$0xe]
        %v898 = vld [vmem:[%s250 + $0x40] sm:$0xf]
        %v899 = vld [vmem:[%s250 + $0x44] sm:$0x1]
        %v900 = vld [vmem:[%s250 + $0x48] sm:$0xe]
        %v901 = vld [vmem:[%s250 + $0x4c] sm:$0xf]
        %v902 = vld [vmem:[%s250 + $0x50] sm:$0x1]
        %v903 = vld [vmem:[%s250 + $0x54] sm:$0xe]
        %v904 = vld [vmem:[%s250 + $0x58] sm:$0xf]
        %v905 = vld [vmem:[%s250 + $0x5c] sm:$0x1]
        %v906 = vld [vmem:[%s250 + $0x60] sm:$0xe]
        %v907 = vld [vmem:[%s250 + $0x64] sm:$0xf]
        %v908 = vld [vmem:[%s250 + $0x68] sm:$0x1]
        %v909 = vld [vmem:[%s250 + $0x6c] sm:$0xe]
        %v910 = vld [vmem:[%s250 + $0x70] sm:$0xf]
        %v911 = vld [vmem:[%s250 + $0x74] sm:$0x1]
        %v912 = vld [vmem:[%s250 + $0x78] sm:$0xe]
        %v913 = vld [vmem:[%s250 + $0x7c] sm:$0xf]
        %v914 = vld [vmem:[%s250 + $0x80] sm:$0x1]
        %v915 = vld [vmem:[%s250 + $0x84] sm:$0xe]
        %v916 = vld [vmem:[%s250 + $0x88] sm:$0xf]
        %v917 = vld [vmem:[%s250 + $0x8c] sm:$0x1]
        %v918 = vld [vmem:[%s250 + $0x90] sm:$0xe]
        %v919 = vld [vmem:[%s250 + $0x94] sm:$0xf]
        %v920 = vld [vmem:[%s250 + $0x98] sm:$0x1]
        %v921 = vld [vmem:[%s250 + $0x9c] sm:$0xe]
        %v922 = vld [vmem:[%s250 + $0xa0] sm:$0xf]
        %v923 = vld [vmem:[%s250 + $0xa4] sm:$0x1]
        %v924 = vld [vmem:[%s250 + $0xa8] sm:$0xe]
        %v925 = vld [vmem:[%s250 + $0xac] sm:$0xf]
        %v926 = vld [vmem:[%s250 + $0xb0] sm:$0x1]
        %v927 = vld [vmem:[%s250 + $0xb4] sm:$0xe]
        %v928 = vld [vmem:[%s250 + $0xb8] sm:$0xf]
        %v929 = vld [vmem:[%s250 + $0xbc] sm:$0x1]
        %vm978 = vcmask 1042432
        %vm979 = vcmask 1046532
        %vm980 = vmor %vm978, %vm979
        %v981 = vrot.slane %v882, 5
        %v982 = vrot.slane %v981, 4
        %v983 = vrot.slane %v883, 5
        %v984 = vsel %vm980, %v982, %v983
        %v985 = vrot.slane %v983, 4
        %v986 = vrot.slane %v884, 5
        %v987 = vsel %vm980, %v985, %v986
        %v988 = vrot.slane %v885, 5
        %v989 = vrot.slane %v988, 4
        %v990 = vrot.slane %v886, 5
        %v991 = vsel %vm980, %v989, %v990
        %v992 = vrot.slane %v990, 4
        %v993 = vrot.slane %v887, 5
        %v994 = vsel %vm980, %v992, %v993
        %v995 = vrot.slane %v888, 5
        %v996 = vrot.slane %v995, 4
        %v997 = vrot.slane %v889, 5
        %v998 = vsel %vm980, %v996, %v997
        %v999 = vrot.slane %v997, 4
        %v1000 = vrot.slane %v890, 5
        %v1001 = vsel %vm980, %v999, %v1000
        %v1002 = vrot.slane %v891, 5
        %v1003 = vrot.slane %v1002, 4
        %v1004 = vrot.slane %v892, 5
        %v1005 = vsel %vm980, %v1003, %v1004
        %v1006 = vrot.slane %v1004, 4
        %v1007 = vrot.slane %v893, 5
        %v1008 = vsel %vm980, %v1006, %v1007
        %v1009 = vrot.slane %v894, 5
        %v1010 = vrot.slane %v1009, 4
        %v1011 = vrot.slane %v895, 5
        %v1012 = vsel %vm980, %v1010, %v1011
        %v1013 = vrot.slane %v1011, 4
        %v1014 = vrot.slane %v896, 5
        %v1015 = vsel %vm980, %v1013, %v1014
        %v1016 = vrot.slane %v897, 5
        %v1017 = vrot.slane %v1016, 4
        %v1018 = vrot.slane %v898, 5
        %v1019 = vsel %vm980, %v1017, %v1018
        %v1020 = vrot.slane %v1018, 4
        %v1021 = vrot.slane %v899, 5
        %v1022 = vsel %vm980, %v1020, %v1021
        %v1023 = vrot.slane %v900, 5
        %v1024 = vrot.slane %v1023, 4
        %v1025 = vrot.slane %v901, 5
        %v1026 = vsel %vm980, %v1024, %v1025
        %v1027 = vrot.slane %v1025, 4
        %v1028 = vrot.slane %v902, 5
        %v1029 = vsel %vm980, %v1027, %v1028
        %v1030 = vrot.slane %v903, 5
        %v1031 = vrot.slane %v1030, 4
        %v1032 = vrot.slane %v904, 5
        %v1033 = vsel %vm980, %v1031, %v1032
        %v1034 = vrot.slane %v1032, 4
        %v1035 = vrot.slane %v905, 5
        %v1036 = vsel %vm980, %v1034, %v1035
        %v1037 = vrot.slane %v906, 5
        %v1038 = vrot.slane %v1037, 4
        %v1039 = vrot.slane %v907, 5
        %v1040 = vsel %vm980, %v1038, %v1039
        %v1041 = vrot.slane %v1039, 4
        %v1042 = vrot.slane %v908, 5
        %v1043 = vsel %vm980, %v1041, %v1042
        %v1044 = vrot.slane %v909, 5
        %v1045 = vrot.slane %v1044, 4
        %v1046 = vrot.slane %v910, 5
        %v1047 = vsel %vm980, %v1045, %v1046
        %v1048 = vrot.slane %v1046, 4
        %v1049 = vrot.slane %v911, 5
        %v1050 = vsel %vm980, %v1048, %v1049
        %v1051 = vrot.slane %v912, 5
        %v1052 = vrot.slane %v1051, 4
        %v1053 = vrot.slane %v913, 5
        %v1054 = vsel %vm980, %v1052, %v1053
        %v1055 = vrot.slane %v1053, 4
        %v1056 = vrot.slane %v914, 5
        %v1057 = vsel %vm980, %v1055, %v1056
        %v1058 = vrot.slane %v915, 5
        %v1059 = vrot.slane %v1058, 4
        %v1060 = vrot.slane %v916, 5
        %v1061 = vsel %vm980, %v1059, %v1060
        %v1062 = vrot.slane %v1060, 4
        %v1063 = vrot.slane %v917, 5
        %v1064 = vsel %vm980, %v1062, %v1063
        %v1065 = vrot.slane %v918, 5
        %v1066 = vrot.slane %v1065, 4
        %v1067 = vrot.slane %v919, 5
        %v1068 = vsel %vm980, %v1066, %v1067
        %v1069 = vrot.slane %v1067, 4
        %v1070 = vrot.slane %v920, 5
        %v1071 = vsel %vm980, %v1069, %v1070
        %v1072 = vrot.slane %v921, 5
        %v1073 = vrot.slane %v1072, 4
        %v1074 = vrot.slane %v922, 5
        %v1075 = vsel %vm980, %v1073, %v1074
        %v1076 = vrot.slane %v1074, 4
        %v1077 = vrot.slane %v923, 5
        %v1078 = vsel %vm980, %v1076, %v1077
        %v1079 = vrot.slane %v924, 5
        %v1080 = vrot.slane %v1079, 4
        %v1081 = vrot.slane %v925, 5
        %v1082 = vsel %vm980, %v1080, %v1081
        %v1083 = vrot.slane %v1081, 4
        %v1084 = vrot.slane %v926, 5
        %v1085 = vsel %vm980, %v1083, %v1084
        %v1086 = vrot.slane %v927, 5
        %v1087 = vrot.slane %v1086, 4
        %v1088 = vrot.slane %v928, 5
        %v1089 = vsel %vm980, %v1087, %v1088
        %v1090 = vrot.slane %v1088, 4
        %v1091 = vrot.slane %v929, 5
        %v1092 = vsel %vm980, %v1090, %v1091
        %1093 = vrot.lane.b32.xlu0 %v984, 8
        %v1094 = vpop.permute.xlu0 %1093
        %1095 = vrot.lane.b32.xlu0 %v987, 8
        %v1096 = vpop.permute.xlu0 %1095
        %1097 = vrot.lane.b32.xlu0 %v991, 8
        %v1098 = vpop.permute.xlu0 %1097
        %1099 = vrot.lane.b32.xlu0 %v994, 8
        %v1100 = vpop.permute.xlu0 %1099
        %1101 = vrot.lane.b32.xlu0 %v998, 8
        %v1102 = vpop.permute.xlu0 %1101
        %1103 = vrot.lane.b32.xlu0 %v1001, 8
        %v1104 = vpop.permute.xlu0 %1103
        %1105 = vrot.lane.b32.xlu0 %v1005, 8
        %v1106 = vpop.permute.xlu0 %1105
        %1107 = vrot.lane.b32.xlu0 %v1008, 8
        %v1108 = vpop.permute.xlu0 %1107
        %1109 = vrot.lane.b32.xlu0 %v1012, 8
        %v1110 = vpop.permute.xlu0 %1109
        %1111 = vrot.lane.b32.xlu0 %v1015, 8
        %v1112 = vpop.permute.xlu0 %1111
        %1113 = vrot.lane.b32.xlu0 %v1019, 8
        %v1114 = vpop.permute.xlu0 %1113
        %1115 = vrot.lane.b32.xlu0 %v1022, 8
        %v1116 = vpop.permute.xlu0 %1115
        %1117 = vrot.lane.b32.xlu0 %v1026, 8
        %v1118 = vpop.permute.xlu0 %1117
        %1119 = vrot.lane.b32.xlu0 %v1029, 8
        %v1120 = vpop.permute.xlu0 %1119
        %1121 = vrot.lane.b32.xlu0 %v1033, 8
        %v1122 = vpop.permute.xlu0 %1121
        %1123 = vrot.lane.b32.xlu0 %v1036, 8
        %v1124 = vpop.permute.xlu0 %1123
        %1125 = vrot.lane.b32.xlu0 %v1040, 8
        %v1126 = vpop.permute.xlu0 %1125
        %1127 = vrot.lane.b32.xlu0 %v1043, 8
        %v1128 = vpop.permute.xlu0 %1127
        %1129 = vrot.lane.b32.xlu0 %v1047, 8
        %v1130 = vpop.permute.xlu0 %1129
        %1131 = vrot.lane.b32.xlu0 %v1050, 8
        %v1132 = vpop.permute.xlu0 %1131
        %1133 = vrot.lane.b32.xlu0 %v1054, 8
        %v1134 = vpop.permute.xlu0 %1133
        %1135 = vrot.lane.b32.xlu0 %v1057, 8
        %v1136 = vpop.permute.xlu0 %1135
        %1137 = vrot.lane.b32.xlu0 %v1061, 8
        %v1138 = vpop.permute.xlu0 %1137
        %1139 = vrot.lane.b32.xlu0 %v1064, 8
        %v1140 = vpop.permute.xlu0 %1139
        %1141 = vrot.lane.b32.xlu0 %v1068, 8
        %v1142 = vpop.permute.xlu0 %1141
        %1143 = vrot.lane.b32.xlu0 %v1071, 8
        %v1144 = vpop.permute.xlu0 %1143
        %1145 = vrot.lane.b32.xlu0 %v1075, 8
        %v1146 = vpop.permute.xlu0 %1145
        %1147 = vrot.lane.b32.xlu0 %v1078, 8
        %v1148 = vpop.permute.xlu0 %1147
        %1149 = vrot.lane.b32.xlu0 %v1082, 8
        %v1150 = vpop.permute.xlu0 %1149
        %1151 = vrot.lane.b32.xlu0 %v1085, 8
        %v1152 = vpop.permute.xlu0 %1151
        %1153 = vrot.lane.b32.xlu0 %v1089, 8
        %v1154 = vpop.permute.xlu0 %1153
        %1155 = vrot.lane.b32.xlu0 %v1092, 8
        %v1156 = vpop.permute.xlu0 %1155
        %vm1189 = vcmask 93248
        %1190 = vst.msk [vmem:[#allocation2] sm:$0xf] %vm1189, %v1094
        %1191 = vst.msk [vmem:[#allocation2 + $0x4] sm:$0xf] %vm1189, %v1096
        %1192 = vst.msk [vmem:[#allocation2 + $0x8] sm:$0xf] %vm1189, %v1098
        %1193 = vst.msk [vmem:[#allocation2 + $0xc] sm:$0xf] %vm1189, %v1100
        %1194 = vst.msk [vmem:[#allocation2 + $0x10] sm:$0xf] %vm1189, %v1102
        %1195 = vst.msk [vmem:[#allocation2 + $0x14] sm:$0xf] %vm1189, %v1104
        %1196 = vst.msk [vmem:[#allocation2 + $0x18] sm:$0xf] %vm1189, %v1106
        %1197 = vst.msk [vmem:[#allocation2 + $0x1c] sm:$0xf] %vm1189, %v1108
        %1198 = vst.msk [vmem:[#allocation2 + $0x20] sm:$0xf] %vm1189, %v1110
        %1199 = vst.msk [vmem:[#allocation2 + $0x24] sm:$0xf] %vm1189, %v1112
        %1200 = vst.msk [vmem:[#allocation2 + $0x28] sm:$0xf] %vm1189, %v1114
        %1201 = vst.msk [vmem:[#allocation2 + $0x2c] sm:$0xf] %vm1189, %v1116
        %1202 = vst.msk [vmem:[#allocation2 + $0x30] sm:$0xf] %vm1189, %v1118
        %1203 = vst.msk [vmem:[#allocation2 + $0x34] sm:$0xf] %vm1189, %v1120
        %1204 = vst.msk [vmem:[#allocation2 + $0x38] sm:$0xf] %vm1189, %v1122
        %1205 = vst.msk [vmem:[#allocation2 + $0x3c] sm:$0xf] %vm1189, %v1124
        %1206 = vst.msk [vmem:[#allocation2 + $0x40] sm:$0xf] %vm1189, %v1126
        %1207 = vst.msk [vmem:[#allocation2 + $0x44] sm:$0xf] %vm1189, %v1128
        %1208 = vst.msk [vmem:[#allocation2 + $0x48] sm:$0xf] %vm1189, %v1130
        %1209 = vst.msk [vmem:[#allocation2 + $0x4c] sm:$0xf] %vm1189, %v1132
        %1210 = vst.msk [vmem:[#allocation2 + $0x50] sm:$0xf] %vm1189, %v1134
        %1211 = vst.msk [vmem:[#allocation2 + $0x54] sm:$0xf] %vm1189, %v1136
        %1212 = vst.msk [vmem:[#allocation2 + $0x58] sm:$0xf] %vm1189, %v1138
        %1213 = vst.msk [vmem:[#allocation2 + $0x5c] sm:$0xf] %vm1189, %v1140
        %1214 = vst.msk [vmem:[#allocation2 + $0x60] sm:$0xf] %vm1189, %v1142
        %1215 = vst.msk [vmem:[#allocation2 + $0x64] sm:$0xf] %vm1189, %v1144
        %1216 = vst.msk [vmem:[#allocation2 + $0x68] sm:$0xf] %vm1189, %v1146
        %1217 = vst.msk [vmem:[#allocation2 + $0x6c] sm:$0xf] %vm1189, %v1148
        %1218 = vst.msk [vmem:[#allocation2 + $0x70] sm:$0xf] %vm1189, %v1150
        %1219 = vst.msk [vmem:[#allocation2 + $0x74] sm:$0xf] %vm1189, %v1152
        %1220 = vst.msk [vmem:[#allocation2 + $0x78] sm:$0xf] %vm1189, %v1154
        %1221 = vst.msk [vmem:[#allocation2 + $0x7c] sm:$0xf] %vm1189, %v1156
        %s1222 = scalar_lea.vmem %s250, 12
        %v1223 = vld [vmem:[%s1222] sm:$0xf]
        %v1224 = vld [vmem:[%s1222 + $0x4] sm:$0xf]
        %v1225 = vld [vmem:[%s1222 + $0xc] sm:$0xf]
        %v1226 = vld [vmem:[%s1222 + $0x10] sm:$0xf]
        %v1227 = vld [vmem:[%s1222 + $0x18] sm:$0xf]
        %v1228 = vld [vmem:[%s1222 + $0x1c] sm:$0xf]
        %v1229 = vld [vmem:[%s1222 + $0x24] sm:$0xf]
        %v1230 = vld [vmem:[%s1222 + $0x28] sm:$0xf]
        %v1231 = vld [vmem:[%s1222 + $0x30] sm:$0xf]
        %v1232 = vld [vmem:[%s1222 + $0x34] sm:$0xf]
        %v1233 = vld [vmem:[%s1222 + $0x3c] sm:$0xf]
        %v1234 = vld [vmem:[%s1222 + $0x40] sm:$0xf]
        %v1235 = vld [vmem:[%s1222 + $0x48] sm:$0xf]
        %v1236 = vld [vmem:[%s1222 + $0x4c] sm:$0xf]
        %v1237 = vld [vmem:[%s1222 + $0x54] sm:$0xf]
        %v1238 = vld [vmem:[%s1222 + $0x58] sm:$0xf]
        %v1239 = vld [vmem:[%s1222 + $0x60] sm:$0xf]
        %v1240 = vld [vmem:[%s1222 + $0x64] sm:$0xf]
        %v1241 = vld [vmem:[%s1222 + $0x6c] sm:$0xf]
        %v1242 = vld [vmem:[%s1222 + $0x70] sm:$0xf]
        %v1243 = vld [vmem:[%s1222 + $0x78] sm:$0xf]
        %v1244 = vld [vmem:[%s1222 + $0x7c] sm:$0xf]
        %v1245 = vld [vmem:[%s1222 + $0x84] sm:$0xf]
        %v1246 = vld [vmem:[%s1222 + $0x88] sm:$0xf]
        %v1247 = vld [vmem:[%s1222 + $0x90] sm:$0xf]
        %v1248 = vld [vmem:[%s1222 + $0x94] sm:$0xf]
        %v1249 = vld [vmem:[%s1222 + $0x9c] sm:$0xf]
        %v1250 = vld [vmem:[%s1222 + $0xa0] sm:$0xf]
        %v1251 = vld [vmem:[%s1222 + $0xa8] sm:$0xf]
        %v1252 = vld [vmem:[%s1222 + $0xac] sm:$0xf]
        %v1253 = vld [vmem:[%s1222 + $0xb4] sm:$0xf]
        %v1254 = vld [vmem:[%s1222 + $0xb8] sm:$0xf]
        %1287 = vrot.lane.b32.xlu0 %v1223, 12
        %v1288 = vpop.permute.xlu0 %1287
        %1289 = vrot.lane.b32.xlu0 %v1224, 12
        %v1290 = vpop.permute.xlu0 %1289
        %1291 = vrot.lane.b32.xlu0 %v1225, 12
        %v1292 = vpop.permute.xlu0 %1291
        %1293 = vrot.lane.b32.xlu0 %v1226, 12
        %v1294 = vpop.permute.xlu0 %1293
        %1295 = vrot.lane.b32.xlu0 %v1227, 12
        %v1296 = vpop.permute.xlu0 %1295
        %1297 = vrot.lane.b32.xlu0 %v1228, 12
        %v1298 = vpop.permute.xlu0 %1297
        %1299 = vrot.lane.b32.xlu0 %v1229, 12
        %v1300 = vpop.permute.xlu0 %1299
        %1301 = vrot.lane.b32.xlu0 %v1230, 12
        %v1302 = vpop.permute.xlu0 %1301
        %1303 = vrot.lane.b32.xlu0 %v1231, 12
        %v1304 = vpop.permute.xlu0 %1303
        %1305 = vrot.lane.b32.xlu0 %v1232, 12
        %v1306 = vpop.permute.xlu0 %1305
        %1307 = vrot.lane.b32.xlu0 %v1233, 12
        %v1308 = vpop.permute.xlu0 %1307
        %1309 = vrot.lane.b32.xlu0 %v1234, 12
        %v1310 = vpop.permute.xlu0 %1309
        %1311 = vrot.lane.b32.xlu0 %v1235, 12
        %v1312 = vpop.permute.xlu0 %1311
        %1313 = vrot.lane.b32.xlu0 %v1236, 12
        %v1314 = vpop.permute.xlu0 %1313
        %1315 = vrot.lane.b32.xlu0 %v1237, 12
        %v1316 = vpop.permute.xlu0 %1315
        %1317 = vrot.lane.b32.xlu0 %v1238, 12
        %v1318 = vpop.permute.xlu0 %1317
        %1319 = vrot.lane.b32.xlu0 %v1239, 12
        %v1320 = vpop.permute.xlu0 %1319
        %1321 = vrot.lane.b32.xlu0 %v1240, 12
        %v1322 = vpop.permute.xlu0 %1321
        %1323 = vrot.lane.b32.xlu0 %v1241, 12
        %v1324 = vpop.permute.xlu0 %1323
        %1325 = vrot.lane.b32.xlu0 %v1242, 12
        %v1326 = vpop.permute.xlu0 %1325
        %1327 = vrot.lane.b32.xlu0 %v1243, 12
        %v1328 = vpop.permute.xlu0 %1327
        %1329 = vrot.lane.b32.xlu0 %v1244, 12
        %v1330 = vpop.permute.xlu0 %1329
        %1331 = vrot.lane.b32.xlu0 %v1245, 12
        %v1332 = vpop.permute.xlu0 %1331
        %1333 = vrot.lane.b32.xlu0 %v1246, 12
        %v1334 = vpop.permute.xlu0 %1333
        %1335 = vrot.lane.b32.xlu0 %v1247, 12
        %v1336 = vpop.permute.xlu0 %1335
        %1337 = vrot.lane.b32.xlu0 %v1248, 12
        %v1338 = vpop.permute.xlu0 %1337
        %1339 = vrot.lane.b32.xlu0 %v1249, 12
        %v1340 = vpop.permute.xlu0 %1339
        %1341 = vrot.lane.b32.xlu0 %v1250, 12
        %v1342 = vpop.permute.xlu0 %1341
        %1343 = vrot.lane.b32.xlu0 %v1251, 12
        %v1344 = vpop.permute.xlu0 %1343
        %1345 = vrot.lane.b32.xlu0 %v1252, 12
        %v1346 = vpop.permute.xlu0 %1345
        %1347 = vrot.lane.b32.xlu0 %v1253, 12
        %v1348 = vpop.permute.xlu0 %1347
        %1349 = vrot.lane.b32.xlu0 %v1254, 12
        %v1350 = vpop.permute.xlu0 %1349
        %vm1383 = vcmask 126048
        %1384 = vst.msk [vmem:[#allocation2] sm:$0xf] %vm1383, %v1288
        %1385 = vst.msk [vmem:[#allocation2 + $0x4] sm:$0xf] %vm1383, %v1290
        %1386 = vst.msk [vmem:[#allocation2 + $0x8] sm:$0xf] %vm1383, %v1292
        %1387 = vst.msk [vmem:[#allocation2 + $0xc] sm:$0xf] %vm1383, %v1294
        %1388 = vst.msk [vmem:[#allocation2 + $0x10] sm:$0xf] %vm1383, %v1296
        %1389 = vst.msk [vmem:[#allocation2 + $0x14] sm:$0xf] %vm1383, %v1298
        %1390 = vst.msk [vmem:[#allocation2 + $0x18] sm:$0xf] %vm1383, %v1300
        %1391 = vst.msk [vmem:[#allocation2 + $0x1c] sm:$0xf] %vm1383, %v1302
        %1392 = vst.msk [vmem:[#allocation2 + $0x20] sm:$0xf] %vm1383, %v1304
        %1393 = vst.msk [vmem:[#allocation2 + $0x24] sm:$0xf] %vm1383, %v1306
        %1394 = vst.msk [vmem:[#allocation2 + $0x28] sm:$0xf] %vm1383, %v1308
        %1395 = vst.msk [vmem:[#allocation2 + $0x2c] sm:$0xf] %vm1383, %v1310
        %1396 = vst.msk [vmem:[#allocation2 + $0x30] sm:$0xf] %vm1383, %v1312
        %1397 = vst.msk [vmem:[#allocation2 + $0x34] sm:$0xf] %vm1383, %v1314
        %1398 = vst.msk [vmem:[#allocation2 + $0x38] sm:$0xf] %vm1383, %v1316
        %1399 = vst.msk [vmem:[#allocation2 + $0x3c] sm:$0xf] %vm1383, %v1318
        %1400 = vst.msk [vmem:[#allocation2 + $0x40] sm:$0xf] %vm1383, %v1320
        %1401 = vst.msk [vmem:[#allocation2 + $0x44] sm:$0xf] %vm1383, %v1322
        %1402 = vst.msk [vmem:[#allocation2 + $0x48] sm:$0xf] %vm1383, %v1324
        %1403 = vst.msk [vmem:[#allocation2 + $0x4c] sm:$0xf] %vm1383, %v1326
        %1404 = vst.msk [vmem:[#allocation2 + $0x50] sm:$0xf] %vm1383, %v1328
        %1405 = vst.msk [vmem:[#allocation2 + $0x54] sm:$0xf] %vm1383, %v1330
        %1406 = vst.msk [vmem:[#allocation2 + $0x58] sm:$0xf] %vm1383, %v1332
        %1407 = vst.msk [vmem:[#allocation2 + $0x5c] sm:$0xf] %vm1383, %v1334
        %1408 = vst.msk [vmem:[#allocation2 + $0x60] sm:$0xf] %vm1383, %v1336
        %1409 = vst.msk [vmem:[#allocation2 + $0x64] sm:$0xf] %vm1383, %v1338
        %1410 = vst.msk [vmem:[#allocation2 + $0x68] sm:$0xf] %vm1383, %v1340
        %1411 = vst.msk [vmem:[#allocation2 + $0x6c] sm:$0xf] %vm1383, %v1342
        %1412 = vst.msk [vmem:[#allocation2 + $0x70] sm:$0xf] %vm1383, %v1344
        %1413 = vst.msk [vmem:[#allocation2 + $0x74] sm:$0xf] %vm1383, %v1346
        %1414 = vst.msk [vmem:[#allocation2 + $0x78] sm:$0xf] %vm1383, %v1348
        %1415 = vst.msk [vmem:[#allocation2 + $0x7c] sm:$0xf] %vm1383, %v1350
        %v1416 = vld [vmem:[%s1222] sm:$0xf]
        %v1417 = vld [vmem:[%s1222 + $0x4] sm:$0xf]
        %v1418 = vld [vmem:[%s1222 + $0x8] sm:$0x1]
        %v1419 = vld [vmem:[%s1222 + $0xc] sm:$0xf]
        %v1420 = vld [vmem:[%s1222 + $0x10] sm:$0xf]
        %v1421 = vld [vmem:[%s1222 + $0x14] sm:$0x1]
        %v1422 = vld [vmem:[%s1222 + $0x18] sm:$0xf]
        %v1423 = vld [vmem:[%s1222 + $0x1c] sm:$0xf]
        %v1424 = vld [vmem:[%s1222 + $0x20] sm:$0x1]
        %v1425 = vld [vmem:[%s1222 + $0x24] sm:$0xf]
        %v1426 = vld [vmem:[%s1222 + $0x28] sm:$0xf]
        %v1427 = vld [vmem:[%s1222 + $0x2c] sm:$0x1]
        %v1428 = vld [vmem:[%s1222 + $0x30] sm:$0xf]
        %v1429 = vld [vmem:[%s1222 + $0x34] sm:$0xf]
        %v1430 = vld [vmem:[%s1222 + $0x38] sm:$0x1]
        %v1431 = vld [vmem:[%s1222 + $0x3c] sm:$0xf]
        %v1432 = vld [vmem:[%s1222 + $0x40] sm:$0xf]
        %v1433 = vld [vmem:[%s1222 + $0x44] sm:$0x1]
        %v1434 = vld [vmem:[%s1222 + $0x48] sm:$0xf]
        %v1435 = vld [vmem:[%s1222 + $0x4c] sm:$0xf]
        %v1436 = vld [vmem:[%s1222 + $0x50] sm:$0x1]
        %v1437 = vld [vmem:[%s1222 + $0x54] sm:$0xf]
        %v1438 = vld [vmem:[%s1222 + $0x58] sm:$0xf]
        %v1439 = vld [vmem:[%s1222 + $0x5c] sm:$0x1]
        %v1440 = vld [vmem:[%s1222 + $0x60] sm:$0xf]
        %v1441 = vld [vmem:[%s1222 + $0x64] sm:$0xf]
        %v1442 = vld [vmem:[%s1222 + $0x68] sm:$0x1]
        %v1443 = vld [vmem:[%s1222 + $0x6c] sm:$0xf]
        %v1444 = vld [vmem:[%s1222 + $0x70] sm:$0xf]
        %v1445 = vld [vmem:[%s1222 + $0x74] sm:$0x1]
        %v1446 = vld [vmem:[%s1222 + $0x78] sm:$0xf]
        %v1447 = vld [vmem:[%s1222 + $0x7c] sm:$0xf]
        %v1448 = vld [vmem:[%s1222 + $0x80] sm:$0x1]
        %v1449 = vld [vmem:[%s1222 + $0x84] sm:$0xf]
        %v1450 = vld [vmem:[%s1222 + $0x88] sm:$0xf]
        %v1451 = vld [vmem:[%s1222 + $0x8c] sm:$0x1]
        %v1452 = vld [vmem:[%s1222 + $0x90] sm:$0xf]
        %v1453 = vld [vmem:[%s1222 + $0x94] sm:$0xf]
        %v1454 = vld [vmem:[%s1222 + $0x98] sm:$0x1]
        %v1455 = vld [vmem:[%s1222 + $0x9c] sm:$0xf]
        %v1456 = vld [vmem:[%s1222 + $0xa0] sm:$0xf]
        %v1457 = vld [vmem:[%s1222 + $0xa4] sm:$0x1]
        %v1458 = vld [vmem:[%s1222 + $0xa8] sm:$0xf]
        %v1459 = vld [vmem:[%s1222 + $0xac] sm:$0xf]
        %v1460 = vld [vmem:[%s1222 + $0xb0] sm:$0x1]
        %v1461 = vld [vmem:[%s1222 + $0xb4] sm:$0xf]
        %v1462 = vld [vmem:[%s1222 + $0xb8] sm:$0xf]
        %v1463 = vld [vmem:[%s1222 + $0xbc] sm:$0x1]
        %v1465 = vshrl.u32 %v1416, 16
        %v1467 = vrot.slane %v1465, 4
        %v1468 = vshll.u32 %v1416, 16
        %v1470 = vrot.slane %v1468, 5
        %v1471 = vor.u32 %v1467, %v1470
        %v1472 = vrot.slane %v1471, 4
        %v1474 = vshll.u32 %v1417, 16
        %v1476 = vrot.slane %v1474, 5
        %v1477 = vsel %vm368, %v1472, %v1476
        %v1478 = vshrl.u32 %v1417, 16
        %v1480 = vrot.slane %v1478, 4
        %v1481 = vor.u32 %v1480, %v1476
        %v1482 = vrot.slane %v1481, 4
        %v1484 = vshll.u32 %v1418, 16
        %v1486 = vrot.slane %v1484, 5
        %v1487 = vsel %vm368, %v1482, %v1486
        %v1489 = vshrl.u32 %v1419, 16
        %v1491 = vrot.slane %v1489, 4
        %v1492 = vshll.u32 %v1419, 16
        %v1494 = vrot.slane %v1492, 5
        %v1495 = vor.u32 %v1491, %v1494
        %v1496 = vrot.slane %v1495, 4
        %v1498 = vshll.u32 %v1420, 16
        %v1500 = vrot.slane %v1498, 5
        %v1501 = vsel %vm368, %v1496, %v1500
        %v1502 = vshrl.u32 %v1420, 16
        %v1504 = vrot.slane %v1502, 4
        %v1505 = vor.u32 %v1504, %v1500
        %v1506 = vrot.slane %v1505, 4
        %v1508 = vshll.u32 %v1421, 16
        %v1510 = vrot.slane %v1508, 5
        %v1511 = vsel %vm368, %v1506, %v1510
        %v1513 = vshrl.u32 %v1422, 16
        %v1515 = vrot.slane %v1513, 4
        %v1516 = vshll.u32 %v1422, 16
        %v1518 = vrot.slane %v1516, 5
        %v1519 = vor.u32 %v1515, %v1518
        %v1520 = vrot.slane %v1519, 4
        %v1522 = vshll.u32 %v1423, 16
        %v1524 = vrot.slane %v1522, 5
        %v1525 = vsel %vm368, %v1520, %v1524
        %v1526 = vshrl.u32 %v1423, 16
        %v1528 = vrot.slane %v1526, 4
        %v1529 = vor.u32 %v1528, %v1524
        %v1530 = vrot.slane %v1529, 4
        %v1532 = vshll.u32 %v1424, 16
        %v1534 = vrot.slane %v1532, 5
        %v1535 = vsel %vm368, %v1530, %v1534
        %v1537 = vshrl.u32 %v1425, 16
        %v1539 = vrot.slane %v1537, 4
        %v1540 = vshll.u32 %v1425, 16
        %v1542 = vrot.slane %v1540, 5
        %v1543 = vor.u32 %v1539, %v1542
        %v1544 = vrot.slane %v1543, 4
        %v1546 = vshll.u32 %v1426, 16
        %v1548 = vrot.slane %v1546, 5
        %v1549 = vsel %vm368, %v1544, %v1548
        %v1550 = vshrl.u32 %v1426, 16
        %v1552 = vrot.slane %v1550, 4
        %v1553 = vor.u32 %v1552, %v1548
        %v1554 = vrot.slane %v1553, 4
        %v1556 = vshll.u32 %v1427, 16
        %v1558 = vrot.slane %v1556, 5
        %v1559 = vsel %vm368, %v1554, %v1558
        %v1561 = vshrl.u32 %v1428, 16
        %v1563 = vrot.slane %v1561, 4
        %v1564 = vshll.u32 %v1428, 16
        %v1566 = vrot.slane %v1564, 5
        %v1567 = vor.u32 %v1563, %v1566
        %v1568 = vrot.slane %v1567, 4
        %v1570 = vshll.u32 %v1429, 16
        %v1572 = vrot.slane %v1570, 5
        %v1573 = vsel %vm368, %v1568, %v1572
        %v1574 = vshrl.u32 %v1429, 16
        %v1576 = vrot.slane %v1574, 4
        %v1577 = vor.u32 %v1576, %v1572
        %v1578 = vrot.slane %v1577, 4
        %v1580 = vshll.u32 %v1430, 16
        %v1582 = vrot.slane %v1580, 5
        %v1583 = vsel %vm368, %v1578, %v1582
        %v1585 = vshrl.u32 %v1431, 16
        %v1587 = vrot.slane %v1585, 4
        %v1588 = vshll.u32 %v1431, 16
        %v1590 = vrot.slane %v1588, 5
        %v1591 = vor.u32 %v1587, %v1590
        %v1592 = vrot.slane %v1591, 4
        %v1594 = vshll.u32 %v1432, 16
        %v1596 = vrot.slane %v1594, 5
        %v1597 = vsel %vm368, %v1592, %v1596
        %v1598 = vshrl.u32 %v1432, 16
        %v1600 = vrot.slane %v1598, 4
        %v1601 = vor.u32 %v1600, %v1596
        %v1602 = vrot.slane %v1601, 4
        %v1604 = vshll.u32 %v1433, 16
        %v1606 = vrot.slane %v1604, 5
        %v1607 = vsel %vm368, %v1602, %v1606
        %v1609 = vshrl.u32 %v1434, 16
        %v1611 = vrot.slane %v1609, 4
        %v1612 = vshll.u32 %v1434, 16
        %v1614 = vrot.slane %v1612, 5
        %v1615 = vor.u32 %v1611, %v1614
        %v1616 = vrot.slane %v1615, 4
        %v1618 = vshll.u32 %v1435, 16
        %v1620 = vrot.slane %v1618, 5
        %v1621 = vsel %vm368, %v1616, %v1620
        %v1622 = vshrl.u32 %v1435, 16
        %v1624 = vrot.slane %v1622, 4
        %v1625 = vor.u32 %v1624, %v1620
        %v1626 = vrot.slane %v1625, 4
        %v1628 = vshll.u32 %v1436, 16
        %v1630 = vrot.slane %v1628, 5
        %v1631 = vsel %vm368, %v1626, %v1630
        %v1633 = vshrl.u32 %v1437, 16
        %v1635 = vrot.slane %v1633, 4
        %v1636 = vshll.u32 %v1437, 16
        %v1638 = vrot.slane %v1636, 5
        %v1639 = vor.u32 %v1635, %v1638
        %v1640 = vrot.slane %v1639, 4
        %v1642 = vshll.u32 %v1438, 16
        %v1644 = vrot.slane %v1642, 5
        %v1645 = vsel %vm368, %v1640, %v1644
        %v1646 = vshrl.u32 %v1438, 16
        %v1648 = vrot.slane %v1646, 4
        %v1649 = vor.u32 %v1648, %v1644
        %v1650 = vrot.slane %v1649, 4
        %v1652 = vshll.u32 %v1439, 16
        %v1654 = vrot.slane %v1652, 5
        %v1655 = vsel %vm368, %v1650, %v1654
        %v1657 = vshrl.u32 %v1440, 16
        %v1659 = vrot.slane %v1657, 4
        %v1660 = vshll.u32 %v1440, 16
        %v1662 = vrot.slane %v1660, 5
        %v1663 = vor.u32 %v1659, %v1662
        %v1664 = vrot.slane %v1663, 4
        %v1666 = vshll.u32 %v1441, 16
        %v1668 = vrot.slane %v1666, 5
        %v1669 = vsel %vm368, %v1664, %v1668
        %v1670 = vshrl.u32 %v1441, 16
        %v1672 = vrot.slane %v1670, 4
        %v1673 = vor.u32 %v1672, %v1668
        %v1674 = vrot.slane %v1673, 4
        %v1676 = vshll.u32 %v1442, 16
        %v1678 = vrot.slane %v1676, 5
        %v1679 = vsel %vm368, %v1674, %v1678
        %v1681 = vshrl.u32 %v1443, 16
        %v1683 = vrot.slane %v1681, 4
        %v1684 = vshll.u32 %v1443, 16
        %v1686 = vrot.slane %v1684, 5
        %v1687 = vor.u32 %v1683, %v1686
        %v1688 = vrot.slane %v1687, 4
        %v1690 = vshll.u32 %v1444, 16
        %v1692 = vrot.slane %v1690, 5
        %v1693 = vsel %vm368, %v1688, %v1692
        %v1694 = vshrl.u32 %v1444, 16
        %v1696 = vrot.slane %v1694, 4
        %v1697 = vor.u32 %v1696, %v1692
        %v1698 = vrot.slane %v1697, 4
        %v1700 = vshll.u32 %v1445, 16
        %v1702 = vrot.slane %v1700, 5
        %v1703 = vsel %vm368, %v1698, %v1702
        %v1705 = vshrl.u32 %v1446, 16
        %v1707 = vrot.slane %v1705, 4
        %v1708 = vshll.u32 %v1446, 16
        %v1710 = vrot.slane %v1708, 5
        %v1711 = vor.u32 %v1707, %v1710
        %v1712 = vrot.slane %v1711, 4
        %v1714 = vshll.u32 %v1447, 16
        %v1716 = vrot.slane %v1714, 5
        %v1717 = vsel %vm368, %v1712, %v1716
        %v1718 = vshrl.u32 %v1447, 16
        %v1720 = vrot.slane %v1718, 4
        %v1721 = vor.u32 %v1720, %v1716
        %v1722 = vrot.slane %v1721, 4
        %v1724 = vshll.u32 %v1448, 16
        %v1726 = vrot.slane %v1724, 5
        %v1727 = vsel %vm368, %v1722, %v1726
        %v1729 = vshrl.u32 %v1449, 16
        %v1731 = vrot.slane %v1729, 4
        %v1732 = vshll.u32 %v1449, 16
        %v1734 = vrot.slane %v1732, 5
        %v1735 = vor.u32 %v1731, %v1734
        %v1736 = vrot.slane %v1735, 4
        %v1738 = vshll.u32 %v1450, 16
        %v1740 = vrot.slane %v1738, 5
        %v1741 = vsel %vm368, %v1736, %v1740
        %v1742 = vshrl.u32 %v1450, 16
        %v1744 = vrot.slane %v1742, 4
        %v1745 = vor.u32 %v1744, %v1740
        %v1746 = vrot.slane %v1745, 4
        %v1748 = vshll.u32 %v1451, 16
        %v1750 = vrot.slane %v1748, 5
        %v1751 = vsel %vm368, %v1746, %v1750
        %v1753 = vshrl.u32 %v1452, 16
        %v1755 = vrot.slane %v1753, 4
        %v1756 = vshll.u32 %v1452, 16
        %v1758 = vrot.slane %v1756, 5
        %v1759 = vor.u32 %v1755, %v1758
        %v1760 = vrot.slane %v1759, 4
        %v1762 = vshll.u32 %v1453, 16
        %v1764 = vrot.slane %v1762, 5
        %v1765 = vsel %vm368, %v1760, %v1764
        %v1766 = vshrl.u32 %v1453, 16
        %v1768 = vrot.slane %v1766, 4
        %v1769 = vor.u32 %v1768, %v1764
        %v1770 = vrot.slane %v1769, 4
        %v1772 = vshll.u32 %v1454, 16
        %v1774 = vrot.slane %v1772, 5
        %v1775 = vsel %vm368, %v1770, %v1774
        %v1777 = vshrl.u32 %v1455, 16
        %v1779 = vrot.slane %v1777, 4
        %v1780 = vshll.u32 %v1455, 16
        %v1782 = vrot.slane %v1780, 5
        %v1783 = vor.u32 %v1779, %v1782
        %v1784 = vrot.slane %v1783, 4
        %v1786 = vshll.u32 %v1456, 16
        %v1788 = vrot.slane %v1786, 5
        %v1789 = vsel %vm368, %v1784, %v1788
        %v1790 = vshrl.u32 %v1456, 16
        %v1792 = vrot.slane %v1790, 4
        %v1793 = vor.u32 %v1792, %v1788
        %v1794 = vrot.slane %v1793, 4
        %v1796 = vshll.u32 %v1457, 16
        %v1798 = vrot.slane %v1796, 5
        %v1799 = vsel %vm368, %v1794, %v1798
        %v1801 = vshrl.u32 %v1458, 16
        %v1803 = vrot.slane %v1801, 4
        %v1804 = vshll.u32 %v1458, 16
        %v1806 = vrot.slane %v1804, 5
        %v1807 = vor.u32 %v1803, %v1806
        %v1808 = vrot.slane %v1807, 4
        %v1810 = vshll.u32 %v1459, 16
        %v1812 = vrot.slane %v1810, 5
        %v1813 = vsel %vm368, %v1808, %v1812
        %v1814 = vshrl.u32 %v1459, 16
        %v1816 = vrot.slane %v1814, 4
        %v1817 = vor.u32 %v1816, %v1812
        %v1818 = vrot.slane %v1817, 4
        %v1820 = vshll.u32 %v1460, 16
        %v1822 = vrot.slane %v1820, 5
        %v1823 = vsel %vm368, %v1818, %v1822
        %v1825 = vshrl.u32 %v1461, 16
        %v1827 = vrot.slane %v1825, 4
        %v1828 = vshll.u32 %v1461, 16
        %v1830 = vrot.slane %v1828, 5
        %v1831 = vor.u32 %v1827, %v1830
        %v1832 = vrot.slane %v1831, 4
        %v1834 = vshll.u32 %v1462, 16
        %v1836 = vrot.slane %v1834, 5
        %v1837 = vsel %vm368, %v1832, %v1836
        %v1838 = vshrl.u32 %v1462, 16
        %v1840 = vrot.slane %v1838, 4
        %v1841 = vor.u32 %v1840, %v1836
        %v1842 = vrot.slane %v1841, 4
        %v1844 = vshll.u32 %v1463, 16
        %v1846 = vrot.slane %v1844, 5
        %v1847 = vsel %vm368, %v1842, %v1846
        %1848 = vrot.lane.b32.xlu0 %v1477, 16
        %v1849 = vpop.permute.xlu0 %1848
        %1850 = vrot.lane.b32.xlu0 %v1487, 16
        %v1851 = vpop.permute.xlu0 %1850
        %1852 = vrot.lane.b32.xlu0 %v1501, 16
        %v1853 = vpop.permute.xlu0 %1852
        %1854 = vrot.lane.b32.xlu0 %v1511, 16
        %v1855 = vpop.permute.xlu0 %1854
        %1856 = vrot.lane.b32.xlu0 %v1525, 16
        %v1857 = vpop.permute.xlu0 %1856
        %1858 = vrot.lane.b32.xlu0 %v1535, 16
        %v1859 = vpop.permute.xlu0 %1858
        %1860 = vrot.lane.b32.xlu0 %v1549, 16
        %v1861 = vpop.permute.xlu0 %1860
        %1862 = vrot.lane.b32.xlu0 %v1559, 16
        %v1863 = vpop.permute.xlu0 %1862
        %1864 = vrot.lane.b32.xlu0 %v1573, 16
        %v1865 = vpop.permute.xlu0 %1864
        %1866 = vrot.lane.b32.xlu0 %v1583, 16
        %v1867 = vpop.permute.xlu0 %1866
        %1868 = vrot.lane.b32.xlu0 %v1597, 16
        %v1869 = vpop.permute.xlu0 %1868
        %1870 = vrot.lane.b32.xlu0 %v1607, 16
        %v1871 = vpop.permute.xlu0 %1870
        %1872 = vrot.lane.b32.xlu0 %v1621, 16
        %v1873 = vpop.permute.xlu0 %1872
        %1874 = vrot.lane.b32.xlu0 %v1631, 16
        %v1875 = vpop.permute.xlu0 %1874
        %1876 = vrot.lane.b32.xlu0 %v1645, 16
        %v1877 = vpop.permute.xlu0 %1876
        %1878 = vrot.lane.b32.xlu0 %v1655, 16
        %v1879 = vpop.permute.xlu0 %1878
        %1880 = vrot.lane.b32.xlu0 %v1669, 16
        %v1881 = vpop.permute.xlu0 %1880
        %1882 = vrot.lane.b32.xlu0 %v1679, 16
        %v1883 = vpop.permute.xlu0 %1882
        %1884 = vrot.lane.b32.xlu0 %v1693, 16
        %v1885 = vpop.permute.xlu0 %1884
        %1886 = vrot.lane.b32.xlu0 %v1703, 16
        %v1887 = vpop.permute.xlu0 %1886
        %1888 = vrot.lane.b32.xlu0 %v1717, 16
        %v1889 = vpop.permute.xlu0 %1888
        %1890 = vrot.lane.b32.xlu0 %v1727, 16
        %v1891 = vpop.permute.xlu0 %1890
        %1892 = vrot.lane.b32.xlu0 %v1741, 16
        %v1893 = vpop.permute.xlu0 %1892
        %1894 = vrot.lane.b32.xlu0 %v1751, 16
        %v1895 = vpop.permute.xlu0 %1894
        %1896 = vrot.lane.b32.xlu0 %v1765, 16
        %v1897 = vpop.permute.xlu0 %1896
        %1898 = vrot.lane.b32.xlu0 %v1775, 16
        %v1899 = vpop.permute.xlu0 %1898
        %1900 = vrot.lane.b32.xlu0 %v1789, 16
        %v1901 = vpop.permute.xlu0 %1900
        %1902 = vrot.lane.b32.xlu0 %v1799, 16
        %v1903 = vpop.permute.xlu0 %1902
        %1904 = vrot.lane.b32.xlu0 %v1813, 16
        %v1905 = vpop.permute.xlu0 %1904
        %1906 = vrot.lane.b32.xlu0 %v1823, 16
        %v1907 = vpop.permute.xlu0 %1906
        %1908 = vrot.lane.b32.xlu0 %v1837, 16
        %v1909 = vpop.permute.xlu0 %1908
        %1910 = vrot.lane.b32.xlu0 %v1847, 16
        %v1911 = vpop.permute.xlu0 %1910
        %vm1944 = vcmask 158848
        %1945 = vst.msk [vmem:[#allocation2] sm:$0xf] %vm1944, %v1849
        %1946 = vst.msk [vmem:[#allocation2 + $0x4] sm:$0xf] %vm1944, %v1851
        %1947 = vst.msk [vmem:[#allocation2 + $0x8] sm:$0xf] %vm1944, %v1853
        %1948 = vst.msk [vmem:[#allocation2 + $0xc] sm:$0xf] %vm1944, %v1855
        %1949 = vst.msk [vmem:[#allocation2 + $0x10] sm:$0xf] %vm1944, %v1857
        %1950 = vst.msk [vmem:[#allocation2 + $0x14] sm:$0xf] %vm1944, %v1859
        %1951 = vst.msk [vmem:[#allocation2 + $0x18] sm:$0xf] %vm1944, %v1861
        %1952 = vst.msk [vmem:[#allocation2 + $0x1c] sm:$0xf] %vm1944, %v1863
        %1953 = vst.msk [vmem:[#allocation2 + $0x20] sm:$0xf] %vm1944, %v1865
        %1954 = vst.msk [vmem:[#allocation2 + $0x24] sm:$0xf] %vm1944, %v1867
        %1955 = vst.msk [vmem:[#allocation2 + $0x28] sm:$0xf] %vm1944, %v1869
        %1956 = vst.msk [vmem:[#allocation2 + $0x2c] sm:$0xf] %vm1944, %v1871
        %1957 = vst.msk [vmem:[#allocation2 + $0x30] sm:$0xf] %vm1944, %v1873
        %1958 = vst.msk [vmem:[#allocation2 + $0x34] sm:$0xf] %vm1944, %v1875
        %1959 = vst.msk [vmem:[#allocation2 + $0x38] sm:$0xf] %vm1944, %v1877
        %1960 = vst.msk [vmem:[#allocation2 + $0x3c] sm:$0xf] %vm1944, %v1879
        %1961 = vst.msk [vmem:[#allocation2 + $0x40] sm:$0xf] %vm1944, %v1881
        %1962 = vst.msk [vmem:[#allocation2 + $0x44] sm:$0xf] %vm1944, %v1883
        %1963 = vst.msk [vmem:[#allocation2 + $0x48] sm:$0xf] %vm1944, %v1885
        %1964 = vst.msk [vmem:[#allocation2 + $0x4c] sm:$0xf] %vm1944, %v1887
        %1965 = vst.msk [vmem:[#allocation2 + $0x50] sm:$0xf] %vm1944, %v1889
        %1966 = vst.msk [vmem:[#allocation2 + $0x54] sm:$0xf] %vm1944, %v1891
        %1967 = vst.msk [vmem:[#allocation2 + $0x58] sm:$0xf] %vm1944, %v1893
        %1968 = vst.msk [vmem:[#allocation2 + $0x5c] sm:$0xf] %vm1944, %v1895
        %1969 = vst.msk [vmem:[#allocation2 + $0x60] sm:$0xf] %vm1944, %v1897
        %1970 = vst.msk [vmem:[#allocation2 + $0x64] sm:$0xf] %vm1944, %v1899
        %1971 = vst.msk [vmem:[#allocation2 + $0x68] sm:$0xf] %vm1944, %v1901
        %1972 = vst.msk [vmem:[#allocation2 + $0x6c] sm:$0xf] %vm1944, %v1903
        %1973 = vst.msk [vmem:[#allocation2 + $0x70] sm:$0xf] %vm1944, %v1905
        %1974 = vst.msk [vmem:[#allocation2 + $0x74] sm:$0xf] %vm1944, %v1907
        %1975 = vst.msk [vmem:[#allocation2 + $0x78] sm:$0xf] %vm1944, %v1909
        %1976 = vst.msk [vmem:[#allocation2 + $0x7c] sm:$0xf] %vm1944, %v1911
        %v1977 = vld [vmem:[%s1222] sm:$0xe]
        %v1978 = vld [vmem:[%s1222 + $0x4] sm:$0xf]
        %v1979 = vld [vmem:[%s1222 + $0x8] sm:$0x1]
        %v1980 = vld [vmem:[%s1222 + $0xc] sm:$0xe]
        %v1981 = vld [vmem:[%s1222 + $0x10] sm:$0xf]
        %v1982 = vld [vmem:[%s1222 + $0x14] sm:$0x1]
        %v1983 = vld [vmem:[%s1222 + $0x18] sm:$0xe]
        %v1984 = vld [vmem:[%s1222 + $0x1c] sm:$0xf]
        %v1985 = vld [vmem:[%s1222 + $0x20] sm:$0x1]
        %v1986 = vld [vmem:[%s1222 + $0x24] sm:$0xe]
        %v1987 = vld [vmem:[%s1222 + $0x28] sm:$0xf]
        %v1988 = vld [vmem:[%s1222 + $0x2c] sm:$0x1]
        %v1989 = vld [vmem:[%s1222 + $0x30] sm:$0xe]
        %v1990 = vld [vmem:[%s1222 + $0x34] sm:$0xf]
        %v1991 = vld [vmem:[%s1222 + $0x38] sm:$0x1]
        %v1992 = vld [vmem:[%s1222 + $0x3c] sm:$0xe]
        %v1993 = vld [vmem:[%s1222 + $0x40] sm:$0xf]
        %v1994 = vld [vmem:[%s1222 + $0x44] sm:$0x1]
        %v1995 = vld [vmem:[%s1222 + $0x48] sm:$0xe]
        %v1996 = vld [vmem:[%s1222 + $0x4c] sm:$0xf]
        %v1997 = vld [vmem:[%s1222 + $0x50] sm:$0x1]
        %v1998 = vld [vmem:[%s1222 + $0x54] sm:$0xe]
        %v1999 = vld [vmem:[%s1222 + $0x58] sm:$0xf]
        %v2000 = vld [vmem:[%s1222 + $0x5c] sm:$0x1]
        %v2001 = vld [vmem:[%s1222 + $0x60] sm:$0xe]
        %v2002 = vld [vmem:[%s1222 + $0x64] sm:$0xf]
        %v2003 = vld [vmem:[%s1222 + $0x68] sm:$0x1]
        %v2004 = vld [vmem:[%s1222 + $0x6c] sm:$0xe]
        %v2005 = vld [vmem:[%s1222 + $0x70] sm:$0xf]
        %v2006 = vld [vmem:[%s1222 + $0x74] sm:$0x1]
        %v2007 = vld [vmem:[%s1222 + $0x78] sm:$0xe]
        %v2008 = vld [vmem:[%s1222 + $0x7c] sm:$0xf]
        %v2009 = vld [vmem:[%s1222 + $0x80] sm:$0x1]
        %v2010 = vld [vmem:[%s1222 + $0x84] sm:$0xe]
        %v2011 = vld [vmem:[%s1222 + $0x88] sm:$0xf]
        %v2012 = vld [vmem:[%s1222 + $0x8c] sm:$0x1]
        %v2013 = vld [vmem:[%s1222 + $0x90] sm:$0xe]
        %v2014 = vld [vmem:[%s1222 + $0x94] sm:$0xf]
        %v2015 = vld [vmem:[%s1222 + $0x98] sm:$0x1]
        %v2016 = vld [vmem:[%s1222 + $0x9c] sm:$0xe]
        %v2017 = vld [vmem:[%s1222 + $0xa0] sm:$0xf]
        %v2018 = vld [vmem:[%s1222 + $0xa4] sm:$0x1]
        %v2019 = vld [vmem:[%s1222 + $0xa8] sm:$0xe]
        %v2020 = vld [vmem:[%s1222 + $0xac] sm:$0xf]
        %v2021 = vld [vmem:[%s1222 + $0xb0] sm:$0x1]
        %v2022 = vld [vmem:[%s1222 + $0xb4] sm:$0xe]
        %v2023 = vld [vmem:[%s1222 + $0xb8] sm:$0xf]
        %v2024 = vld [vmem:[%s1222 + $0xbc] sm:$0x1]
        %v2073 = vrot.slane %v1977, 5
        %v2074 = vrot.slane %v2073, 4
        %v2075 = vrot.slane %v1978, 5
        %v2076 = vsel %vm980, %v2074, %v2075
        %v2077 = vrot.slane %v2075, 4
        %v2078 = vrot.slane %v1979, 5
        %v2079 = vsel %vm980, %v2077, %v2078
        %v2080 = vrot.slane %v1980, 5
        %v2081 = vrot.slane %v2080, 4
        %v2082 = vrot.slane %v1981, 5
        %v2083 = vsel %vm980, %v2081, %v2082
        %v2084 = vrot.slane %v2082, 4
        %v2085 = vrot.slane %v1982, 5
        %v2086 = vsel %vm980, %v2084, %v2085
        %v2087 = vrot.slane %v1983, 5
        %v2088 = vrot.slane %v2087, 4
        %v2089 = vrot.slane %v1984, 5
        %v2090 = vsel %vm980, %v2088, %v2089
        %v2091 = vrot.slane %v2089, 4
        %v2092 = vrot.slane %v1985, 5
        %v2093 = vsel %vm980, %v2091, %v2092
        %v2094 = vrot.slane %v1986, 5
        %v2095 = vrot.slane %v2094, 4
        %v2096 = vrot.slane %v1987, 5
        %v2097 = vsel %vm980, %v2095, %v2096
        %v2098 = vrot.slane %v2096, 4
        %v2099 = vrot.slane %v1988, 5
        %v2100 = vsel %vm980, %v2098, %v2099
        %v2101 = vrot.slane %v1989, 5
        %v2102 = vrot.slane %v2101, 4
        %v2103 = vrot.slane %v1990, 5
        %v2104 = vsel %vm980, %v2102, %v2103
        %v2105 = vrot.slane %v2103, 4
        %v2106 = vrot.slane %v1991, 5
        %v2107 = vsel %vm980, %v2105, %v2106
        %v2108 = vrot.slane %v1992, 5
        %v2109 = vrot.slane %v2108, 4
        %v2110 = vrot.slane %v1993, 5
        %v2111 = vsel %vm980, %v2109, %v2110
        %v2112 = vrot.slane %v2110, 4
        %v2113 = vrot.slane %v1994, 5
        %v2114 = vsel %vm980, %v2112, %v2113
        %v2115 = vrot.slane %v1995, 5
        %v2116 = vrot.slane %v2115, 4
        %v2117 = vrot.slane %v1996, 5
        %v2118 = vsel %vm980, %v2116, %v2117
        %v2119 = vrot.slane %v2117, 4
        %v2120 = vrot.slane %v1997, 5
        %v2121 = vsel %vm980, %v2119, %v2120
        %v2122 = vrot.slane %v1998, 5
        %v2123 = vrot.slane %v2122, 4
        %v2124 = vrot.slane %v1999, 5
        %v2125 = vsel %vm980, %v2123, %v2124
        %v2126 = vrot.slane %v2124, 4
        %v2127 = vrot.slane %v2000, 5
        %v2128 = vsel %vm980, %v2126, %v2127
        %v2129 = vrot.slane %v2001, 5
        %v2130 = vrot.slane %v2129, 4
        %v2131 = vrot.slane %v2002, 5
        %v2132 = vsel %vm980, %v2130, %v2131
        %v2133 = vrot.slane %v2131, 4
        %v2134 = vrot.slane %v2003, 5
        %v2135 = vsel %vm980, %v2133, %v2134
        %v2136 = vrot.slane %v2004, 5
        %v2137 = vrot.slane %v2136, 4
        %v2138 = vrot.slane %v2005, 5
        %v2139 = vsel %vm980, %v2137, %v2138
        %v2140 = vrot.slane %v2138, 4
        %v2141 = vrot.slane %v2006, 5
        %v2142 = vsel %vm980, %v2140, %v2141
        %v2143 = vrot.slane %v2007, 5
        %v2144 = vrot.slane %v2143, 4
        %v2145 = vrot.slane %v2008, 5
        %v2146 = vsel %vm980, %v2144, %v2145
        %v2147 = vrot.slane %v2145, 4
        %v2148 = vrot.slane %v2009, 5
        %v2149 = vsel %vm980, %v2147, %v2148
        %v2150 = vrot.slane %v2010, 5
        %v2151 = vrot.slane %v2150, 4
        %v2152 = vrot.slane %v2011, 5
        %v2153 = vsel %vm980, %v2151, %v2152
        %v2154 = vrot.slane %v2152, 4
        %v2155 = vrot.slane %v2012, 5
        %v2156 = vsel %vm980, %v2154, %v2155
        %v2157 = vrot.slane %v2013, 5
        %v2158 = vrot.slane %v2157, 4
        %v2159 = vrot.slane %v2014, 5
        %v2160 = vsel %vm980, %v2158, %v2159
        %v2161 = vrot.slane %v2159, 4
        %v2162 = vrot.slane %v2015, 5
        %v2163 = vsel %vm980, %v2161, %v2162
        %v2164 = vrot.slane %v2016, 5
        %v2165 = vrot.slane %v2164, 4
        %v2166 = vrot.slane %v2017, 5
        %v2167 = vsel %vm980, %v2165, %v2166
        %v2168 = vrot.slane %v2166, 4
        %v2169 = vrot.slane %v2018, 5
        %v2170 = vsel %vm980, %v2168, %v2169
        %v2171 = vrot.slane %v2019, 5
        %v2172 = vrot.slane %v2171, 4
        %v2173 = vrot.slane %v2020, 5
        %v2174 = vsel %vm980, %v2172, %v2173
        %v2175 = vrot.slane %v2173, 4
        %v2176 = vrot.slane %v2021, 5
        %v2177 = vsel %vm980, %v2175, %v2176
        %v2178 = vrot.slane %v2022, 5
        %v2179 = vrot.slane %v2178, 4
        %v2180 = vrot.slane %v2023, 5
        %v2181 = vsel %vm980, %v2179, %v2180
        %v2182 = vrot.slane %v2180, 4
        %v2183 = vrot.slane %v2024, 5
        %v2184 = vsel %vm980, %v2182, %v2183
        %2185 = vrot.lane.b32.xlu0 %v2076, 20
        %v2186 = vpop.permute.xlu0 %2185
        %2187 = vrot.lane.b32.xlu0 %v2079, 20
        %v2188 = vpop.permute.xlu0 %2187
        %2189 = vrot.lane.b32.xlu0 %v2083, 20
        %v2190 = vpop.permute.xlu0 %2189
        %2191 = vrot.lane.b32.xlu0 %v2086, 20
        %v2192 = vpop.permute.xlu0 %2191
        %2193 = vrot.lane.b32.xlu0 %v2090, 20
        %v2194 = vpop.permute.xlu0 %2193
        %2195 = vrot.lane.b32.xlu0 %v2093, 20
        %v2196 = vpop.permute.xlu0 %2195
        %2197 = vrot.lane.b32.xlu0 %v2097, 20
        %v2198 = vpop.permute.xlu0 %2197
        %2199 = vrot.lane.b32.xlu0 %v2100, 20
        %v2200 = vpop.permute.xlu0 %2199
        %2201 = vrot.lane.b32.xlu0 %v2104, 20
        %v2202 = vpop.permute.xlu0 %2201
        %2203 = vrot.lane.b32.xlu0 %v2107, 20
        %v2204 = vpop.permute.xlu0 %2203
        %2205 = vrot.lane.b32.xlu0 %v2111, 20
        %v2206 = vpop.permute.xlu0 %2205
        %2207 = vrot.lane.b32.xlu0 %v2114, 20
        %v2208 = vpop.permute.xlu0 %2207
        %2209 = vrot.lane.b32.xlu0 %v2118, 20
        %v2210 = vpop.permute.xlu0 %2209
        %2211 = vrot.lane.b32.xlu0 %v2121, 20
        %v2212 = vpop.permute.xlu0 %2211
        %2213 = vrot.lane.b32.xlu0 %v2125, 20
        %v2214 = vpop.permute.xlu0 %2213
        %2215 = vrot.lane.b32.xlu0 %v2128, 20
        %v2216 = vpop.permute.xlu0 %2215
        %2217 = vrot.lane.b32.xlu0 %v2132, 20
        %v2218 = vpop.permute.xlu0 %2217
        %2219 = vrot.lane.b32.xlu0 %v2135, 20
        %v2220 = vpop.permute.xlu0 %2219
        %2221 = vrot.lane.b32.xlu0 %v2139, 20
        %v2222 = vpop.permute.xlu0 %2221
        %2223 = vrot.lane.b32.xlu0 %v2142, 20
        %v2224 = vpop.permute.xlu0 %2223
        %2225 = vrot.lane.b32.xlu0 %v2146, 20
        %v2226 = vpop.permute.xlu0 %2225
        %2227 = vrot.lane.b32.xlu0 %v2149, 20
        %v2228 = vpop.permute.xlu0 %2227
        %2229 = vrot.lane.b32.xlu0 %v2153, 20
        %v2230 = vpop.permute.xlu0 %2229
        %2231 = vrot.lane.b32.xlu0 %v2156, 20
        %v2232 = vpop.permute.xlu0 %2231
        %2233 = vrot.lane.b32.xlu0 %v2160, 20
        %v2234 = vpop.permute.xlu0 %2233
        %2235 = vrot.lane.b32.xlu0 %v2163, 20
        %v2236 = vpop.permute.xlu0 %2235
        %2237 = vrot.lane.b32.xlu0 %v2167, 20
        %v2238 = vpop.permute.xlu0 %2237
        %2239 = vrot.lane.b32.xlu0 %v2170, 20
        %v2240 = vpop.permute.xlu0 %2239
        %2241 = vrot.lane.b32.xlu0 %v2174, 20
        %v2242 = vpop.permute.xlu0 %2241
        %2243 = vrot.lane.b32.xlu0 %v2177, 20
        %v2244 = vpop.permute.xlu0 %2243
        %2245 = vrot.lane.b32.xlu0 %v2181, 20
        %v2246 = vpop.permute.xlu0 %2245
        %2247 = vrot.lane.b32.xlu0 %v2184, 20
        %v2248 = vpop.permute.xlu0 %2247
        %vm2281 = vcmask 191648
        %2282 = vst.msk [vmem:[#allocation2] sm:$0xf] %vm2281, %v2186
        %2283 = vst.msk [vmem:[#allocation2 + $0x4] sm:$0xf] %vm2281, %v2188
        %2284 = vst.msk [vmem:[#allocation2 + $0x8] sm:$0xf] %vm2281, %v2190
        %2285 = vst.msk [vmem:[#allocation2 + $0xc] sm:$0xf] %vm2281, %v2192
        %2286 = vst.msk [vmem:[#allocation2 + $0x10] sm:$0xf] %vm2281, %v2194
        %2287 = vst.msk [vmem:[#allocation2 + $0x14] sm:$0xf] %vm2281, %v2196
        %2288 = vst.msk [vmem:[#allocation2 + $0x18] sm:$0xf] %vm2281, %v2198
        %2289 = vst.msk [vmem:[#allocation2 + $0x1c] sm:$0xf] %vm2281, %v2200
        %2290 = vst.msk [vmem:[#allocation2 + $0x20] sm:$0xf] %vm2281, %v2202
        %2291 = vst.msk [vmem:[#allocation2 + $0x24] sm:$0xf] %vm2281, %v2204
        %2292 = vst.msk [vmem:[#allocation2 + $0x28] sm:$0xf] %vm2281, %v2206
        %2293 = vst.msk [vmem:[#allocation2 + $0x2c] sm:$0xf] %vm2281, %v2208
        %2294 = vst.msk [vmem:[#allocation2 + $0x30] sm:$0xf] %vm2281, %v2210
        %2295 = vst.msk [vmem:[#allocation2 + $0x34] sm:$0xf] %vm2281, %v2212
        %2296 = vst.msk [vmem:[#allocation2 + $0x38] sm:$0xf] %vm2281, %v2214
        %2297 = vst.msk [vmem:[#allocation2 + $0x3c] sm:$0xf] %vm2281, %v2216
        %2298 = vst.msk [vmem:[#allocation2 + $0x40] sm:$0xf] %vm2281, %v2218
        %2299 = vst.msk [vmem:[#allocation2 + $0x44] sm:$0xf] %vm2281, %v2220
        %2300 = vst.msk [vmem:[#allocation2 + $0x48] sm:$0xf] %vm2281, %v2222
        %2301 = vst.msk [vmem:[#allocation2 + $0x4c] sm:$0xf] %vm2281, %v2224
        %2302 = vst.msk [vmem:[#allocation2 + $0x50] sm:$0xf] %vm2281, %v2226
        %2303 = vst.msk [vmem:[#allocation2 + $0x54] sm:$0xf] %vm2281, %v2228
        %2304 = vst.msk [vmem:[#allocation2 + $0x58] sm:$0xf] %vm2281, %v2230
        %2305 = vst.msk [vmem:[#allocation2 + $0x5c] sm:$0xf] %vm2281, %v2232
        %2306 = vst.msk [vmem:[#allocation2 + $0x60] sm:$0xf] %vm2281, %v2234
        %2307 = vst.msk [vmem:[#allocation2 + $0x64] sm:$0xf] %vm2281, %v2236
        %2308 = vst.msk [vmem:[#allocation2 + $0x68] sm:$0xf] %vm2281, %v2238
        %2309 = vst.msk [vmem:[#allocation2 + $0x6c] sm:$0xf] %vm2281, %v2240
        %2310 = vst.msk [vmem:[#allocation2 + $0x70] sm:$0xf] %vm2281, %v2242
        %2311 = vst.msk [vmem:[#allocation2 + $0x74] sm:$0xf] %vm2281, %v2244
        %2312 = vst.msk [vmem:[#allocation2 + $0x78] sm:$0xf] %vm2281, %v2246
        %2313 = vst.msk [vmem:[#allocation2 + $0x7c] sm:$0xf] %vm2281, %v2248
        %s2314 = scalar_lea.vmem %s250, 24
        %v2315 = vld [vmem:[%s2314] sm:$0xf]
        %v2316 = vld [vmem:[%s2314 + $0x4] sm:$0xf]
        %v2317 = vld [vmem:[%s2314 + $0xc] sm:$0xf]
        %v2318 = vld [vmem:[%s2314 + $0x10] sm:$0xf]
        %v2319 = vld [vmem:[%s2314 + $0x18] sm:$0xf]
        %v2320 = vld [vmem:[%s2314 + $0x1c] sm:$0xf]
        %v2321 = vld [vmem:[%s2314 + $0x24] sm:$0xf]
        %v2322 = vld [vmem:[%s2314 + $0x28] sm:$0xf]
        %v2323 = vld [vmem:[%s2314 + $0x30] sm:$0xf]
        %v2324 = vld [vmem:[%s2314 + $0x34] sm:$0xf]
        %v2325 = vld [vmem:[%s2314 + $0x3c] sm:$0xf]
        %v2326 = vld [vmem:[%s2314 + $0x40] sm:$0xf]
        %v2327 = vld [vmem:[%s2314 + $0x48] sm:$0xf]
        %v2328 = vld [vmem:[%s2314 + $0x4c] sm:$0xf]
        %v2329 = vld [vmem:[%s2314 + $0x54] sm:$0xf]
        %v2330 = vld [vmem:[%s2314 + $0x58] sm:$0xf]
        %v2331 = vld [vmem:[%s2314 + $0x60] sm:$0xf]
        %v2332 = vld [vmem:[%s2314 + $0x64] sm:$0xf]
        %v2333 = vld [vmem:[%s2314 + $0x6c] sm:$0xf]
        %v2334 = vld [vmem:[%s2314 + $0x70] sm:$0xf]
        %v2335 = vld [vmem:[%s2314 + $0x78] sm:$0xf]
        %v2336 = vld [vmem:[%s2314 + $0x7c] sm:$0xf]
        %v2337 = vld [vmem:[%s2314 + $0x84] sm:$0xf]
        %v2338 = vld [vmem:[%s2314 + $0x88] sm:$0xf]
        %v2339 = vld [vmem:[%s2314 + $0x90] sm:$0xf]
        %v2340 = vld [vmem:[%s2314 + $0x94] sm:$0xf]
        %v2341 = vld [vmem:[%s2314 + $0x9c] sm:$0xf]
        %v2342 = vld [vmem:[%s2314 + $0xa0] sm:$0xf]
        %v2343 = vld [vmem:[%s2314 + $0xa8] sm:$0xf]
        %v2344 = vld [vmem:[%s2314 + $0xac] sm:$0xf]
        %v2345 = vld [vmem:[%s2314 + $0xb4] sm:$0xf]
        %v2346 = vld [vmem:[%s2314 + $0xb8] sm:$0xf]
        %2379 = vrot.lane.b32.xlu0 %v2315, 24
        %v2380 = vpop.permute.xlu0 %2379
        %2381 = vrot.lane.b32.xlu0 %v2316, 24
        %v2382 = vpop.permute.xlu0 %2381
        %2383 = vrot.lane.b32.xlu0 %v2317, 24
        %v2384 = vpop.permute.xlu0 %2383
        %2385 = vrot.lane.b32.xlu0 %v2318, 24
        %v2386 = vpop.permute.xlu0 %2385
        %2387 = vrot.lane.b32.xlu0 %v2319, 24
        %v2388 = vpop.permute.xlu0 %2387
        %2389 = vrot.lane.b32.xlu0 %v2320, 24
        %v2390 = vpop.permute.xlu0 %2389
        %2391 = vrot.lane.b32.xlu0 %v2321, 24
        %v2392 = vpop.permute.xlu0 %2391
        %2393 = vrot.lane.b32.xlu0 %v2322, 24
        %v2394 = vpop.permute.xlu0 %2393
        %2395 = vrot.lane.b32.xlu0 %v2323, 24
        %v2396 = vpop.permute.xlu0 %2395
        %2397 = vrot.lane.b32.xlu0 %v2324, 24
        %v2398 = vpop.permute.xlu0 %2397
        %2399 = vrot.lane.b32.xlu0 %v2325, 24
        %v2400 = vpop.permute.xlu0 %2399
        %2401 = vrot.lane.b32.xlu0 %v2326, 24
        %v2402 = vpop.permute.xlu0 %2401
        %2403 = vrot.lane.b32.xlu0 %v2327, 24
        %v2404 = vpop.permute.xlu0 %2403
        %2405 = vrot.lane.b32.xlu0 %v2328, 24
        %v2406 = vpop.permute.xlu0 %2405
        %2407 = vrot.lane.b32.xlu0 %v2329, 24
        %v2408 = vpop.permute.xlu0 %2407
        %2409 = vrot.lane.b32.xlu0 %v2330, 24
        %v2410 = vpop.permute.xlu0 %2409
        %2411 = vrot.lane.b32.xlu0 %v2331, 24
        %v2412 = vpop.permute.xlu0 %2411
        %2413 = vrot.lane.b32.xlu0 %v2332, 24
        %v2414 = vpop.permute.xlu0 %2413
        %2415 = vrot.lane.b32.xlu0 %v2333, 24
        %v2416 = vpop.permute.xlu0 %2415
        %2417 = vrot.lane.b32.xlu0 %v2334, 24
        %v2418 = vpop.permute.xlu0 %2417
        %2419 = vrot.lane.b32.xlu0 %v2335, 24
        %v2420 = vpop.permute.xlu0 %2419
        %2421 = vrot.lane.b32.xlu0 %v2336, 24
        %v2422 = vpop.permute.xlu0 %2421
        %2423 = vrot.lane.b32.xlu0 %v2337, 24
        %v2424 = vpop.permute.xlu0 %2423
        %2425 = vrot.lane.b32.xlu0 %v2338, 24
        %v2426 = vpop.permute.xlu0 %2425
        %2427 = vrot.lane.b32.xlu0 %v2339, 24
        %v2428 = vpop.permute.xlu0 %2427
        %2429 = vrot.lane.b32.xlu0 %v2340, 24
        %v2430 = vpop.permute.xlu0 %2429
        %2431 = vrot.lane.b32.xlu0 %v2341, 24
        %v2432 = vpop.permute.xlu0 %2431
        %2433 = vrot.lane.b32.xlu0 %v2342, 24
        %v2434 = vpop.permute.xlu0 %2433
        %2435 = vrot.lane.b32.xlu0 %v2343, 24
        %v2436 = vpop.permute.xlu0 %2435
        %2437 = vrot.lane.b32.xlu0 %v2344, 24
        %v2438 = vpop.permute.xlu0 %2437
        %2439 = vrot.lane.b32.xlu0 %v2345, 24
        %v2440 = vpop.permute.xlu0 %2439
        %2441 = vrot.lane.b32.xlu0 %v2346, 24
        %v2442 = vpop.permute.xlu0 %2441
        %vm2475 = vcmask 224448
        %2476 = vst.msk [vmem:[#allocation2] sm:$0xf] %vm2475, %v2380
        %2477 = vst.msk [vmem:[#allocation2 + $0x4] sm:$0xf] %vm2475, %v2382
        %2478 = vst.msk [vmem:[#allocation2 + $0x8] sm:$0xf] %vm2475, %v2384
        %2479 = vst.msk [vmem:[#allocation2 + $0xc] sm:$0xf] %vm2475, %v2386
        %2480 = vst.msk [vmem:[#allocation2 + $0x10] sm:$0xf] %vm2475, %v2388
        %2481 = vst.msk [vmem:[#allocation2 + $0x14] sm:$0xf] %vm2475, %v2390
        %2482 = vst.msk [vmem:[#allocation2 + $0x18] sm:$0xf] %vm2475, %v2392
        %2483 = vst.msk [vmem:[#allocation2 + $0x1c] sm:$0xf] %vm2475, %v2394
        %2484 = vst.msk [vmem:[#allocation2 + $0x20] sm:$0xf] %vm2475, %v2396
        %2485 = vst.msk [vmem:[#allocation2 + $0x24] sm:$0xf] %vm2475, %v2398
        %2486 = vst.msk [vmem:[#allocation2 + $0x28] sm:$0xf] %vm2475, %v2400
        %2487 = vst.msk [vmem:[#allocation2 + $0x2c] sm:$0xf] %vm2475, %v2402
        %2488 = vst.msk [vmem:[#allocation2 + $0x30] sm:$0xf] %vm2475, %v2404
        %2489 = vst.msk [vmem:[#allocation2 + $0x34] sm:$0xf] %vm2475, %v2406
        %2490 = vst.msk [vmem:[#allocation2 + $0x38] sm:$0xf] %vm2475, %v2408
        %2491 = vst.msk [vmem:[#allocation2 + $0x3c] sm:$0xf] %vm2475, %v2410
        %2492 = vst.msk [vmem:[#allocation2 + $0x40] sm:$0xf] %vm2475, %v2412
        %2493 = vst.msk [vmem:[#allocation2 + $0x44] sm:$0xf] %vm2475, %v2414
        %2494 = vst.msk [vmem:[#allocation2 + $0x48] sm:$0xf] %vm2475, %v2416
        %2495 = vst.msk [vmem:[#allocation2 + $0x4c] sm:$0xf] %vm2475, %v2418
        %2496 = vst.msk [vmem:[#allocation2 + $0x50] sm:$0xf] %vm2475, %v2420
        %2497 = vst.msk [vmem:[#allocation2 + $0x54] sm:$0xf] %vm2475, %v2422
        %2498 = vst.msk [vmem:[#allocation2 + $0x58] sm:$0xf] %vm2475, %v2424
        %2499 = vst.msk [vmem:[#allocation2 + $0x5c] sm:$0xf] %vm2475, %v2426
        %2500 = vst.msk [vmem:[#allocation2 + $0x60] sm:$0xf] %vm2475, %v2428
        %2501 = vst.msk [vmem:[#allocation2 + $0x64] sm:$0xf] %vm2475, %v2430
        %2502 = vst.msk [vmem:[#allocation2 + $0x68] sm:$0xf] %vm2475, %v2432
        %2503 = vst.msk [vmem:[#allocation2 + $0x6c] sm:$0xf] %vm2475, %v2434
        %2504 = vst.msk [vmem:[#allocation2 + $0x70] sm:$0xf] %vm2475, %v2436
        %2505 = vst.msk [vmem:[#allocation2 + $0x74] sm:$0xf] %vm2475, %v2438
        %2506 = vst.msk [vmem:[#allocation2 + $0x78] sm:$0xf] %vm2475, %v2440
        %2507 = vst.msk [vmem:[#allocation2 + $0x7c] sm:$0xf] %vm2475, %v2442
        %v2508 = vld [vmem:[%s2314] sm:$0xf]
        %v2509 = vld [vmem:[%s2314 + $0x4] sm:$0xf]
        %v2510 = vld [vmem:[%s2314 + $0x8] sm:$0x1]
        %v2511 = vld [vmem:[%s2314 + $0xc] sm:$0xf]
        %v2512 = vld [vmem:[%s2314 + $0x10] sm:$0xf]
        %v2513 = vld [vmem:[%s2314 + $0x14] sm:$0x1]
        %v2514 = vld [vmem:[%s2314 + $0x18] sm:$0xf]
        %v2515 = vld [vmem:[%s2314 + $0x1c] sm:$0xf]
        %v2516 = vld [vmem:[%s2314 + $0x20] sm:$0x1]
        %v2517 = vld [vmem:[%s2314 + $0x24] sm:$0xf]
        %v2518 = vld [vmem:[%s2314 + $0x28] sm:$0xf]
        %v2519 = vld [vmem:[%s2314 + $0x2c] sm:$0x1]
        %v2520 = vld [vmem:[%s2314 + $0x30] sm:$0xf]
        %v2521 = vld [vmem:[%s2314 + $0x34] sm:$0xf]
        %v2522 = vld [vmem:[%s2314 + $0x38] sm:$0x1]
        %v2523 = vld [vmem:[%s2314 + $0x3c] sm:$0xf]
        %v2524 = vld [vmem:[%s2314 + $0x40] sm:$0xf]
        %v2525 = vld [vmem:[%s2314 + $0x44] sm:$0x1]
        %v2526 = vld [vmem:[%s2314 + $0x48] sm:$0xf]
        %v2527 = vld [vmem:[%s2314 + $0x4c] sm:$0xf]
        %v2528 = vld [vmem:[%s2314 + $0x50] sm:$0x1]
        %v2529 = vld [vmem:[%s2314 + $0x54] sm:$0xf]
        %v2530 = vld [vmem:[%s2314 + $0x58] sm:$0xf]
        %v2531 = vld [vmem:[%s2314 + $0x5c] sm:$0x1]
        %v2532 = vld [vmem:[%s2314 + $0x60] sm:$0xf]
        %v2533 = vld [vmem:[%s2314 + $0x64] sm:$0xf]
        %v2534 = vld [vmem:[%s2314 + $0x68] sm:$0x1]
        %v2535 = vld [vmem:[%s2314 + $0x6c] sm:$0xf]
        %v2536 = vld [vmem:[%s2314 + $0x70] sm:$0xf]
        %v2537 = vld [vmem:[%s2314 + $0x74] sm:$0x1]
        %v2538 = vld [vmem:[%s2314 + $0x78] sm:$0xf]
        %v2539 = vld [vmem:[%s2314 + $0x7c] sm:$0xf]
        %v2540 = vld [vmem:[%s2314 + $0x80] sm:$0x1]
        %v2541 = vld [vmem:[%s2314 + $0x84] sm:$0xf]
        %v2542 = vld [vmem:[%s2314 + $0x88] sm:$0xf]
        %v2543 = vld [vmem:[%s2314 + $0x8c] sm:$0x1]
        %v2544 = vld [vmem:[%s2314 + $0x90] sm:$0xf]
        %v2545 = vld [vmem:[%s2314 + $0x94] sm:$0xf]
        %v2546 = vld [vmem:[%s2314 + $0x98] sm:$0x1]
        %v2547 = vld [vmem:[%s2314 + $0x9c] sm:$0xf]
        %v2548 = vld [vmem:[%s2314 + $0xa0] sm:$0xf]
        %v2549 = vld [vmem:[%s2314 + $0xa4] sm:$0x1]
        %v2550 = vld [vmem:[%s2314 + $0xa8] sm:$0xf]
        %v2551 = vld [vmem:[%s2314 + $0xac] sm:$0xf]
        %v2552 = vld [vmem:[%s2314 + $0xb0] sm:$0x1]
        %v2553 = vld [vmem:[%s2314 + $0xb4] sm:$0xf]
        %v2554 = vld [vmem:[%s2314 + $0xb8] sm:$0xf]
        %v2555 = vld [vmem:[%s2314 + $0xbc] sm:$0x1]
        %v2557 = vshrl.u32 %v2508, 16
        %v2559 = vrot.slane %v2557, 4
        %v2560 = vshll.u32 %v2508, 16
        %v2562 = vrot.slane %v2560, 5
        %v2563 = vor.u32 %v2559, %v2562
        %v2564 = vrot.slane %v2563, 4
        %v2566 = vshll.u32 %v2509, 16
        %v2568 = vrot.slane %v2566, 5
        %v2569 = vsel %vm368, %v2564, %v2568
        %v2570 = vshrl.u32 %v2509, 16
        %v2572 = vrot.slane %v2570, 4
        %v2573 = vor.u32 %v2572, %v2568
        %v2574 = vrot.slane %v2573, 4
        %v2576 = vshll.u32 %v2510, 16
        %v2578 = vrot.slane %v2576, 5
        %v2579 = vsel %vm368, %v2574, %v2578
        %v2581 = vshrl.u32 %v2511, 16
        %v2583 = vrot.slane %v2581, 4
        %v2584 = vshll.u32 %v2511, 16
        %v2586 = vrot.slane %v2584, 5
        %v2587 = vor.u32 %v2583, %v2586
        %v2588 = vrot.slane %v2587, 4
        %v2590 = vshll.u32 %v2512, 16
        %v2592 = vrot.slane %v2590, 5
        %v2593 = vsel %vm368, %v2588, %v2592
        %v2594 = vshrl.u32 %v2512, 16
        %v2596 = vrot.slane %v2594, 4
        %v2597 = vor.u32 %v2596, %v2592
        %v2598 = vrot.slane %v2597, 4
        %v2600 = vshll.u32 %v2513, 16
        %v2602 = vrot.slane %v2600, 5
        %v2603 = vsel %vm368, %v2598, %v2602
        %v2605 = vshrl.u32 %v2514, 16
        %v2607 = vrot.slane %v2605, 4
        %v2608 = vshll.u32 %v2514, 16
        %v2610 = vrot.slane %v2608, 5
        %v2611 = vor.u32 %v2607, %v2610
        %v2612 = vrot.slane %v2611, 4
        %v2614 = vshll.u32 %v2515, 16
        %v2616 = vrot.slane %v2614, 5
        %v2617 = vsel %vm368, %v2612, %v2616
        %v2618 = vshrl.u32 %v2515, 16
        %v2620 = vrot.slane %v2618, 4
        %v2621 = vor.u32 %v2620, %v2616
        %v2622 = vrot.slane %v2621, 4
        %v2624 = vshll.u32 %v2516, 16
        %v2626 = vrot.slane %v2624, 5
        %v2627 = vsel %vm368, %v2622, %v2626
        %v2629 = vshrl.u32 %v2517, 16
        %v2631 = vrot.slane %v2629, 4
        %v2632 = vshll.u32 %v2517, 16
        %v2634 = vrot.slane %v2632, 5
        %v2635 = vor.u32 %v2631, %v2634
        %v2636 = vrot.slane %v2635, 4
        %v2638 = vshll.u32 %v2518, 16
        %v2640 = vrot.slane %v2638, 5
        %v2641 = vsel %vm368, %v2636, %v2640
        %v2642 = vshrl.u32 %v2518, 16
        %v2644 = vrot.slane %v2642, 4
        %v2645 = vor.u32 %v2644, %v2640
        %v2646 = vrot.slane %v2645, 4
        %v2648 = vshll.u32 %v2519, 16
        %v2650 = vrot.slane %v2648, 5
        %v2651 = vsel %vm368, %v2646, %v2650
        %v2653 = vshrl.u32 %v2520, 16
        %v2655 = vrot.slane %v2653, 4
        %v2656 = vshll.u32 %v2520, 16
        %v2658 = vrot.slane %v2656, 5
        %v2659 = vor.u32 %v2655, %v2658
        %v2660 = vrot.slane %v2659, 4
        %v2662 = vshll.u32 %v2521, 16
        %v2664 = vrot.slane %v2662, 5
        %v2665 = vsel %vm368, %v2660, %v2664
        %v2666 = vshrl.u32 %v2521, 16
        %v2668 = vrot.slane %v2666, 4
        %v2669 = vor.u32 %v2668, %v2664
        %v2670 = vrot.slane %v2669, 4
        %v2672 = vshll.u32 %v2522, 16
        %v2674 = vrot.slane %v2672, 5
        %v2675 = vsel %vm368, %v2670, %v2674
        %v2677 = vshrl.u32 %v2523, 16
        %v2679 = vrot.slane %v2677, 4
        %v2680 = vshll.u32 %v2523, 16
        %v2682 = vrot.slane %v2680, 5
        %v2683 = vor.u32 %v2679, %v2682
        %v2684 = vrot.slane %v2683, 4
        %v2686 = vshll.u32 %v2524, 16
        %v2688 = vrot.slane %v2686, 5
        %v2689 = vsel %vm368, %v2684, %v2688
        %v2690 = vshrl.u32 %v2524, 16
        %v2692 = vrot.slane %v2690, 4
        %v2693 = vor.u32 %v2692, %v2688
        %v2694 = vrot.slane %v2693, 4
        %v2696 = vshll.u32 %v2525, 16
        %v2698 = vrot.slane %v2696, 5
        %v2699 = vsel %vm368, %v2694, %v2698
        %v2701 = vshrl.u32 %v2526, 16
        %v2703 = vrot.slane %v2701, 4
        %v2704 = vshll.u32 %v2526, 16
        %v2706 = vrot.slane %v2704, 5
        %v2707 = vor.u32 %v2703, %v2706
        %v2708 = vrot.slane %v2707, 4
        %v2710 = vshll.u32 %v2527, 16
        %v2712 = vrot.slane %v2710, 5
        %v2713 = vsel %vm368, %v2708, %v2712
        %v2714 = vshrl.u32 %v2527, 16
        %v2716 = vrot.slane %v2714, 4
        %v2717 = vor.u32 %v2716, %v2712
        %v2718 = vrot.slane %v2717, 4
        %v2720 = vshll.u32 %v2528, 16
        %v2722 = vrot.slane %v2720, 5
        %v2723 = vsel %vm368, %v2718, %v2722
        %v2725 = vshrl.u32 %v2529, 16
        %v2727 = vrot.slane %v2725, 4
        %v2728 = vshll.u32 %v2529, 16
        %v2730 = vrot.slane %v2728, 5
        %v2731 = vor.u32 %v2727, %v2730
        %v2732 = vrot.slane %v2731, 4
        %v2734 = vshll.u32 %v2530, 16
        %v2736 = vrot.slane %v2734, 5
        %v2737 = vsel %vm368, %v2732, %v2736
        %v2738 = vshrl.u32 %v2530, 16
        %v2740 = vrot.slane %v2738, 4
        %v2741 = vor.u32 %v2740, %v2736
        %v2742 = vrot.slane %v2741, 4
        %v2744 = vshll.u32 %v2531, 16
        %v2746 = vrot.slane %v2744, 5
        %v2747 = vsel %vm368, %v2742, %v2746
        %v2749 = vshrl.u32 %v2532, 16
        %v2751 = vrot.slane %v2749, 4
        %v2752 = vshll.u32 %v2532, 16
        %v2754 = vrot.slane %v2752, 5
        %v2755 = vor.u32 %v2751, %v2754
        %v2756 = vrot.slane %v2755, 4
        %v2758 = vshll.u32 %v2533, 16
        %v2760 = vrot.slane %v2758, 5
        %v2761 = vsel %vm368, %v2756, %v2760
        %v2762 = vshrl.u32 %v2533, 16
        %v2764 = vrot.slane %v2762, 4
        %v2765 = vor.u32 %v2764, %v2760
        %v2766 = vrot.slane %v2765, 4
        %v2768 = vshll.u32 %v2534, 16
        %v2770 = vrot.slane %v2768, 5
        %v2771 = vsel %vm368, %v2766, %v2770
        %v2773 = vshrl.u32 %v2535, 16
        %v2775 = vrot.slane %v2773, 4
        %v2776 = vshll.u32 %v2535, 16
        %v2778 = vrot.slane %v2776, 5
        %v2779 = vor.u32 %v2775, %v2778
        %v2780 = vrot.slane %v2779, 4
        %v2782 = vshll.u32 %v2536, 16
        %v2784 = vrot.slane %v2782, 5
        %v2785 = vsel %vm368, %v2780, %v2784
        %v2786 = vshrl.u32 %v2536, 16
        %v2788 = vrot.slane %v2786, 4
        %v2789 = vor.u32 %v2788, %v2784
        %v2790 = vrot.slane %v2789, 4
        %v2792 = vshll.u32 %v2537, 16
        %v2794 = vrot.slane %v2792, 5
        %v2795 = vsel %vm368, %v2790, %v2794
        %v2797 = vshrl.u32 %v2538, 16
        %v2799 = vrot.slane %v2797, 4
        %v2800 = vshll.u32 %v2538, 16
        %v2802 = vrot.slane %v2800, 5
        %v2803 = vor.u32 %v2799, %v2802
        %v2804 = vrot.slane %v2803, 4
        %v2806 = vshll.u32 %v2539, 16
        %v2808 = vrot.slane %v2806, 5
        %v2809 = vsel %vm368, %v2804, %v2808
        %v2810 = vshrl.u32 %v2539, 16
        %v2812 = vrot.slane %v2810, 4
        %v2813 = vor.u32 %v2812, %v2808
        %v2814 = vrot.slane %v2813, 4
        %v2816 = vshll.u32 %v2540, 16
        %v2818 = vrot.slane %v2816, 5
        %v2819 = vsel %vm368, %v2814, %v2818
        %v2821 = vshrl.u32 %v2541, 16
        %v2823 = vrot.slane %v2821, 4
        %v2824 = vshll.u32 %v2541, 16
        %v2826 = vrot.slane %v2824, 5
        %v2827 = vor.u32 %v2823, %v2826
        %v2828 = vrot.slane %v2827, 4
        %v2830 = vshll.u32 %v2542, 16
        %v2832 = vrot.slane %v2830, 5
        %v2833 = vsel %vm368, %v2828, %v2832
        %v2834 = vshrl.u32 %v2542, 16
        %v2836 = vrot.slane %v2834, 4
        %v2837 = vor.u32 %v2836, %v2832
        %v2838 = vrot.slane %v2837, 4
        %v2840 = vshll.u32 %v2543, 16
        %v2842 = vrot.slane %v2840, 5
        %v2843 = vsel %vm368, %v2838, %v2842
        %v2845 = vshrl.u32 %v2544, 16
        %v2847 = vrot.slane %v2845, 4
        %v2848 = vshll.u32 %v2544, 16
        %v2850 = vrot.slane %v2848, 5
        %v2851 = vor.u32 %v2847, %v2850
        %v2852 = vrot.slane %v2851, 4
        %v2854 = vshll.u32 %v2545, 16
        %v2856 = vrot.slane %v2854, 5
        %v2857 = vsel %vm368, %v2852, %v2856
        %v2858 = vshrl.u32 %v2545, 16
        %v2860 = vrot.slane %v2858, 4
        %v2861 = vor.u32 %v2860, %v2856
        %v2862 = vrot.slane %v2861, 4
        %v2864 = vshll.u32 %v2546, 16
        %v2866 = vrot.slane %v2864, 5
        %v2867 = vsel %vm368, %v2862, %v2866
        %v2869 = vshrl.u32 %v2547, 16
        %v2871 = vrot.slane %v2869, 4
        %v2872 = vshll.u32 %v2547, 16
        %v2874 = vrot.slane %v2872, 5
        %v2875 = vor.u32 %v2871, %v2874
        %v2876 = vrot.slane %v2875, 4
        %v2878 = vshll.u32 %v2548, 16
        %v2880 = vrot.slane %v2878, 5
        %v2881 = vsel %vm368, %v2876, %v2880
        %v2882 = vshrl.u32 %v2548, 16
        %v2884 = vrot.slane %v2882, 4
        %v2885 = vor.u32 %v2884, %v2880
        %v2886 = vrot.slane %v2885, 4
        %v2888 = vshll.u32 %v2549, 16
        %v2890 = vrot.slane %v2888, 5
        %v2891 = vsel %vm368, %v2886, %v2890
        %v2893 = vshrl.u32 %v2550, 16
        %v2895 = vrot.slane %v2893, 4
        %v2896 = vshll.u32 %v2550, 16
        %v2898 = vrot.slane %v2896, 5
        %v2899 = vor.u32 %v2895, %v2898
        %v2900 = vrot.slane %v2899, 4
        %v2902 = vshll.u32 %v2551, 16
        %v2904 = vrot.slane %v2902, 5
        %v2905 = vsel %vm368, %v2900, %v2904
        %v2906 = vshrl.u32 %v2551, 16
        %v2908 = vrot.slane %v2906, 4
        %v2909 = vor.u32 %v2908, %v2904
        %v2910 = vrot.slane %v2909, 4
        %v2912 = vshll.u32 %v2552, 16
        %v2914 = vrot.slane %v2912, 5
        %v2915 = vsel %vm368, %v2910, %v2914
        %v2917 = vshrl.u32 %v2553, 16
        %v2919 = vrot.slane %v2917, 4
        %v2920 = vshll.u32 %v2553, 16
        %v2922 = vrot.slane %v2920, 5
        %v2923 = vor.u32 %v2919, %v2922
        %v2924 = vrot.slane %v2923, 4
        %v2926 = vshll.u32 %v2554, 16
        %v2928 = vrot.slane %v2926, 5
        %v2929 = vsel %vm368, %v2924, %v2928
        %v2930 = vshrl.u32 %v2554, 16
        %v2932 = vrot.slane %v2930, 4
        %v2933 = vor.u32 %v2932, %v2928
        %v2934 = vrot.slane %v2933, 4
        %v2936 = vshll.u32 %v2555, 16
        %v2938 = vrot.slane %v2936, 5
        %v2939 = vsel %vm368, %v2934, %v2938
        %2940 = vrot.lane.b32.xlu0 %v2569, 28
        %v2941 = vpop.permute.xlu0 %2940
        %2942 = vrot.lane.b32.xlu0 %v2579, 28
        %v2943 = vpop.permute.xlu0 %2942
        %2944 = vrot.lane.b32.xlu0 %v2593, 28
        %v2945 = vpop.permute.xlu0 %2944
        %2946 = vrot.lane.b32.xlu0 %v2603, 28
        %v2947 = vpop.permute.xlu0 %2946
        %2948 = vrot.lane.b32.xlu0 %v2617, 28
        %v2949 = vpop.permute.xlu0 %2948
        %2950 = vrot.lane.b32.xlu0 %v2627, 28
        %v2951 = vpop.permute.xlu0 %2950
        %2952 = vrot.lane.b32.xlu0 %v2641, 28
        %v2953 = vpop.permute.xlu0 %2952
        %2954 = vrot.lane.b32.xlu0 %v2651, 28
        %v2955 = vpop.permute.xlu0 %2954
        %2956 = vrot.lane.b32.xlu0 %v2665, 28
        %v2957 = vpop.permute.xlu0 %2956
        %2958 = vrot.lane.b32.xlu0 %v2675, 28
        %v2959 = vpop.permute.xlu0 %2958
        %2960 = vrot.lane.b32.xlu0 %v2689, 28
        %v2961 = vpop.permute.xlu0 %2960
        %2962 = vrot.lane.b32.xlu0 %v2699, 28
        %v2963 = vpop.permute.xlu0 %2962
        %2964 = vrot.lane.b32.xlu0 %v2713, 28
        %v2965 = vpop.permute.xlu0 %2964
        %2966 = vrot.lane.b32.xlu0 %v2723, 28
        %v2967 = vpop.permute.xlu0 %2966
        %2968 = vrot.lane.b32.xlu0 %v2737, 28
        %v2969 = vpop.permute.xlu0 %2968
        %2970 = vrot.lane.b32.xlu0 %v2747, 28
        %v2971 = vpop.permute.xlu0 %2970
        %2972 = vrot.lane.b32.xlu0 %v2761, 28
        %v2973 = vpop.permute.xlu0 %2972
        %2974 = vrot.lane.b32.xlu0 %v2771, 28
        %v2975 = vpop.permute.xlu0 %2974
        %2976 = vrot.lane.b32.xlu0 %v2785, 28
        %v2977 = vpop.permute.xlu0 %2976
        %2978 = vrot.lane.b32.xlu0 %v2795, 28
        %v2979 = vpop.permute.xlu0 %2978
        %2980 = vrot.lane.b32.xlu0 %v2809, 28
        %v2981 = vpop.permute.xlu0 %2980
        %2982 = vrot.lane.b32.xlu0 %v2819, 28
        %v2983 = vpop.permute.xlu0 %2982
        %2984 = vrot.lane.b32.xlu0 %v2833, 28
        %v2985 = vpop.permute.xlu0 %2984
        %2986 = vrot.lane.b32.xlu0 %v2843, 28
        %v2987 = vpop.permute.xlu0 %2986
        %2988 = vrot.lane.b32.xlu0 %v2857, 28
        %v2989 = vpop.permute.xlu0 %2988
        %2990 = vrot.lane.b32.xlu0 %v2867, 28
        %v2991 = vpop.permute.xlu0 %2990
        %2992 = vrot.lane.b32.xlu0 %v2881, 28
        %v2993 = vpop.permute.xlu0 %2992
        %2994 = vrot.lane.b32.xlu0 %v2891, 28
        %v2995 = vpop.permute.xlu0 %2994
        %2996 = vrot.lane.b32.xlu0 %v2905, 28
        %v2997 = vpop.permute.xlu0 %2996
        %2998 = vrot.lane.b32.xlu0 %v2915, 28
        %v2999 = vpop.permute.xlu0 %2998
        %3000 = vrot.lane.b32.xlu0 %v2929, 28
        %v3001 = vpop.permute.xlu0 %3000
        %3002 = vrot.lane.b32.xlu0 %v2939, 28
        %v3003 = vpop.permute.xlu0 %3002
        %vm3036 = vcmask 257248
        %3037 = vst.msk [vmem:[#allocation2] sm:$0xf] %vm3036, %v2941
        %3038 = vst.msk [vmem:[#allocation2 + $0x4] sm:$0xf] %vm3036, %v2943
        %3039 = vst.msk [vmem:[#allocation2 + $0x8] sm:$0xf] %vm3036, %v2945
        %3040 = vst.msk [vmem:[#allocation2 + $0xc] sm:$0xf] %vm3036, %v2947
        %3041 = vst.msk [vmem:[#allocation2 + $0x10] sm:$0xf] %vm3036, %v2949
        %3042 = vst.msk [vmem:[#allocation2 + $0x14] sm:$0xf] %vm3036, %v2951
        %3043 = vst.msk [vmem:[#allocation2 + $0x18] sm:$0xf] %vm3036, %v2953
        %3044 = vst.msk [vmem:[#allocation2 + $0x1c] sm:$0xf] %vm3036, %v2955
        %3045 = vst.msk [vmem:[#allocation2 + $0x20] sm:$0xf] %vm3036, %v2957
        %3046 = vst.msk [vmem:[#allocation2 + $0x24] sm:$0xf] %vm3036, %v2959
        %3047 = vst.msk [vmem:[#allocation2 + $0x28] sm:$0xf] %vm3036, %v2961
        %3048 = vst.msk [vmem:[#allocation2 + $0x2c] sm:$0xf] %vm3036, %v2963
        %3049 = vst.msk [vmem:[#allocation2 + $0x30] sm:$0xf] %vm3036, %v2965
        %3050 = vst.msk [vmem:[#allocation2 + $0x34] sm:$0xf] %vm3036, %v2967
        %3051 = vst.msk [vmem:[#allocation2 + $0x38] sm:$0xf] %vm3036, %v2969
        %3052 = vst.msk [vmem:[#allocation2 + $0x3c] sm:$0xf] %vm3036, %v2971
        %3053 = vst.msk [vmem:[#allocation2 + $0x40] sm:$0xf] %vm3036, %v2973
        %3054 = vst.msk [vmem:[#allocation2 + $0x44] sm:$0xf] %vm3036, %v2975
        %3055 = vst.msk [vmem:[#allocation2 + $0x48] sm:$0xf] %vm3036, %v2977
        %3056 = vst.msk [vmem:[#allocation2 + $0x4c] sm:$0xf] %vm3036, %v2979
        %3057 = vst.msk [vmem:[#allocation2 + $0x50] sm:$0xf] %vm3036, %v2981
        %3058 = vst.msk [vmem:[#allocation2 + $0x54] sm:$0xf] %vm3036, %v2983
        %3059 = vst.msk [vmem:[#allocation2 + $0x58] sm:$0xf] %vm3036, %v2985
        %3060 = vst.msk [vmem:[#allocation2 + $0x5c] sm:$0xf] %vm3036, %v2987
        %3061 = vst.msk [vmem:[#allocation2 + $0x60] sm:$0xf] %vm3036, %v2989
        %3062 = vst.msk [vmem:[#allocation2 + $0x64] sm:$0xf] %vm3036, %v2991
        %3063 = vst.msk [vmem:[#allocation2 + $0x68] sm:$0xf] %vm3036, %v2993
        %3064 = vst.msk [vmem:[#allocation2 + $0x6c] sm:$0xf] %vm3036, %v2995
        %3065 = vst.msk [vmem:[#allocation2 + $0x70] sm:$0xf] %vm3036, %v2997
        %3066 = vst.msk [vmem:[#allocation2 + $0x74] sm:$0xf] %vm3036, %v2999
        %3067 = vst.msk [vmem:[#allocation2 + $0x78] sm:$0xf] %vm3036, %v3001
        %3068 = vst.msk [vmem:[#allocation2 + $0x7c] sm:$0xf] %vm3036, %v3003
        %v3069 = vld [vmem:[%s2314] sm:$0xe]
        %v3070 = vld [vmem:[%s2314 + $0x4] sm:$0xf]
        %v3071 = vld [vmem:[%s2314 + $0x8] sm:$0x1]
        %v3072 = vld [vmem:[%s2314 + $0xc] sm:$0xe]
        %v3073 = vld [vmem:[%s2314 + $0x10] sm:$0xf]
        %v3074 = vld [vmem:[%s2314 + $0x14] sm:$0x1]
        %v3075 = vld [vmem:[%s2314 + $0x18] sm:$0xe]
        %v3076 = vld [vmem:[%s2314 + $0x1c] sm:$0xf]
        %v3077 = vld [vmem:[%s2314 + $0x20] sm:$0x1]
        %v3078 = vld [vmem:[%s2314 + $0x24] sm:$0xe]
        %v3079 = vld [vmem:[%s2314 + $0x28] sm:$0xf]
        %v3080 = vld [vmem:[%s2314 + $0x2c] sm:$0x1]
        %v3081 = vld [vmem:[%s2314 + $0x30] sm:$0xe]
        %v3082 = vld [vmem:[%s2314 + $0x34] sm:$0xf]
        %v3083 = vld [vmem:[%s2314 + $0x38] sm:$0x1]
        %v3084 = vld [vmem:[%s2314 + $0x3c] sm:$0xe]
        %v3085 = vld [vmem:[%s2314 + $0x40] sm:$0xf]
        %v3086 = vld [vmem:[%s2314 + $0x44] sm:$0x1]
        %v3087 = vld [vmem:[%s2314 + $0x48] sm:$0xe]
        %v3088 = vld [vmem:[%s2314 + $0x4c] sm:$0xf]
        %v3089 = vld [vmem:[%s2314 + $0x50] sm:$0x1]
        %v3090 = vld [vmem:[%s2314 + $0x54] sm:$0xe]
        %v3091 = vld [vmem:[%s2314 + $0x58] sm:$0xf]
        %v3092 = vld [vmem:[%s2314 + $0x5c] sm:$0x1]
        %v3093 = vld [vmem:[%s2314 + $0x60] sm:$0xe]
        %v3094 = vld [vmem:[%s2314 + $0x64] sm:$0xf]
        %v3095 = vld [vmem:[%s2314 + $0x68] sm:$0x1]
        %v3096 = vld [vmem:[%s2314 + $0x6c] sm:$0xe]
        %v3097 = vld [vmem:[%s2314 + $0x70] sm:$0xf]
        %v3098 = vld [vmem:[%s2314 + $0x74] sm:$0x1]
        %v3099 = vld [vmem:[%s2314 + $0x78] sm:$0xe]
        %v3100 = vld [vmem:[%s2314 + $0x7c] sm:$0xf]
        %v3101 = vld [vmem:[%s2314 + $0x80] sm:$0x1]
        %v3102 = vld [vmem:[%s2314 + $0x84] sm:$0xe]
        %v3103 = vld [vmem:[%s2314 + $0x88] sm:$0xf]
        %v3104 = vld [vmem:[%s2314 + $0x8c] sm:$0x1]
        %v3105 = vld [vmem:[%s2314 + $0x90] sm:$0xe]
        %v3106 = vld [vmem:[%s2314 + $0x94] sm:$0xf]
        %v3107 = vld [vmem:[%s2314 + $0x98] sm:$0x1]
        %v3108 = vld [vmem:[%s2314 + $0x9c] sm:$0xe]
        %v3109 = vld [vmem:[%s2314 + $0xa0] sm:$0xf]
        %v3110 = vld [vmem:[%s2314 + $0xa4] sm:$0x1]
        %v3111 = vld [vmem:[%s2314 + $0xa8] sm:$0xe]
        %v3112 = vld [vmem:[%s2314 + $0xac] sm:$0xf]
        %v3113 = vld [vmem:[%s2314 + $0xb0] sm:$0x1]
        %v3114 = vld [vmem:[%s2314 + $0xb4] sm:$0xe]
        %v3115 = vld [vmem:[%s2314 + $0xb8] sm:$0xf]
        %v3116 = vld [vmem:[%s2314 + $0xbc] sm:$0x1]
        %v3165 = vrot.slane %v3069, 5
        %v3166 = vrot.slane %v3165, 4
        %v3167 = vrot.slane %v3070, 5
        %v3168 = vsel %vm980, %v3166, %v3167
        %v3169 = vrot.slane %v3167, 4
        %v3170 = vrot.slane %v3071, 5
        %v3171 = vsel %vm980, %v3169, %v3170
        %v3172 = vrot.slane %v3072, 5
        %v3173 = vrot.slane %v3172, 4
        %v3174 = vrot.slane %v3073, 5
        %v3175 = vsel %vm980, %v3173, %v3174
        %v3176 = vrot.slane %v3174, 4
        %v3177 = vrot.slane %v3074, 5
        %v3178 = vsel %vm980, %v3176, %v3177
        %v3179 = vrot.slane %v3075, 5
        %v3180 = vrot.slane %v3179, 4
        %v3181 = vrot.slane %v3076, 5
        %v3182 = vsel %vm980, %v3180, %v3181
        %v3183 = vrot.slane %v3181, 4
        %v3184 = vrot.slane %v3077, 5
        %v3185 = vsel %vm980, %v3183, %v3184
        %v3186 = vrot.slane %v3078, 5
        %v3187 = vrot.slane %v3186, 4
        %v3188 = vrot.slane %v3079, 5
        %v3189 = vsel %vm980, %v3187, %v3188
        %v3190 = vrot.slane %v3188, 4
        %v3191 = vrot.slane %v3080, 5
        %v3192 = vsel %vm980, %v3190, %v3191
        %v3193 = vrot.slane %v3081, 5
        %v3194 = vrot.slane %v3193, 4
        %v3195 = vrot.slane %v3082, 5
        %v3196 = vsel %vm980, %v3194, %v3195
        %v3197 = vrot.slane %v3195, 4
        %v3198 = vrot.slane %v3083, 5
        %v3199 = vsel %vm980, %v3197, %v3198
        %v3200 = vrot.slane %v3084, 5
        %v3201 = vrot.slane %v3200, 4
        %v3202 = vrot.slane %v3085, 5
        %v3203 = vsel %vm980, %v3201, %v3202
        %v3204 = vrot.slane %v3202, 4
        %v3205 = vrot.slane %v3086, 5
        %v3206 = vsel %vm980, %v3204, %v3205
        %v3207 = vrot.slane %v3087, 5
        %v3208 = vrot.slane %v3207, 4
        %v3209 = vrot.slane %v3088, 5
        %v3210 = vsel %vm980, %v3208, %v3209
        %v3211 = vrot.slane %v3209, 4
        %v3212 = vrot.slane %v3089, 5
        %v3213 = vsel %vm980, %v3211, %v3212
        %v3214 = vrot.slane %v3090, 5
        %v3215 = vrot.slane %v3214, 4
        %v3216 = vrot.slane %v3091, 5
        %v3217 = vsel %vm980, %v3215, %v3216
        %v3218 = vrot.slane %v3216, 4
        %v3219 = vrot.slane %v3092, 5
        %v3220 = vsel %vm980, %v3218, %v3219
        %v3221 = vrot.slane %v3093, 5
        %v3222 = vrot.slane %v3221, 4
        %v3223 = vrot.slane %v3094, 5
        %v3224 = vsel %vm980, %v3222, %v3223
        %v3225 = vrot.slane %v3223, 4
        %v3226 = vrot.slane %v3095, 5
        %v3227 = vsel %vm980, %v3225, %v3226
        %v3228 = vrot.slane %v3096, 5
        %v3229 = vrot.slane %v3228, 4
        %v3230 = vrot.slane %v3097, 5
        %v3231 = vsel %vm980, %v3229, %v3230
        %v3232 = vrot.slane %v3230, 4
        %v3233 = vrot.slane %v3098, 5
        %v3234 = vsel %vm980, %v3232, %v3233
        %v3235 = vrot.slane %v3099, 5
        %v3236 = vrot.slane %v3235, 4
        %v3237 = vrot.slane %v3100, 5
        %v3238 = vsel %vm980, %v3236, %v3237
        %v3239 = vrot.slane %v3237, 4
        %v3240 = vrot.slane %v3101, 5
        %v3241 = vsel %vm980, %v3239, %v3240
        %v3242 = vrot.slane %v3102, 5
        %v3243 = vrot.slane %v3242, 4
        %v3244 = vrot.slane %v3103, 5
        %v3245 = vsel %vm980, %v3243, %v3244
        %v3246 = vrot.slane %v3244, 4
        %v3247 = vrot.slane %v3104, 5
        %v3248 = vsel %vm980, %v3246, %v3247
        %v3249 = vrot.slane %v3105, 5
        %v3250 = vrot.slane %v3249, 4
        %v3251 = vrot.slane %v3106, 5
        %v3252 = vsel %vm980, %v3250, %v3251
        %v3253 = vrot.slane %v3251, 4
        %v3254 = vrot.slane %v3107, 5
        %v3255 = vsel %vm980, %v3253, %v3254
        %v3256 = vrot.slane %v3108, 5
        %v3257 = vrot.slane %v3256, 4
        %v3258 = vrot.slane %v3109, 5
        %v3259 = vsel %vm980, %v3257, %v3258
        %v3260 = vrot.slane %v3258, 4
        %v3261 = vrot.slane %v3110, 5
        %v3262 = vsel %vm980, %v3260, %v3261
        %v3263 = vrot.slane %v3111, 5
        %v3264 = vrot.slane %v3263, 4
        %v3265 = vrot.slane %v3112, 5
        %v3266 = vsel %vm980, %v3264, %v3265
        %v3267 = vrot.slane %v3265, 4
        %v3268 = vrot.slane %v3113, 5
        %v3269 = vsel %vm980, %v3267, %v3268
        %v3270 = vrot.slane %v3114, 5
        %v3271 = vrot.slane %v3270, 4
        %v3272 = vrot.slane %v3115, 5
        %v3273 = vsel %vm980, %v3271, %v3272
        %v3274 = vrot.slane %v3272, 4
        %v3275 = vrot.slane %v3116, 5
        %v3276 = vsel %vm980, %v3274, %v3275
        %3277 = vrot.lane.b32.xlu0 %v3168, 32
        %v3278 = vpop.permute.xlu0 %3277
        %3279 = vrot.lane.b32.xlu0 %v3171, 32
        %v3280 = vpop.permute.xlu0 %3279
        %3281 = vrot.lane.b32.xlu0 %v3175, 32
        %v3282 = vpop.permute.xlu0 %3281
        %3283 = vrot.lane.b32.xlu0 %v3178, 32
        %v3284 = vpop.permute.xlu0 %3283
        %3285 = vrot.lane.b32.xlu0 %v3182, 32
        %v3286 = vpop.permute.xlu0 %3285
        %3287 = vrot.lane.b32.xlu0 %v3185, 32
        %v3288 = vpop.permute.xlu0 %3287
        %3289 = vrot.lane.b32.xlu0 %v3189, 32
        %v3290 = vpop.permute.xlu0 %3289
        %3291 = vrot.lane.b32.xlu0 %v3192, 32
        %v3292 = vpop.permute.xlu0 %3291
        %3293 = vrot.lane.b32.xlu0 %v3196, 32
        %v3294 = vpop.permute.xlu0 %3293
        %3295 = vrot.lane.b32.xlu0 %v3199, 32
        %v3296 = vpop.permute.xlu0 %3295
        %3297 = vrot.lane.b32.xlu0 %v3203, 32
        %v3298 = vpop.permute.xlu0 %3297
        %3299 = vrot.lane.b32.xlu0 %v3206, 32
        %v3300 = vpop.permute.xlu0 %3299
        %3301 = vrot.lane.b32.xlu0 %v3210, 32
        %v3302 = vpop.permute.xlu0 %3301
        %3303 = vrot.lane.b32.xlu0 %v3213, 32
        %v3304 = vpop.permute.xlu0 %3303
        %3305 = vrot.lane.b32.xlu0 %v3217, 32
        %v3306 = vpop.permute.xlu0 %3305
        %3307 = vrot.lane.b32.xlu0 %v3220, 32
        %v3308 = vpop.permute.xlu0 %3307
        %3309 = vrot.lane.b32.xlu0 %v3224, 32
        %v3310 = vpop.permute.xlu0 %3309
        %3311 = vrot.lane.b32.xlu0 %v3227, 32
        %v3312 = vpop.permute.xlu0 %3311
        %3313 = vrot.lane.b32.xlu0 %v3231, 32
        %v3314 = vpop.permute.xlu0 %3313
        %3315 = vrot.lane.b32.xlu0 %v3234, 32
        %v3316 = vpop.permute.xlu0 %3315
        %3317 = vrot.lane.b32.xlu0 %v3238, 32
        %v3318 = vpop.permute.xlu0 %3317
        %3319 = vrot.lane.b32.xlu0 %v3241, 32
        %v3320 = vpop.permute.xlu0 %3319
        %3321 = vrot.lane.b32.xlu0 %v3245, 32
        %v3322 = vpop.permute.xlu0 %3321
        %3323 = vrot.lane.b32.xlu0 %v3248, 32
        %v3324 = vpop.permute.xlu0 %3323
        %3325 = vrot.lane.b32.xlu0 %v3252, 32
        %v3326 = vpop.permute.xlu0 %3325
        %3327 = vrot.lane.b32.xlu0 %v3255, 32
        %v3328 = vpop.permute.xlu0 %3327
        %3329 = vrot.lane.b32.xlu0 %v3259, 32
        %v3330 = vpop.permute.xlu0 %3329
        %3331 = vrot.lane.b32.xlu0 %v3262, 32
        %v3332 = vpop.permute.xlu0 %3331
        %3333 = vrot.lane.b32.xlu0 %v3266, 32
        %v3334 = vpop.permute.xlu0 %3333
        %3335 = vrot.lane.b32.xlu0 %v3269, 32
        %v3336 = vpop.permute.xlu0 %3335
        %3337 = vrot.lane.b32.xlu0 %v3273, 32
        %v3338 = vpop.permute.xlu0 %3337
        %3339 = vrot.lane.b32.xlu0 %v3276, 32
        %v3340 = vpop.permute.xlu0 %3339
        %vm3373 = vcmask 290048
        %3374 = vst.msk [vmem:[#allocation2] sm:$0xf] %vm3373, %v3278
        %3375 = vst.msk [vmem:[#allocation2 + $0x4] sm:$0xf] %vm3373, %v3280
        %3376 = vst.msk [vmem:[#allocation2 + $0x8] sm:$0xf] %vm3373, %v3282
        %3377 = vst.msk [vmem:[#allocation2 + $0xc] sm:$0xf] %vm3373, %v3284
        %3378 = vst.msk [vmem:[#allocation2 + $0x10] sm:$0xf] %vm3373, %v3286
        %3379 = vst.msk [vmem:[#allocation2 + $0x14] sm:$0xf] %vm3373, %v3288
        %3380 = vst.msk [vmem:[#allocation2 + $0x18] sm:$0xf] %vm3373, %v3290
        %3381 = vst.msk [vmem:[#allocation2 + $0x1c] sm:$0xf] %vm3373, %v3292
        %3382 = vst.msk [vmem:[#allocation2 + $0x20] sm:$0xf] %vm3373, %v3294
        %3383 = vst.msk [vmem:[#allocation2 + $0x24] sm:$0xf] %vm3373, %v3296
        %3384 = vst.msk [vmem:[#allocation2 + $0x28] sm:$0xf] %vm3373, %v3298
        %3385 = vst.msk [vmem:[#allocation2 + $0x2c] sm:$0xf] %vm3373, %v3300
        %3386 = vst.msk [vmem:[#allocation2 + $0x30] sm:$0xf] %vm3373, %v3302
        %3387 = vst.msk [vmem:[#allocation2 + $0x34] sm:$0xf] %vm3373, %v3304
        %3388 = vst.msk [vmem:[#allocation2 + $0x38] sm:$0xf] %vm3373, %v3306
        %3389 = vst.msk [vmem:[#allocation2 + $0x3c] sm:$0xf] %vm3373, %v3308
        %3390 = vst.msk [vmem:[#allocation2 + $0x40] sm:$0xf] %vm3373, %v3310
        %3391 = vst.msk [vmem:[#allocation2 + $0x44] sm:$0xf] %vm3373, %v3312
        %3392 = vst.msk [vmem:[#allocation2 + $0x48] sm:$0xf] %vm3373, %v3314
        %3393 = vst.msk [vmem:[#allocation2 + $0x4c] sm:$0xf] %vm3373, %v3316
        %3394 = vst.msk [vmem:[#allocation2 + $0x50] sm:$0xf] %vm3373, %v3318
        %3395 = vst.msk [vmem:[#allocation2 + $0x54] sm:$0xf] %vm3373, %v3320
        %3396 = vst.msk [vmem:[#allocation2 + $0x58] sm:$0xf] %vm3373, %v3322
        %3397 = vst.msk [vmem:[#allocation2 + $0x5c] sm:$0xf] %vm3373, %v3324
        %3398 = vst.msk [vmem:[#allocation2 + $0x60] sm:$0xf] %vm3373, %v3326
        %3399 = vst.msk [vmem:[#allocation2 + $0x64] sm:$0xf] %vm3373, %v3328
        %3400 = vst.msk [vmem:[#allocation2 + $0x68] sm:$0xf] %vm3373, %v3330
        %3401 = vst.msk [vmem:[#allocation2 + $0x6c] sm:$0xf] %vm3373, %v3332
        %3402 = vst.msk [vmem:[#allocation2 + $0x70] sm:$0xf] %vm3373, %v3334
        %3403 = vst.msk [vmem:[#allocation2 + $0x74] sm:$0xf] %vm3373, %v3336
        %3404 = vst.msk [vmem:[#allocation2 + $0x78] sm:$0xf] %vm3373, %v3338
        %3405 = vst.msk [vmem:[#allocation2 + $0x7c] sm:$0xf] %vm3373, %v3340
        %v3406 = vld [vmem:[#allocation2] sm:$0xf]
        %v3407 = vld [vmem:[#allocation2 + $0x4] sm:$0xf]
        %v3408 = vld [vmem:[#allocation2 + $0x8] sm:$0xf]
        %v3409 = vld [vmem:[#allocation2 + $0xc] sm:$0xf]
        %v3410 = vld [vmem:[#allocation2 + $0x10] sm:$0xf]
        %v3411 = vld [vmem:[#allocation2 + $0x14] sm:$0xf]
        %v3412 = vld [vmem:[#allocation2 + $0x18] sm:$0xf]
        %v3413 = vld [vmem:[#allocation2 + $0x1c] sm:$0xf]
        %v3414 = vld [vmem:[#allocation2 + $0x20] sm:$0xf]
        %v3415 = vld [vmem:[#allocation2 + $0x24] sm:$0xf]
        %v3416 = vld [vmem:[#allocation2 + $0x28] sm:$0xf]
        %v3417 = vld [vmem:[#allocation2 + $0x2c] sm:$0xf]
        %v3418 = vld [vmem:[#allocation2 + $0x30] sm:$0xf]
        %v3419 = vld [vmem:[#allocation2 + $0x34] sm:$0xf]
        %v3420 = vld [vmem:[#allocation2 + $0x38] sm:$0xf]
        %v3421 = vld [vmem:[#allocation2 + $0x3c] sm:$0xf]
        %v3422 = vld [vmem:[#allocation2 + $0x40] sm:$0xf]
        %v3423 = vld [vmem:[#allocation2 + $0x44] sm:$0xf]
        %v3424 = vld [vmem:[#allocation2 + $0x48] sm:$0xf]
        %v3425 = vld [vmem:[#allocation2 + $0x4c] sm:$0xf]
        %v3426 = vld [vmem:[#allocation2 + $0x50] sm:$0xf]
        %v3427 = vld [vmem:[#allocation2 + $0x54] sm:$0xf]
        %v3428 = vld [vmem:[#allocation2 + $0x58] sm:$0xf]
        %v3429 = vld [vmem:[#allocation2 + $0x5c] sm:$0xf]
        %v3430 = vld [vmem:[#allocation2 + $0x60] sm:$0xf]
        %v3431 = vld [vmem:[#allocation2 + $0x64] sm:$0xf]
        %v3432 = vld [vmem:[#allocation2 + $0x68] sm:$0xf]
        %v3433 = vld [vmem:[#allocation2 + $0x6c] sm:$0xf]
        %v3434 = vld [vmem:[#allocation2 + $0x70] sm:$0xf]
        %v3435 = vld [vmem:[#allocation2 + $0x74] sm:$0xf]
        %v3436 = vld [vmem:[#allocation2 + $0x78] sm:$0xf]
        %v3437 = vld [vmem:[#allocation2 + $0x7c] sm:$0xf]
        %v3438 = vld [vmem:[%s1] sm:$0xf]
        %v3439 = vld [vmem:[%s1 + $0x4] sm:$0xf]
        %v3440 = vld [vmem:[%s1 + $0x8] sm:$0xf]
        %v3441 = vld [vmem:[%s1 + $0xc] sm:$0xf]
        %v3442 = vld [vmem:[%s1 + $0x10] sm:$0x3]
        %v3443 = vld [vmem:[%s2] sm:$0x1]
        %v3445 = vperm.slane %v3443, 0
        %v3479 = vunpack.c.l.b16 %v3406
        %v3480 = vunpack.c.l.b16 %v3407
        %v3481 = vunpack.c.l.b16 %v3408
        %v3482 = vunpack.c.l.b16 %v3409
        %v3483 = vunpack.c.l.b16 %v3410
        %v3484 = vunpack.c.l.b16 %v3411
        %v3485 = vunpack.c.l.b16 %v3412
        %v3486 = vunpack.c.l.b16 %v3413
        %v3487 = vunpack.c.l.b16 %v3414
        %v3488 = vunpack.c.l.b16 %v3415
        %v3489 = vunpack.c.l.b16 %v3416
        %v3490 = vunpack.c.l.b16 %v3417
        %v3491 = vunpack.c.l.b16 %v3418
        %v3492 = vunpack.c.l.b16 %v3419
        %v3493 = vunpack.c.l.b16 %v3420
        %v3494 = vunpack.c.l.b16 %v3421
        %v3495 = vunpack.c.l.b16 %v3422
        %v3496 = vunpack.c.l.b16 %v3423
        %v3497 = vunpack.c.l.b16 %v3424
        %v3498 = vunpack.c.l.b16 %v3425
        %v3499 = vunpack.c.l.b16 %v3426
        %v3500 = vunpack.c.l.b16 %v3427
        %v3501 = vunpack.c.l.b16 %v3428
        %v3502 = vunpack.c.l.b16 %v3429
        %v3503 = vunpack.c.l.b16 %v3430
        %v3504 = vunpack.c.l.b16 %v3431
        %v3505 = vunpack.c.l.b16 %v3432
        %v3506 = vunpack.c.l.b16 %v3433
        %v3507 = vunpack.c.l.b16 %v3434
        %v3508 = vunpack.c.l.b16 %v3435
        %v3509 = vunpack.c.l.b16 %v3436
        %v3510 = vunpack.c.l.b16 %v3437
        %v3511 = vpack.c.b16 %v3480, %v3479
        %v3512 = vpack.c.b16 %v3482, %v3481
        %v3513 = vpack.c.b16 %v3484, %v3483
        %v3514 = vpack.c.b16 %v3486, %v3485
        %v3515 = vpack.c.b16 %v3488, %v3487
        %v3516 = vpack.c.b16 %v3490, %v3489
        %v3517 = vpack.c.b16 %v3492, %v3491
        %v3518 = vpack.c.b16 %v3494, %v3493
        %v3519 = vpack.c.b16 %v3496, %v3495
        %v3520 = vpack.c.b16 %v3498, %v3497
        %v3521 = vpack.c.b16 %v3500, %v3499
        %v3522 = vpack.c.b16 %v3502, %v3501
        %v3523 = vpack.c.b16 %v3504, %v3503
        %v3524 = vpack.c.b16 %v3506, %v3505
        %v3525 = vpack.c.b16 %v3508, %v3507
        %v3526 = vpack.c.b16 %v3510, %v3509
        %v3532 = vunpack.c.l.b16 %v3438
        %v3533 = vunpack.c.l.b16 %v3439
        %v3534 = vunpack.c.l.b16 %v3440
        %v3535 = vunpack.c.l.b16 %v3441
        %v3536 = vunpack.c.l.b16 %v3442
        %v3537 = vpack.c.b16 %v3533, %v3532
        %v3538 = vpack.c.b16 %v3535, %v3534
        %v3539 = vpack.c.b16 %v3536, %v3536
        %vm3542 = vcmask 293888
        %v3544 = vsel %vm3542, %v3511, 0
        %v3547 = vsel %vm3542, %v3512, 0
        %v3550 = vsel %vm3542, %v3513, 0
        %v3553 = vsel %vm3542, %v3514, 0
        %v3556 = vsel %vm3542, %v3515, 0
        %v3559 = vsel %vm3542, %v3516, 0
        %v3562 = vsel %vm3542, %v3517, 0
        %v3565 = vsel %vm3542, %v3518, 0
        %v3568 = vsel %vm3542, %v3519, 0
        %v3571 = vsel %vm3542, %v3520, 0
        %v3574 = vsel %vm3542, %v3521, 0
        %v3577 = vsel %vm3542, %v3522, 0
        %v3580 = vsel %vm3542, %v3523, 0
        %v3583 = vsel %vm3542, %v3524, 0
        %v3586 = vsel %vm3542, %v3525, 0
        %v3589 = vsel %vm3542, %v3526, 0
        %vm3591 = vcmask 1041408
        %v3593 = vsel %vm3591, %v3539, 0
        %3595 = vmatpush.bf16.msra.mxu0 0
        %3596 = vmatpush.bf16.msra.mxu0 0
        %3597 = vmatpush.bf16.msra.mxu0 0
        %3598 = vmatpush.bf16.msra.mxu0 0
        %3599 = vmatpush.bf16.msra.mxu0 0
        %3600 = vmatpush.bf16.msra.mxu0 %v3593
        %3601 = vmatpush.bf16.msra.mxu0 %v3538
        %3602 = vmatpush.bf16.msra.mxu0 %v3537
        %3603 = vmatmul.bf16.gmra.mxu0 %v3544
        %v3604 = vpop.f32.mrf.mxu0
        %v3605 = vadd.f32 %v3445, %v3604
        %v3606 = vpop.f32.mrf.mxu0
        %v3607 = vadd.f32 %v3445, %v3606
        %3608 = vmatmul.bf16.gmra.mxu0 %v3547
        %v3609 = vpop.f32.mrf.mxu0
        %v3610 = vadd.f32 %v3445, %v3609
        %v3611 = vpop.f32.mrf.mxu0
        %v3612 = vadd.f32 %v3445, %v3611
        %3613 = vmatmul.bf16.gmra.mxu0 %v3550
        %v3614 = vpop.f32.mrf.mxu0
        %v3615 = vadd.f32 %v3445, %v3614
        %v3616 = vpop.f32.mrf.mxu0
        %v3617 = vadd.f32 %v3445, %v3616
        %3618 = vmatmul.bf16.gmra.mxu0 %v3553
        %v3619 = vpop.f32.mrf.mxu0
        %v3620 = vadd.f32 %v3445, %v3619
        %v3621 = vpop.f32.mrf.mxu0
        %v3622 = vadd.f32 %v3445, %v3621
        %3623 = vmatmul.bf16.gmra.mxu0 %v3556
        %v3624 = vpop.f32.mrf.mxu0
        %v3625 = vadd.f32 %v3445, %v3624
        %v3626 = vpop.f32.mrf.mxu0
        %v3627 = vadd.f32 %v3445, %v3626
        %3628 = vmatmul.bf16.gmra.mxu0 %v3559
        %v3629 = vpop.f32.mrf.mxu0
        %v3630 = vadd.f32 %v3445, %v3629
        %v3631 = vpop.f32.mrf.mxu0
        %v3632 = vadd.f32 %v3445, %v3631
        %3633 = vmatmul.bf16.gmra.mxu0 %v3562
        %v3634 = vpop.f32.mrf.mxu0
        %v3635 = vadd.f32 %v3445, %v3634
        %v3636 = vpop.f32.mrf.mxu0
        %v3637 = vadd.f32 %v3445, %v3636
        %3638 = vmatmul.bf16.gmra.mxu0 %v3565
        %v3639 = vpop.f32.mrf.mxu0
        %v3640 = vadd.f32 %v3445, %v3639
        %v3641 = vpop.f32.mrf.mxu0
        %v3642 = vadd.f32 %v3445, %v3641
        %3643 = vmatmul.bf16.gmra.mxu0 %v3568
        %v3644 = vpop.f32.mrf.mxu0
        %v3645 = vadd.f32 %v3445, %v3644
        %v3646 = vpop.f32.mrf.mxu0
        %v3647 = vadd.f32 %v3445, %v3646
        %3648 = vmatmul.bf16.gmra.mxu0 %v3571
        %v3649 = vpop.f32.mrf.mxu0
        %v3650 = vadd.f32 %v3445, %v3649
        %v3651 = vpop.f32.mrf.mxu0
        %v3652 = vadd.f32 %v3445, %v3651
        %3653 = vmatmul.bf16.gmra.mxu0 %v3574
        %v3654 = vpop.f32.mrf.mxu0
        %v3655 = vadd.f32 %v3445, %v3654
        %v3656 = vpop.f32.mrf.mxu0
        %v3657 = vadd.f32 %v3445, %v3656
        %3658 = vmatmul.bf16.gmra.mxu0 %v3577
        %v3659 = vpop.f32.mrf.mxu0
        %v3660 = vadd.f32 %v3445, %v3659
        %v3661 = vpop.f32.mrf.mxu0
        %v3662 = vadd.f32 %v3445, %v3661
        %3663 = vmatmul.bf16.gmra.mxu0 %v3580
        %v3664 = vpop.f32.mrf.mxu0
        %v3665 = vadd.f32 %v3445, %v3664
        %v3666 = vpop.f32.mrf.mxu0
        %v3667 = vadd.f32 %v3445, %v3666
        %3668 = vmatmul.bf16.gmra.mxu0 %v3583
        %v3669 = vpop.f32.mrf.mxu0
        %v3670 = vadd.f32 %v3445, %v3669
        %v3671 = vpop.f32.mrf.mxu0
        %v3672 = vadd.f32 %v3445, %v3671
        %3673 = vmatmul.bf16.gmra.mxu0 %v3586
        %v3674 = vpop.f32.mrf.mxu0
        %v3675 = vadd.f32 %v3445, %v3674
        %v3676 = vpop.f32.mrf.mxu0
        %v3677 = vadd.f32 %v3445, %v3676
        %3678 = vmatmul.bf16.gmra.mxu0 %v3589
        %v3679 = vpop.f32.mrf.mxu0
        %v3680 = vadd.f32 %v3445, %v3679
        %v3681 = vpop.f32.mrf.mxu0
        %v3682 = vadd.f32 %v3445, %v3681
        %3683 = vdwg.mxu0
        %v3684 = vmax.f32 %v3605, 0.0
        %v3685 = vmax.f32 %v3607, 0.0
        %v3686 = vmax.f32 %v3610, 0.0
        %v3687 = vmax.f32 %v3612, 0.0
        %v3688 = vmax.f32 %v3615, 0.0
        %v3689 = vmax.f32 %v3617, 0.0
        %v3690 = vmax.f32 %v3620, 0.0
        %v3691 = vmax.f32 %v3622, 0.0
        %v3692 = vmax.f32 %v3625, 0.0
        %v3693 = vmax.f32 %v3627, 0.0
        %v3694 = vmax.f32 %v3630, 0.0
        %v3695 = vmax.f32 %v3632, 0.0
        %v3696 = vmax.f32 %v3635, 0.0
        %v3697 = vmax.f32 %v3637, 0.0
        %v3698 = vmax.f32 %v3640, 0.0
        %v3699 = vmax.f32 %v3642, 0.0
        %v3700 = vmax.f32 %v3645, 0.0
        %v3701 = vmax.f32 %v3647, 0.0
        %v3702 = vmax.f32 %v3650, 0.0
        %v3703 = vmax.f32 %v3652, 0.0
        %v3704 = vmax.f32 %v3655, 0.0
        %v3705 = vmax.f32 %v3657, 0.0
        %v3706 = vmax.f32 %v3660, 0.0
        %v3707 = vmax.f32 %v3662, 0.0
        %v3708 = vmax.f32 %v3665, 0.0
        %v3709 = vmax.f32 %v3667, 0.0
        %v3710 = vmax.f32 %v3670, 0.0
        %v3711 = vmax.f32 %v3672, 0.0
        %v3712 = vmax.f32 %v3675, 0.0
        %v3713 = vmax.f32 %v3677, 0.0
        %v3714 = vmax.f32 %v3680, 0.0
        %v3715 = vmax.f32 %v3682, 0.0
        %v3716 = vpack.c.bf16 %v3685, %v3684
        %v3717 = vpack.c.bf16 %v3687, %v3686
        %v3718 = vpack.c.bf16 %v3689, %v3688
        %v3719 = vpack.c.bf16 %v3691, %v3690
        %v3720 = vpack.c.bf16 %v3693, %v3692
        %v3721 = vpack.c.bf16 %v3695, %v3694
        %v3722 = vpack.c.bf16 %v3697, %v3696
        %v3723 = vpack.c.bf16 %v3699, %v3698
        %v3724 = vpack.c.bf16 %v3701, %v3700
        %v3725 = vpack.c.bf16 %v3703, %v3702
        %v3726 = vpack.c.bf16 %v3705, %v3704
        %v3727 = vpack.c.bf16 %v3707, %v3706
        %v3728 = vpack.c.bf16 %v3709, %v3708
        %v3729 = vpack.c.bf16 %v3711, %v3710
        %v3730 = vpack.c.bf16 %v3713, %v3712
        %v3731 = vpack.c.bf16 %v3715, %v3714
        %v3732 = vld [vmem:[%s3] sm:$0xff]
        %v3733 = vld [vmem:[%s3 + $0x8] sm:$0xf]
        %v3734 = vld [vmem:[%s3 + $0xc] sm:$0xff]
        %v3735 = vld [vmem:[%s3 + $0x14] sm:$0xf]
        %v3736 = vld [vmem:[%s3 + $0x18] sm:$0xff]
        %v3737 = vld [vmem:[%s3 + $0x20] sm:$0xf]
        %v3738 = vld [vmem:[%s3 + $0x24] sm:$0xff]
        %v3739 = vld [vmem:[%s3 + $0x2c] sm:$0xf]
        %v3740 = vld [vmem:[%s4] sm:$0x7]
        %v3742 = vperm.slane %v3740, 0
        %v3743 = vperm.slane %v3740, 1
        %v3744 = vperm.slane %v3740, 2
        %v3756 = vunpack.c.l.b16 %v3732
        %v3757 = vunpack.c.h.b16 %v3732
        %v3758 = vunpack.c.l.b16 %v3733
        %v3759 = vunpack.c.l.b16 %v3734
        %v3760 = vunpack.c.h.b16 %v3734
        %v3761 = vunpack.c.l.b16 %v3735
        %v3762 = vunpack.c.l.b16 %v3736
        %v3763 = vunpack.c.h.b16 %v3736
        %v3764 = vunpack.c.l.b16 %v3737
        %v3765 = vunpack.c.l.b16 %v3738
        %v3766 = vunpack.c.h.b16 %v3738
        %v3767 = vunpack.c.l.b16 %v3739
        %v3768 = vpack.c.b16 %v3759, %v3756
        %v3769 = vpack.c.b16 %v3760, %v3757
        %v3770 = vpack.c.b16 %v3761, %v3758
        %v3771 = vpack.c.b16 %v3765, %v3762
        %v3772 = vpack.c.b16 %v3766, %v3763
        %v3773 = vpack.c.b16 %v3767, %v3764
        %vm3780 = vcmask 261120
        %v3782 = vsel %vm3780, %v3716, 0
        %v3785 = vsel %vm3780, %v3717, 0
        %v3788 = vsel %vm3780, %v3718, 0
        %v3791 = vsel %vm3780, %v3719, 0
        %v3794 = vsel %vm3780, %v3720, 0
        %v3797 = vsel %vm3780, %v3721, 0
        %v3800 = vsel %vm3780, %v3722, 0
        %v3803 = vsel %vm3780, %v3723, 0
        %v3806 = vsel %vm3780, %v3724, 0
        %v3809 = vsel %vm3780, %v3725, 0
        %v3812 = vsel %vm3780, %v3726, 0
        %v3815 = vsel %vm3780, %v3727, 0
        %v3818 = vsel %vm3780, %v3728, 0
        %v3821 = vsel %vm3780, %v3729, 0
        %v3824 = vsel %vm3780, %v3730, 0
        %v3827 = vsel %vm3780, %v3731, 0
        %3829 = vmatpush.bf16.msra.mxu0 0
        %3830 = vmatpush.bf16.msra.mxu0 0
        %3831 = vmatpush.bf16.msra.mxu0 0
        %3832 = vmatpush.bf16.msra.mxu0 0
        %3833 = vmatpush.bf16.msra.mxu0 0
        %3834 = vmatpush.bf16.msra.mxu0 0
        %3835 = vmatpush.bf16.msra.mxu0 %v3771
        %3836 = vmatpush.bf16.msra.mxu0 %v3768
        %3837 = vmatmul.bf16.gmra.mxu0 %v3782
        %v3838 = vpop.f32.mrf.mxu0
        %v3839 = vadd.f32 %v3742, %v3838
        %v3840 = vpop.f32.mrf.mxu0
        %v3841 = vadd.f32 %v3742, %v3840
        %3842 = vmatmul.bf16.gmra.mxu0 %v3785
        %v3843 = vpop.f32.mrf.mxu0
        %v3844 = vadd.f32 %v3742, %v3843
        %v3845 = vpop.f32.mrf.mxu0
        %v3846 = vadd.f32 %v3742, %v3845
        %3847 = vmatmul.bf16.gmra.mxu0 %v3788
        %v3848 = vpop.f32.mrf.mxu0
        %v3849 = vadd.f32 %v3742, %v3848
        %v3850 = vpop.f32.mrf.mxu0
        %v3851 = vadd.f32 %v3742, %v3850
        %3852 = vmatmul.bf16.gmra.mxu0 %v3791
        %v3853 = vpop.f32.mrf.mxu0
        %v3854 = vadd.f32 %v3742, %v3853
        %v3855 = vpop.f32.mrf.mxu0
        %v3856 = vadd.f32 %v3742, %v3855
        %3857 = vmatmul.bf16.gmra.mxu0 %v3794
        %v3858 = vpop.f32.mrf.mxu0
        %v3859 = vadd.f32 %v3742, %v3858
        %v3860 = vpop.f32.mrf.mxu0
        %v3861 = vadd.f32 %v3742, %v3860
        %3862 = vmatmul.bf16.gmra.mxu0 %v3797
        %v3863 = vpop.f32.mrf.mxu0
        %v3864 = vadd.f32 %v3742, %v3863
        %v3865 = vpop.f32.mrf.mxu0
        %v3866 = vadd.f32 %v3742, %v3865
        %3867 = vmatmul.bf16.gmra.mxu0 %v3800
        %v3868 = vpop.f32.mrf.mxu0
        %v3869 = vadd.f32 %v3742, %v3868
        %v3870 = vpop.f32.mrf.mxu0
        %v3871 = vadd.f32 %v3742, %v3870
        %3872 = vmatmul.bf16.gmra.mxu0 %v3803
        %v3873 = vpop.f32.mrf.mxu0
        %v3874 = vadd.f32 %v3742, %v3873
        %v3875 = vpop.f32.mrf.mxu0
        %v3876 = vadd.f32 %v3742, %v3875
        %3877 = vmatmul.bf16.gmra.mxu0 %v3806
        %v3878 = vpop.f32.mrf.mxu0
        %v3879 = vadd.f32 %v3742, %v3878
        %v3880 = vpop.f32.mrf.mxu0
        %v3881 = vadd.f32 %v3742, %v3880
        %3882 = vmatmul.bf16.gmra.mxu0 %v3809
        %v3883 = vpop.f32.mrf.mxu0
        %v3884 = vadd.f32 %v3742, %v3883
        %v3885 = vpop.f32.mrf.mxu0
        %v3886 = vadd.f32 %v3742, %v3885
        %3887 = vmatmul.bf16.gmra.mxu0 %v3812
        %v3888 = vpop.f32.mrf.mxu0
        %v3889 = vadd.f32 %v3742, %v3888
        %v3890 = vpop.f32.mrf.mxu0
        %v3891 = vadd.f32 %v3742, %v3890
        %3892 = vmatmul.bf16.gmra.mxu0 %v3815
        %v3893 = vpop.f32.mrf.mxu0
        %v3894 = vadd.f32 %v3742, %v3893
        %v3895 = vpop.f32.mrf.mxu0
        %v3896 = vadd.f32 %v3742, %v3895
        %3897 = vmatmul.bf16.gmra.mxu0 %v3818
        %v3898 = vpop.f32.mrf.mxu0
        %v3899 = vadd.f32 %v3742, %v3898
        %v3900 = vpop.f32.mrf.mxu0
        %v3901 = vadd.f32 %v3742, %v3900
        %3902 = vmatmul.bf16.gmra.mxu0 %v3821
        %v3903 = vpop.f32.mrf.mxu0
        %v3904 = vadd.f32 %v3742, %v3903
        %v3905 = vpop.f32.mrf.mxu0
        %v3906 = vadd.f32 %v3742, %v3905
        %3907 = vmatmul.bf16.gmra.mxu0 %v3824
        %v3908 = vpop.f32.mrf.mxu0
        %v3909 = vadd.f32 %v3742, %v3908
        %v3910 = vpop.f32.mrf.mxu0
        %v3911 = vadd.f32 %v3742, %v3910
        %3912 = vmatmul.bf16.gmra.mxu0 %v3827
        %v3913 = vpop.f32.mrf.mxu0
        %v3914 = vadd.f32 %v3742, %v3913
        %v3915 = vpop.f32.mrf.mxu0
        %v3916 = vadd.f32 %v3742, %v3915
        %3917 = vdwg.mxu0
        %3918 = vmatpush.bf16.msra.mxu0 0
        %3919 = vmatpush.bf16.msra.mxu0 0
        %3920 = vmatpush.bf16.msra.mxu0 0
        %3921 = vmatpush.bf16.msra.mxu0 0
        %3922 = vmatpush.bf16.msra.mxu0 0
        %3923 = vmatpush.bf16.msra.mxu0 0
        %3924 = vmatpush.bf16.msra.mxu0 %v3772
        %3925 = vmatpush.bf16.msra.mxu0 %v3769
        %3926 = vmatmul.bf16.gmra.mxu0 %v3782
        %v3927 = vpop.f32.mrf.mxu0
        %v3928 = vadd.f32 %v3743, %v3927
        %v3929 = vpop.f32.mrf.mxu0
        %v3930 = vadd.f32 %v3743, %v3929
        %3931 = vmatmul.bf16.gmra.mxu0 %v3785
        %v3932 = vpop.f32.mrf.mxu0
        %v3933 = vadd.f32 %v3743, %v3932
        %v3934 = vpop.f32.mrf.mxu0
        %v3935 = vadd.f32 %v3743, %v3934
        %3936 = vmatmul.bf16.gmra.mxu0 %v3788
        %v3937 = vpop.f32.mrf.mxu0
        %v3938 = vadd.f32 %v3743, %v3937
        %v3939 = vpop.f32.mrf.mxu0
        %v3940 = vadd.f32 %v3743, %v3939
        %3941 = vmatmul.bf16.gmra.mxu0 %v3791
        %v3942 = vpop.f32.mrf.mxu0
        %v3943 = vadd.f32 %v3743, %v3942
        %v3944 = vpop.f32.mrf.mxu0
        %v3945 = vadd.f32 %v3743, %v3944
        %3946 = vmatmul.bf16.gmra.mxu0 %v3794
        %v3947 = vpop.f32.mrf.mxu0
        %v3948 = vadd.f32 %v3743, %v3947
        %v3949 = vpop.f32.mrf.mxu0
        %v3950 = vadd.f32 %v3743, %v3949
        %3951 = vmatmul.bf16.gmra.mxu0 %v3797
        %v3952 = vpop.f32.mrf.mxu0
        %v3953 = vadd.f32 %v3743, %v3952
        %v3954 = vpop.f32.mrf.mxu0
        %v3955 = vadd.f32 %v3743, %v3954
        %3956 = vmatmul.bf16.gmra.mxu0 %v3800
        %v3957 = vpop.f32.mrf.mxu0
        %v3958 = vadd.f32 %v3743, %v3957
        %v3959 = vpop.f32.mrf.mxu0
        %v3960 = vadd.f32 %v3743, %v3959
        %3961 = vmatmul.bf16.gmra.mxu0 %v3803
        %v3962 = vpop.f32.mrf.mxu0
        %v3963 = vadd.f32 %v3743, %v3962
        %v3964 = vpop.f32.mrf.mxu0
        %v3965 = vadd.f32 %v3743, %v3964
        %3966 = vmatmul.bf16.gmra.mxu0 %v3806
        %v3967 = vpop.f32.mrf.mxu0
        %v3968 = vadd.f32 %v3743, %v3967
        %v3969 = vpop.f32.mrf.mxu0
        %v3970 = vadd.f32 %v3743, %v3969
        %3971 = vmatmul.bf16.gmra.mxu0 %v3809
        %v3972 = vpop.f32.mrf.mxu0
        %v3973 = vadd.f32 %v3743, %v3972
        %v3974 = vpop.f32.mrf.mxu0
        %v3975 = vadd.f32 %v3743, %v3974
        %3976 = vmatmul.bf16.gmra.mxu0 %v3812
        %v3977 = vpop.f32.mrf.mxu0
        %v3978 = vadd.f32 %v3743, %v3977
        %v3979 = vpop.f32.mrf.mxu0
        %v3980 = vadd.f32 %v3743, %v3979
        %3981 = vmatmul.bf16.gmra.mxu0 %v3815
        %v3982 = vpop.f32.mrf.mxu0
        %v3983 = vadd.f32 %v3743, %v3982
        %v3984 = vpop.f32.mrf.mxu0
        %v3985 = vadd.f32 %v3743, %v3984
        %3986 = vmatmul.bf16.gmra.mxu0 %v3818
        %v3987 = vpop.f32.mrf.mxu0
        %v3988 = vadd.f32 %v3743, %v3987
        %v3989 = vpop.f32.mrf.mxu0
        %v3990 = vadd.f32 %v3743, %v3989
        %3991 = vmatmul.bf16.gmra.mxu0 %v3821
        %v3992 = vpop.f32.mrf.mxu0
        %v3993 = vadd.f32 %v3743, %v3992
        %v3994 = vpop.f32.mrf.mxu0
        %v3995 = vadd.f32 %v3743, %v3994
        %3996 = vmatmul.bf16.gmra.mxu0 %v3824
        %v3997 = vpop.f32.mrf.mxu0
        %v3998 = vadd.f32 %v3743, %v3997
        %v3999 = vpop.f32.mrf.mxu0
        %v4000 = vadd.f32 %v3743, %v3999
        %4001 = vmatmul.bf16.gmra.mxu0 %v3827
        %v4002 = vpop.f32.mrf.mxu0
        %v4003 = vadd.f32 %v3743, %v4002
        %v4004 = vpop.f32.mrf.mxu0
        %v4005 = vadd.f32 %v3743, %v4004
        %4006 = vdwg.mxu0
        %4007 = vmatpush.bf16.msra.mxu0 0
        %4008 = vmatpush.bf16.msra.mxu0 0
        %4009 = vmatpush.bf16.msra.mxu0 0
        %4010 = vmatpush.bf16.msra.mxu0 0
        %4011 = vmatpush.bf16.msra.mxu0 0
        %4012 = vmatpush.bf16.msra.mxu0 0
        %4013 = vmatpush.bf16.msra.mxu0 %v3773
        %4014 = vmatpush.bf16.msra.mxu0 %v3770
        %4015 = vmatmul.bf16.gmra.mxu0 %v3782
        %v4016 = vpop.f32.mrf.mxu0
        %v4017 = vadd.f32 %v3744, %v4016
        %v4018 = vpop.f32.mrf.mxu0
        %v4019 = vadd.f32 %v3744, %v4018
        %4020 = vmatmul.bf16.gmra.mxu0 %v3785
        %v4021 = vpop.f32.mrf.mxu0
        %v4022 = vadd.f32 %v3744, %v4021
        %v4023 = vpop.f32.mrf.mxu0
        %v4024 = vadd.f32 %v3744, %v4023
        %4025 = vmatmul.bf16.gmra.mxu0 %v3788
        %v4026 = vpop.f32.mrf.mxu0
        %v4027 = vadd.f32 %v3744, %v4026
        %v4028 = vpop.f32.mrf.mxu0
        %v4029 = vadd.f32 %v3744, %v4028
        %4030 = vmatmul.bf16.gmra.mxu0 %v3791
        %v4031 = vpop.f32.mrf.mxu0
        %v4032 = vadd.f32 %v3744, %v4031
        %v4033 = vpop.f32.mrf.mxu0
        %v4034 = vadd.f32 %v3744, %v4033
        %4035 = vmatmul.bf16.gmra.mxu0 %v3794
        %v4036 = vpop.f32.mrf.mxu0
        %v4037 = vadd.f32 %v3744, %v4036
        %v4038 = vpop.f32.mrf.mxu0
        %v4039 = vadd.f32 %v3744, %v4038
        %4040 = vmatmul.bf16.gmra.mxu0 %v3797
        %v4041 = vpop.f32.mrf.mxu0
        %v4042 = vadd.f32 %v3744, %v4041
        %v4043 = vpop.f32.mrf.mxu0
        %v4044 = vadd.f32 %v3744, %v4043
        %4045 = vmatmul.bf16.gmra.mxu0 %v3800
        %v4046 = vpop.f32.mrf.mxu0
        %v4047 = vadd.f32 %v3744, %v4046
        %v4048 = vpop.f32.mrf.mxu0
        %v4049 = vadd.f32 %v3744, %v4048
        %4050 = vmatmul.bf16.gmra.mxu0 %v3803
        %v4051 = vpop.f32.mrf.mxu0
        %v4052 = vadd.f32 %v3744, %v4051
        %v4053 = vpop.f32.mrf.mxu0
        %v4054 = vadd.f32 %v3744, %v4053
        %4055 = vmatmul.bf16.gmra.mxu0 %v3806
        %v4056 = vpop.f32.mrf.mxu0
        %v4057 = vadd.f32 %v3744, %v4056
        %v4058 = vpop.f32.mrf.mxu0
        %v4059 = vadd.f32 %v3744, %v4058
        %4060 = vmatmul.bf16.gmra.mxu0 %v3809
        %v4061 = vpop.f32.mrf.mxu0
        %v4062 = vadd.f32 %v3744, %v4061
        %v4063 = vpop.f32.mrf.mxu0
        %v4064 = vadd.f32 %v3744, %v4063
        %4065 = vmatmul.bf16.gmra.mxu0 %v3812
        %v4066 = vpop.f32.mrf.mxu0
        %v4067 = vadd.f32 %v3744, %v4066
        %v4068 = vpop.f32.mrf.mxu0
        %v4069 = vadd.f32 %v3744, %v4068
        %4070 = vmatmul.bf16.gmra.mxu0 %v3815
        %v4071 = vpop.f32.mrf.mxu0
        %v4072 = vadd.f32 %v3744, %v4071
        %v4073 = vpop.f32.mrf.mxu0
        %v4074 = vadd.f32 %v3744, %v4073
        %4075 = vmatmul.bf16.gmra.mxu0 %v3818
        %v4076 = vpop.f32.mrf.mxu0
        %v4077 = vadd.f32 %v3744, %v4076
        %v4078 = vpop.f32.mrf.mxu0
        %v4079 = vadd.f32 %v3744, %v4078
        %4080 = vmatmul.bf16.gmra.mxu0 %v3821
        %v4081 = vpop.f32.mrf.mxu0
        %v4082 = vadd.f32 %v3744, %v4081
        %v4083 = vpop.f32.mrf.mxu0
        %v4084 = vadd.f32 %v3744, %v4083
        %4085 = vmatmul.bf16.gmra.mxu0 %v3824
        %v4086 = vpop.f32.mrf.mxu0
        %v4087 = vadd.f32 %v3744, %v4086
        %v4088 = vpop.f32.mrf.mxu0
        %v4089 = vadd.f32 %v3744, %v4088
        %4090 = vmatmul.bf16.gmra.mxu0 %v3827
        %v4091 = vpop.f32.mrf.mxu0
        %v4092 = vadd.f32 %v3744, %v4091
        %v4093 = vpop.f32.mrf.mxu0
        %v4094 = vadd.f32 %v3744, %v4093
        %4095 = vdwg.mxu0
        %4096 = vst [vmem:[%s241] sm:$0xff] %v3839
        %4097 = vst [vmem:[%s241 + $0x8] sm:$0xff] %v3928
        %4098 = vst [vmem:[%s241 + $0x10] sm:$0xff] %v4017
        %4099 = vst [vmem:[%s241 + $0x18] sm:$0xff] %v3841
        %4100 = vst [vmem:[%s241 + $0x20] sm:$0xff] %v3930
        %4101 = vst [vmem:[%s241 + $0x28] sm:$0xff] %v4019
        %4102 = vst [vmem:[%s241 + $0x30] sm:$0xff] %v3844
        %4103 = vst [vmem:[%s241 + $0x38] sm:$0xff] %v3933
        %4104 = vst [vmem:[%s241 + $0x40] sm:$0xff] %v4022
        %4105 = vst [vmem:[%s241 + $0x48] sm:$0xff] %v3846
        %4106 = vst [vmem:[%s241 + $0x50] sm:$0xff] %v3935
        %4107 = vst [vmem:[%s241 + $0x58] sm:$0xff] %v4024
        %4108 = vst [vmem:[%s241 + $0x60] sm:$0xff] %v3849
        %4109 = vst [vmem:[%s241 + $0x68] sm:$0xff] %v3938
        %4110 = vst [vmem:[%s241 + $0x70] sm:$0xff] %v4027
        %4111 = vst [vmem:[%s241 + $0x78] sm:$0xff] %v3851
        %4112 = vst [vmem:[%s241 + $0x80] sm:$0xff] %v3940
        %4113 = vst [vmem:[%s241 + $0x88] sm:$0xff] %v4029
        %4114 = vst [vmem:[%s241 + $0x90] sm:$0xff] %v3854
        %4115 = vst [vmem:[%s241 + $0x98] sm:$0xff] %v3943
        %4116 = vst [vmem:[%s241 + $0xa0] sm:$0xff] %v4032
        %4117 = vst [vmem:[%s241 + $0xa8] sm:$0xff] %v3856
        %4118 = vst [vmem:[%s241 + $0xb0] sm:$0xff] %v3945
        %4119 = vst [vmem:[%s241 + $0xb8] sm:$0xff] %v4034
        %4120 = vst [vmem:[%s241 + $0xc0] sm:$0xff] %v3859
        %4121 = vst [vmem:[%s241 + $0xc8] sm:$0xff] %v3948
        %4122 = vst [vmem:[%s241 + $0xd0] sm:$0xff] %v4037
        %4123 = vst [vmem:[%s241 + $0xd8] sm:$0xff] %v3861
        %4124 = vst [vmem:[%s241 + $0xe0] sm:$0xff] %v3950
        %4125 = vst [vmem:[%s241 + $0xe8] sm:$0xff] %v4039
        %4126 = vst [vmem:[%s241 + $0xf0] sm:$0xff] %v3864
        %4127 = vst [vmem:[%s241 + $0xf8] sm:$0xff] %v3953
        %4128 = vst [vmem:[%s241 + $0x100] sm:$0xff] %v4042
        %4129 = vst [vmem:[%s241 + $0x108] sm:$0xff] %v3866
        %4130 = vst [vmem:[%s241 + $0x110] sm:$0xff] %v3955
        %4131 = vst [vmem:[%s241 + $0x118] sm:$0xff] %v4044
        %4132 = vst [vmem:[%s241 + $0x120] sm:$0xff] %v3869
        %4133 = vst [vmem:[%s241 + $0x128] sm:$0xff] %v3958
        %4134 = vst [vmem:[%s241 + $0x130] sm:$0xff] %v4047
        %4135 = vst [vmem:[%s241 + $0x138] sm:$0xff] %v3871
        %4136 = vst [vmem:[%s241 + $0x140] sm:$0xff] %v3960
        %4137 = vst [vmem:[%s241 + $0x148] sm:$0xff] %v4049
        %4138 = vst [vmem:[%s241 + $0x150] sm:$0xff] %v3874
        %4139 = vst [vmem:[%s241 + $0x158] sm:$0xff] %v3963
        %4140 = vst [vmem:[%s241 + $0x160] sm:$0xff] %v4052
        %4141 = vst [vmem:[%s241 + $0x168] sm:$0xff] %v3876
        %4142 = vst [vmem:[%s241 + $0x170] sm:$0xff] %v3965
        %4143 = vst [vmem:[%s241 + $0x178] sm:$0xff] %v4054
        %4144 = vst [vmem:[%s241 + $0x180] sm:$0xff] %v3879
        %4145 = vst [vmem:[%s241 + $0x188] sm:$0xff] %v3968
        %4146 = vst [vmem:[%s241 + $0x190] sm:$0xff] %v4057
        %4147 = vst [vmem:[%s241 + $0x198] sm:$0xff] %v3881
        %4148 = vst [vmem:[%s241 + $0x1a0] sm:$0xff] %v3970
        %4149 = vst [vmem:[%s241 + $0x1a8] sm:$0xff] %v4059
        %4150 = vst [vmem:[%s241 + $0x1b0] sm:$0xff] %v3884
        %4151 = vst [vmem:[%s241 + $0x1b8] sm:$0xff] %v3973
        %4152 = vst [vmem:[%s241 + $0x1c0] sm:$0xff] %v4062
        %4153 = vst [vmem:[%s241 + $0x1c8] sm:$0xff] %v3886
        %4154 = vst [vmem:[%s241 + $0x1d0] sm:$0xff] %v3975
        %4155 = vst [vmem:[%s241 + $0x1d8] sm:$0xff] %v4064
        %4156 = vst [vmem:[%s241 + $0x1e0] sm:$0xff] %v3889
        %4157 = vst [vmem:[%s241 + $0x1e8] sm:$0xff] %v3978
        %4158 = vst [vmem:[%s241 + $0x1f0] sm:$0xff] %v4067
        %4159 = vst [vmem:[%s241 + $0x1f8] sm:$0xff] %v3891
        %4160 = vst [vmem:[%s241 + $0x200] sm:$0xff] %v3980
        %4161 = vst [vmem:[%s241 + $0x208] sm:$0xff] %v4069
        %4162 = vst [vmem:[%s241 + $0x210] sm:$0xff] %v3894
        %4163 = vst [vmem:[%s241 + $0x218] sm:$0xff] %v3983
        %4164 = vst [vmem:[%s241 + $0x220] sm:$0xff] %v4072
        %4165 = vst [vmem:[%s241 + $0x228] sm:$0xff] %v3896
        %4166 = vst [vmem:[%s241 + $0x230] sm:$0xff] %v3985
        %4167 = vst [vmem:[%s241 + $0x238] sm:$0xff] %v4074
        %4168 = vst [vmem:[%s241 + $0x240] sm:$0xff] %v3899
        %4169 = vst [vmem:[%s241 + $0x248] sm:$0xff] %v3988
        %4170 = vst [vmem:[%s241 + $0x250] sm:$0xff] %v4077
        %4171 = vst [vmem:[%s241 + $0x258] sm:$0xff] %v3901
        %4172 = vst [vmem:[%s241 + $0x260] sm:$0xff] %v3990
        %4173 = vst [vmem:[%s241 + $0x268] sm:$0xff] %v4079
        %4174 = vst [vmem:[%s241 + $0x270] sm:$0xff] %v3904
        %4175 = vst [vmem:[%s241 + $0x278] sm:$0xff] %v3993
        %4176 = vst [vmem:[%s241 + $0x280] sm:$0xff] %v4082
        %4177 = vst [vmem:[%s241 + $0x288] sm:$0xff] %v3906
        %4178 = vst [vmem:[%s241 + $0x290] sm:$0xff] %v3995
        %4179 = vst [vmem:[%s241 + $0x298] sm:$0xff] %v4084
        %4180 = vst [vmem:[%s241 + $0x2a0] sm:$0xff] %v3909
        %4181 = vst [vmem:[%s241 + $0x2a8] sm:$0xff] %v3998
        %4182 = vst [vmem:[%s241 + $0x2b0] sm:$0xff] %v4087
        %4183 = vst [vmem:[%s241 + $0x2b8] sm:$0xff] %v3911
        %4184 = vst [vmem:[%s241 + $0x2c0] sm:$0xff] %v4000
        %4185 = vst [vmem:[%s241 + $0x2c8] sm:$0xff] %v4089
        %4186 = vst [vmem:[%s241 + $0x2d0] sm:$0xff] %v3914
        %4187 = vst [vmem:[%s241 + $0x2d8] sm:$0xff] %v4003
        %4188 = vst [vmem:[%s241 + $0x2e0] sm:$0xff] %v4092
        %4189 = vst [vmem:[%s241 + $0x2e8] sm:$0xff] %v3916
        %4190 = vst [vmem:[%s241 + $0x2f0] sm:$0xff] %v4005
        %4191 = vst [vmem:[%s241 + $0x2f8] sm:$0xff] %v4094
        %s4192 = sand.u32 %s153, 1
        %s4193 = scalar_lea.sflag [#allocation4], %s4192
        %s4194 = sand.u32 %s153, 1
        %s4195 = smul.addr %s4194, 768
        %s4196 = scalar_lea.vmem [#allocation3], %s4195
        // Predicated region
        $region41: #{tpu_custom_call.1} parent=39 // pred_check
          %p4197 = pneg %p163
        $region42: #{tpu_custom_call.1} parent=39 // pred_check_branch
          %4199 = sbr.rel (%p4197) target = $region44
        $region43: #{tpu_custom_call.1} parent=39 // pred_region
          %s4200 = smul.u32 16, %s24
          %4202 = vsyncadd %s4193, 0
          %s4203 = smul.addr %s4200, 6
          %s4204 = smul.addr %s23, 96
          %s4205 = sadd.s32 %s4203, %s4204
          %s4206 = smul.addr %s4205, 8
          %s4207 = scalar_lea.hbm %s5, %s4206
          %s4208 = sshll.u32 %s4196, 4
          %s4209 = int_to_ptr.vmem [resolvable:$true] %s4208
          %s4210 = sshll.u32 %s4207, 4
          %s4211 = int_to_ptr.hbm [resolvable:$true] %s4210
          %4216 = dma.vmem_to_hbm [thread:$0]  %s4209, 12288, %s4211, %s4193, 384, 384, 24
        $region44: #{tpu_custom_call.1} parent=39 // pred_fallthru
          _
      $region40: #{tpu_custom_call.1} parent=5 // pred_fallthru
        _
      %p4217 = scmp.le.s32.totalorder 2, %s14
      // Predicated region
      $region45: #{tpu_custom_call.1} parent=5 // pred_check
        %p4218 = pneg %p4217
      $region46: #{tpu_custom_call.1} parent=5 // pred_check_branch
        %4220 = sbr.rel (%p4218) target = $region48
      $region47: #{tpu_custom_call.1} parent=5 // pred_region
        %s4221 = ssub.s32 %s14, 2
        // Predicated region
        $region49: #{tpu_custom_call.1} parent=47 // pred_check
          %p4222 = pneg %p169
        $region50: #{tpu_custom_call.1} parent=47 // pred_check_branch
          %4224 = sbr.rel (%p4222) target = $region52
        $region51: #{tpu_custom_call.1} parent=47 // pred_region
          %s4225 = sand.u32 %s154, 1
          %s4226 = scalar_lea.sflag [#allocation4], %s4225
          %s4227 = sand.u32 %s154, 1
          %s4228 = smul.addr %s4227, 768
          %s4229 = scalar_lea.vmem [#allocation3], %s4228
          %4231 = dma.done %s4226, 12288
        $region52: #{tpu_custom_call.1} parent=47 // pred_fallthru
          _
      $region48: #{tpu_custom_call.1} parent=5 // pred_fallthru
        _
    $region6: #{tpu_custom_call.1} parent=1 // loop_footer
      %s18 = sadd.s32 1, %s14
    $region7: #{tpu_custom_call.1} parent=1 // loop_footer_branch
      %13 = sbr.rel target = $region3
    $region8: #{tpu_custom_call.1} parent=1 // loop_exit
      _
    %4232 = vsyncpa [#allocation4], 1
    %s4233 = scalar_lea.sflag [#allocation4], 1
    %4234 = vsyncpa %s4233, 1

</llo_original>
